<compile_context>
chip_gen: v5e
topology: v5e:2x2
jax: 0.10.0
libtpu: 0.0.40
codegen_flags: <defaults>
</compile_context>

<pallas_src>
import functools
import math

import jax
import jax.numpy as jnp
from jax.experimental import pallas as pl
from jax.experimental.pallas import tpu as pltpu


_INV_SQRT2 = 1.0 / math.sqrt(2.0)


def _gelu(x):
    # Exact (erf-based) GELU, matching the BERT-style `gelu` helper.
    return 0.5 * x * (1.0 + jax.lax.erf(x * _INV_SQRT2))


def _round_up(v, m):
    return ((v + m - 1) // m) * m


# ------------------------------------------------------------------ kernels --

def _lin_gelu_kernel(x_ref, w_ref, o_ref):
    # H = gelu(x @ W)   (W already pre-transposed to (in, out), bf16 operands)
    y = jnp.dot(x_ref[...], w_ref[...], preferred_element_type=jnp.float32)
    o_ref[...] = _gelu(y).astype(o_ref.dtype)


def _combine_kernel(a_ref, h_ref, x_ref, wr_ref, o_ref, acc_ref):
    # out = gelu(x @ Wr + A.T @ H), accumulated over the k (rows-of-A) grid axis.
    k = pl.program_id(1)

    @pl.when(k == 0)
    def _():
        # Seed the accumulator with the retained branch instead of a zero-fill:
        # saves a VMEM memset and folds both matmuls into a single k-loop.
        # x / Wr blocks are grid-invariant along k, so they stay VMEM-resident.
        acc_ref[...] = jnp.dot(x_ref[...], wr_ref[...],
                               preferred_element_type=jnp.float32)

    # Contract A's row axis with H's row axis -> (A_block).T @ H_block without
    # materializing the transpose (MXU handles this contraction form natively).
    acc_ref[...] += jax.lax.dot_general(
        a_ref[...], h_ref[...],
        dimension_numbers=(((0,), (0,)), ((), ())),
        preferred_element_type=jnp.float32)

    @pl.when(k == pl.num_programs(1) - 1)
    def _():
        o_ref[...] = _gelu(acc_ref[...]).astype(o_ref.dtype)


def _mlp_kernel(x_ref, w1_ref, g_ref, b_ref, w2_ref, o_ref, *, d_true, eps):
    # y = (LayerNorm(gelu(x @ W1)) * gamma + beta) @ w2
    h = _gelu(jnp.dot(x_ref[...], w1_ref[...],
                      preferred_element_type=jnp.float32))
    inv_d = 1.0 / d_true
    # Padded feature columns of h are exactly zero, so plain sums + true-D
    # divisor give the unpadded mean; the variance masks out padding lanes.
    mu = jnp.sum(h, axis=-1, keepdims=True) * inv_d
    hc = h - mu
    col = jax.lax.broadcasted_iota(jnp.int32, h.shape, dimension=1)
    valid = col < d_true
    var = jnp.sum(jnp.where(valid, hc * hc, 0.0), axis=-1, keepdims=True) * inv_d
    hn = hc * jax.lax.rsqrt(var + eps)
    hn = hn * g_ref[...] + b_ref[...]          # padded gamma/beta are zero
    # Final Linear(D, 1) as VPU multiply + row reduce (avoids a 1-wide MXU dot).
    o_ref[...] = jnp.sum(hn * w2_ref[...], axis=-1, keepdims=True)


# ----------------------------------------------------------------- wrapper ---

def _build_calls(n_pad, d_pad, tile_n, d_true):
    n_row_tiles = n_pad // tile_n
    n_k_tiles = n_pad // tile_n

    lin_gelu = pl.pallas_call(
        _lin_gelu_kernel,
        out_shape=jax.ShapeDtypeStruct((n_pad, d_pad), jnp.bfloat16),
        grid_spec=pltpu.PrefetchScalarGridSpec(
            num_scalar_prefetch=0,
            grid=(n_row_tiles,),
            in_specs=[pl.BlockSpec((tile_n, d_pad), lambda i: (i, 0)),
                      pl.BlockSpec((d_pad, d_pad), lambda i: (0, 0))],
            out_specs=pl.BlockSpec((tile_n, d_pad), lambda i: (i, 0))),
        compiler_params=pltpu.CompilerParams(
            dimension_semantics=("parallel",)),
    )

    combine = pl.pallas_call(
        _combine_kernel,
        out_shape=jax.ShapeDtypeStruct((n_pad, d_pad), jnp.bfloat16),
        grid_spec=pltpu.PrefetchScalarGridSpec(
            num_scalar_prefetch=0,
            grid=(n_row_tiles, n_k_tiles),
            in_specs=[pl.BlockSpec((tile_n, tile_n), lambda i, k: (k, i)),   # A
                      pl.BlockSpec((tile_n, d_pad), lambda i, k: (k, 0)),    # H
                      pl.BlockSpec((tile_n, d_pad), lambda i, k: (i, 0)),    # x
                      pl.BlockSpec((d_pad, d_pad), lambda i, k: (0, 0))],    # Wr
            out_specs=pl.BlockSpec((tile_n, d_pad), lambda i, k: (i, 0)),
            scratch_shapes=[pltpu.VMEM((tile_n, d_pad), jnp.float32)]),
        compiler_params=pltpu.CompilerParams(
            dimension_semantics=("parallel", "arbitrary")),
    )

    mlp = pl.pallas_call(
        functools.partial(_mlp_kernel, d_true=d_true, eps=1e-5),
        out_shape=jax.ShapeDtypeStruct((n_pad, 1), jnp.float32),
        grid_spec=pltpu.PrefetchScalarGridSpec(
            num_scalar_prefetch=0,
            grid=(n_row_tiles,),
            in_specs=[pl.BlockSpec((tile_n, d_pad), lambda i: (i, 0)),
                      pl.BlockSpec((d_pad, d_pad), lambda i: (0, 0)),
                      pl.BlockSpec((1, d_pad), lambda i: (0, 0)),
                      pl.BlockSpec((1, d_pad), lambda i: (0, 0)),
                      pl.BlockSpec((1, d_pad), lambda i: (0, 0))],
            out_specs=pl.BlockSpec((tile_n, 1), lambda i: (i, 0))),
        compiler_params=pltpu.CompilerParams(
            dimension_semantics=("parallel",)),
    )

    return lin_gelu, combine, mlp


@functools.partial(jax.jit, static_argnames=("tile_n",))
def gcn_forward(A, x, params, *, tile_n=128):
    # tile_n=128 keeps tiles 128-aligned (full MXU feed on v5e, valid everywhere)
    # and VMEM usage well under the 64 MiB v7x budget with double-buffering.
    N, D = x.shape
    d_pad = _round_up(max(D, 128), 128)
    n_pad = _round_up(max(N, tile_n), tile_n)

    bf16 = jnp.bfloat16
    A_p = jnp.pad(A.astype(bf16), ((0, n_pad - N), (0, n_pad - N)))
    x_p = jnp.pad(x.astype(bf16), ((0, n_pad - N), (0, d_pad - D)))

    def pad_wt(w):
        # torch Linear layout (out, in) -> pre-transposed (in, out), padded, bf16.
        wt = w.T.astype(bf16)
        return jnp.pad(wt, ((0, d_pad - wt.shape[0]), (0, d_pad - wt.shape[1])))

    wd = pad_wt(params["w_diff"])
    wr = pad_wt(params["w_ret"])
    w1 = pad_wt(params["w_mlp1"])
    w2 = jnp.pad(params["w_mlp2"].astype(jnp.float32), ((0, 0), (0, d_pad - D)))
    g = jnp.pad(params["ln_gamma"].astype(jnp.float32), ((0, 0), (0, d_pad - D)))
    b = jnp.pad(params["ln_beta"].astype(jnp.float32), ((0, 0), (0, d_pad - D)))

    lin_gelu, combine, mlp = _build_calls(n_pad, d_pad, tile_n, D)

    # --- GCN layer 1 ---
    h1 = lin_gelu(x_p, wd)            # gelu(x @ Wd^T)
    x1 = combine(A_p, h1, x_p, wr)    # gelu(x @ Wr^T + A^T @ h1)
    # --- GCN layer 2 ---
    h2 = lin_gelu(x1, wd)
    x2 = combine(A_p, h2, x1, wr)
    # --- MLP head: Linear -> gelu -> LayerNorm -> Linear(D, 1) ---
    y = mlp(x2, w1, g, b, w2)         # (n_pad, 1)
    return y[:N, 0]                   # squeeze(-1), drop row padding


# ------------------------------------------------------------------- test ----

def init_params(key, input_size):
    kd, kr, k1, k2 = jax.random.split(key, 4)
    std = 0.05
    return {
        # nn.Linear weight layout: (out_features, in_features)
        "w_diff": std * jax.random.normal(kd, (input_size, input_size), jnp.float32),
        "w_ret":  std * jax.random.normal(kr, (input_size, input_size), jnp.float32),
        "w_mlp1": std * jax.random.normal(k1, (input_size, input_size), jnp.float32),
        "w_mlp2": std * jax.random.normal(k2, (1, input_size), jnp.float32),
        # LayerNorm defaults (init_weights only touches Linear/Embedding)
        "ln_gamma": jnp.ones((1, input_size), jnp.float32),
        "ln_beta":  jnp.zeros((1, input_size), jnp.float32),
    }


def _reference(A, x, p):
    # Pure-JAX f32 reference mirroring the PyTorch forward (eval mode).
    def gelu(v):
        return 0.5 * v * (1.0 + jax.lax.erf(v / jnp.sqrt(2.0)))
    At = A.T
    l1 = At @ gelu(x @ p["w_diff"].T)
    x1 = gelu(x @ p["w_ret"].T + l1)
    l2 = At @ gelu(x1 @ p["w_diff"].T)
    x2 = gelu(x1 @ p["w_ret"].T + l2)
    h = gelu(x2 @ p["w_mlp1"].T)
    mu = h.mean(-1, keepdims=True)
    var = ((h - mu) ** 2).mean(-1, keepdims=True)
    h = (h - mu) / jnp.sqrt(var + 1e-5) * p["ln_gamma"] + p["ln_beta"]
    return (h @ p["w_mlp2"].T)[:, 0]


if __name__ == "__main__":
    N, D = 16, 32  # small graph: 16 nodes, feature size 32
    key = jax.random.PRNGKey(0)
    ka, kx, kp = jax.random.split(key, 3)

    A = jax.random.uniform(ka, (N, N), jnp.float32)
    x = jax.random.normal(kx, (N, D), jnp.float32)
    params = init_params(kp, D)

    y = gcn_forward(A, x, params)
    jax.block_until_ready(y)

    y_ref = _reference(A, x, params)
    assert y.shape == (N,), y.shape
    # bf16 matmul operands + bf16 inter-kernel activations vs. a pure-f32
    # reference; LayerNorm amplifies small rounding, so tolerance reflects that
    # (errors observed/expected are O(1e-2) on outputs of magnitude ~0.3).
    assert jnp.allclose(y, y_ref, atol=5e-2, rtol=5e-2), float(
        jnp.max(jnp.abs(y - y_ref)))

    print("KERNEL_OK")
</pallas_src>

<mosaic_0001>
module attributes {stable_mosaic.version = 11 : i64} {
  func.func @_combine_kernel(%arg0: i32, %arg1: i32, %arg2: memref<128x128xbf16, #tpu.memory_space<vmem>>, %arg3: memref<128x128xbf16, #tpu.memory_space<vmem>>, %arg4: memref<128x128xbf16, #tpu.memory_space<vmem>>, %arg5: memref<128x128xbf16, #tpu.memory_space<vmem>>, %arg6: memref<128x128xbf16, #tpu.memory_space<vmem>>, %arg7: memref<128x128xf32, #tpu.memory_space<vmem>>) attributes {dimension_semantics = [#tpu.dimension_semantics<parallel>, #tpu.dimension_semantics<arbitrary>], iteration_bounds = array<i64: 1, 1>, scalar_prefetch = 0 : i64, scratch_operands = 1 : i64, tpu.core_type = #tpu.core_type<tc>, window_params = [{transform_indices = @transform_0, window_bounds = array<i64: 128, 128>}, {transform_indices = @transform_1, window_bounds = array<i64: 128, 128>}, {transform_indices = @transform_2, window_bounds = array<i64: 128, 128>}, {pipeline_mode = #tpu.pipeline_mode<synchronous>, transform_indices = @transform_3, window_bounds = array<i64: 128, 128>}, {transform_indices = @transform_4, window_bounds = array<i64: 128, 128>}]} {
    %c0_i32 = arith.constant 0 : i32
    %0 = arith.cmpi eq, %arg1, %c0_i32 : i32
    %1 = arith.extui %0 : i1 to i32
    %c0_i32_0 = arith.constant 0 : i32
    %2 = arith.cmpi ne, %1, %c0_i32_0 : i32
    scf.if %2 {
      %c0_10 = arith.constant 0 : index
      %c0_11 = arith.constant 0 : index
      %12 = vector.load %arg4[%c0_10, %c0_11] : memref<128x128xbf16, #tpu.memory_space<vmem>>, vector<128x128xbf16>
      %c0_12 = arith.constant 0 : index
      %c0_13 = arith.constant 0 : index
      %13 = vector.load %arg5[%c0_12, %c0_13] : memref<128x128xbf16, #tpu.memory_space<vmem>>, vector<128x128xbf16>
      %cst_14 = arith.constant dense<0.000000e+00> : vector<128x128xf32>
      %14 = tpu.matmul %12, %13, %cst_14 {dimension_numbers = #tpu.dot_dimension_numbers<[1], [0], [0], [1], [0, 0, 1, 1], [], []>} : vector<128x128xbf16>, vector<128x128xbf16>, vector<128x128xf32> -> vector<128x128xf32>
      %c0_15 = arith.constant 0 : index
      %c0_16 = arith.constant 0 : index
      %15 = vector.load %arg7[%c0_15, %c0_16] : memref<128x128xf32, #tpu.memory_space<vmem>>, vector<128x128xf32>
      tpu.vector_store %arg7[%c0_15, %c0_16], %14 {strides = array<i32>} : memref<128x128xf32, #tpu.memory_space<vmem>>, vector<128x128xf32>,
    } else {
    }
    %c0 = arith.constant 0 : index
    %c0_1 = arith.constant 0 : index
    %3 = vector.load %arg7[%c0, %c0_1] : memref<128x128xf32, #tpu.memory_space<vmem>>, vector<128x128xf32>
    %c0_2 = arith.constant 0 : index
    %c0_3 = arith.constant 0 : index
    %4 = vector.load %arg2[%c0_2, %c0_3] : memref<128x128xbf16, #tpu.memory_space<vmem>>, vector<128x128xbf16>
    %c0_4 = arith.constant 0 : index
    %c0_5 = arith.constant 0 : index
    %5 = vector.load %arg3[%c0_4, %c0_5] : memref<128x128xbf16, #tpu.memory_space<vmem>>, vector<128x128xbf16>
    %cst = arith.constant dense<0.000000e+00> : vector<128x128xf32>
    %6 = tpu.matmul %4, %5, %cst {dimension_numbers = #tpu.dot_dimension_numbers<[0], [0], [1], [1], [0, 1, 1, 1], [], []>} : vector<128x128xbf16>, vector<128x128xbf16>, vector<128x128xf32> -> vector<128x128xf32>
    %7 = arith.addf %3, %6 : vector<128x128xf32>
    %c0_6 = arith.constant 0 : index
    %c0_7 = arith.constant 0 : index
    %8 = vector.load %arg7[%c0_6, %c0_7] : memref<128x128xf32, #tpu.memory_space<vmem>>, vector<128x128xf32>
    tpu.vector_store %arg7[%c0_6, %c0_7], %7 {strides = array<i32>} : memref<128x128xf32, #tpu.memory_space<vmem>>, vector<128x128xf32>,
    %c0_i32_8 = arith.constant 0 : i32
    %9 = arith.cmpi eq, %arg1, %c0_i32_8 : i32
    %10 = arith.extui %9 : i1 to i32
    %c0_i32_9 = arith.constant 0 : i32
    %11 = arith.cmpi ne, %10, %c0_i32_9 : i32
    scf.if %11 {
      %c0_10 = arith.constant 0 : index
      %c0_11 = arith.constant 0 : index
      %12 = vector.load %arg7[%c0_10, %c0_11] : memref<128x128xf32, #tpu.memory_space<vmem>>, vector<128x128xf32>
      %cst_12 = arith.constant 5.000000e-01 : f32
      %13 = vector.broadcast %cst_12 : f32 to vector<128x128xf32>
      %14 = arith.mulf %13, %12 : vector<128x128xf32>
      %cst_13 = arith.constant 0.707106769 : f32
      %15 = vector.broadcast %cst_13 : f32 to vector<128x128xf32>
      %16 = arith.mulf %12, %15 : vector<128x128xf32>
      %17 = math.erf %16 : vector<128x128xf32>
      %cst_14 = arith.constant 1.000000e+00 : f32
      %18 = vector.broadcast %cst_14 : f32 to vector<128x128xf32>
      %19 = arith.addf %18, %17 : vector<128x128xf32>
      %20 = arith.mulf %14, %19 : vector<128x128xf32>
      %21 = arith.truncf %20 : vector<128x128xf32> to vector<128x128xbf16>
      %c0_15 = arith.constant 0 : index
      %c0_16 = arith.constant 0 : index
      %22 = vector.load %arg6[%c0_15, %c0_16] : memref<128x128xbf16, #tpu.memory_space<vmem>>, vector<128x128xbf16>
      tpu.vector_store %arg6[%c0_15, %c0_16], %21 {strides = array<i32>} : memref<128x128xbf16, #tpu.memory_space<vmem>>, vector<128x128xbf16>,
    } else {
    }
    return
  }
  func.func @transform_0(%arg0: i32, %arg1: i32) -> (i32, i32) {
    %c0_i32 = arith.constant 0 : i32
    return %arg1, %arg0 : i32, i32
  }
  func.func @transform_1(%arg0: i32, %arg1: i32) -> (i32, i32) {
    %c0_i32 = arith.constant 0 : i32
    %c0_i32_0 = arith.constant 0 : i32
    return %arg1, %c0_i32 : i32, i32
  }
  func.func @transform_2(%arg0: i32, %arg1: i32) -> (i32, i32) {
    %c0_i32 = arith.constant 0 : i32
    %c0_i32_0 = arith.constant 0 : i32
    return %arg0, %c0_i32 : i32, i32
  }
  func.func @transform_3(%arg0: i32, %arg1: i32) -> (i32, i32) {
    %c0_i32 = arith.constant 0 : i32
    %c0_i32_0 = arith.constant 0 : i32
    %c0_i32_1 = arith.constant 0 : i32
    return %c0_i32, %c0_i32_0 : i32, i32
  }
  func.func @transform_4(%arg0: i32, %arg1: i32) -> (i32, i32) {
    %c0_i32 = arith.constant 0 : i32
    %c0_i32_0 = arith.constant 0 : i32
    return %arg0, %c0_i32 : i32, i32
  }
}

module attributes {stable_mosaic.version = 11 : i64} {
  func.func @_lin_gelu_kernel(%arg0: i32, %arg1: memref<128x128xbf16, #tpu.memory_space<vmem>>, %arg2: memref<128x128xbf16, #tpu.memory_space<vmem>>, %arg3: memref<128x128xbf16, #tpu.memory_space<vmem>>) attributes {dimension_semantics = [#tpu.dimension_semantics<parallel>], iteration_bounds = array<i64: 1>, scalar_prefetch = 0 : i64, scratch_operands = 0 : i64, tpu.core_type = #tpu.core_type<tc>, window_params = [{transform_indices = @transform_0, window_bounds = array<i64: 128, 128>}, {pipeline_mode = #tpu.pipeline_mode<synchronous>, transform_indices = @transform_1, window_bounds = array<i64: 128, 128>}, {transform_indices = @transform_2, window_bounds = array<i64: 128, 128>}]} {
    %c0 = arith.constant 0 : index
    %c0_0 = arith.constant 0 : index
    %0 = vector.load %arg1[%c0, %c0_0] : memref<128x128xbf16, #tpu.memory_space<vmem>>, vector<128x128xbf16>
    %c0_1 = arith.constant 0 : index
    %c0_2 = arith.constant 0 : index
    %1 = vector.load %arg2[%c0_1, %c0_2] : memref<128x128xbf16, #tpu.memory_space<vmem>>, vector<128x128xbf16>
    %cst = arith.constant dense<0.000000e+00> : vector<128x128xf32>
    %2 = tpu.matmul %0, %1, %cst {dimension_numbers = #tpu.dot_dimension_numbers<[1], [0], [0], [1], [0, 0, 1, 1], [], []>} : vector<128x128xbf16>, vector<128x128xbf16>, vector<128x128xf32> -> vector<128x128xf32>
    %cst_3 = arith.constant 5.000000e-01 : f32
    %3 = vector.broadcast %cst_3 : f32 to vector<128x128xf32>
    %4 = arith.mulf %3, %2 : vector<128x128xf32>
    %cst_4 = arith.constant 0.707106769 : f32
    %5 = vector.broadcast %cst_4 : f32 to vector<128x128xf32>
    %6 = arith.mulf %2, %5 : vector<128x128xf32>
    %7 = math.erf %6 : vector<128x128xf32>
    %cst_5 = arith.constant 1.000000e+00 : f32
    %8 = vector.broadcast %cst_5 : f32 to vector<128x128xf32>
    %9 = arith.addf %8, %7 : vector<128x128xf32>
    %10 = arith.mulf %4, %9 : vector<128x128xf32>
    %11 = arith.truncf %10 : vector<128x128xf32> to vector<128x128xbf16>
    %c0_6 = arith.constant 0 : index
    %c0_7 = arith.constant 0 : index
    %12 = vector.load %arg3[%c0_6, %c0_7] : memref<128x128xbf16, #tpu.memory_space<vmem>>, vector<128x128xbf16>
    tpu.vector_store %arg3[%c0_6, %c0_7], %11 {strides = array<i32>} : memref<128x128xbf16, #tpu.memory_space<vmem>>, vector<128x128xbf16>,
    return
  }
  func.func @transform_0(%arg0: i32) -> (i32, i32) {
    %c0_i32 = arith.constant 0 : i32
    %c0_i32_0 = arith.constant 0 : i32
    return %arg0, %c0_i32 : i32, i32
  }
  func.func @transform_1(%arg0: i32) -> (i32, i32) {
    %c0_i32 = arith.constant 0 : i32
    %c0_i32_0 = arith.constant 0 : i32
    %c0_i32_1 = arith.constant 0 : i32
    return %c0_i32, %c0_i32_0 : i32, i32
  }
  func.func @transform_2(%arg0: i32) -> (i32, i32) {
    %c0_i32 = arith.constant 0 : i32
    %c0_i32_0 = arith.constant 0 : i32
    return %arg0, %c0_i32 : i32, i32
  }
}

module attributes {stable_mosaic.version = 11 : i64} {
  func.func @_mlp_kernel(%arg0: i32, %arg1: memref<128x128xbf16, #tpu.memory_space<vmem>>, %arg2: memref<128x128xbf16, #tpu.memory_space<vmem>>, %arg3: memref<1x128xf32, #tpu.memory_space<vmem>>, %arg4: memref<1x128xf32, #tpu.memory_space<vmem>>, %arg5: memref<1x128xf32, #tpu.memory_space<vmem>>, %arg6: memref<128x1xf32, #tpu.memory_space<vmem>>) attributes {dimension_semantics = [#tpu.dimension_semantics<parallel>], iteration_bounds = array<i64: 1>, scalar_prefetch = 0 : i64, scratch_operands = 0 : i64, tpu.core_type = #tpu.core_type<tc>, window_params = [{transform_indices = @transform_0, window_bounds = array<i64: 128, 128>}, {pipeline_mode = #tpu.pipeline_mode<synchronous>, transform_indices = @transform_1, window_bounds = array<i64: 128, 128>}, {pipeline_mode = #tpu.pipeline_mode<synchronous>, transform_indices = @transform_2, window_bounds = array<i64: 1, 128>}, {pipeline_mode = #tpu.pipeline_mode<synchronous>, transform_indices = @transform_3, window_bounds = array<i64: 1, 128>}, {pipeline_mode = #tpu.pipeline_mode<synchronous>, transform_indices = @transform_4, window_bounds = array<i64: 1, 128>}, {transform_indices = @transform_5, window_bounds = array<i64: 128, 1>}]} {
    %c0 = arith.constant 0 : index
    %c0_0 = arith.constant 0 : index
    %0 = vector.load %arg1[%c0, %c0_0] : memref<128x128xbf16, #tpu.memory_space<vmem>>, vector<128x128xbf16>
    %c0_1 = arith.constant 0 : index
    %c0_2 = arith.constant 0 : index
    %1 = vector.load %arg2[%c0_1, %c0_2] : memref<128x128xbf16, #tpu.memory_space<vmem>>, vector<128x128xbf16>
    %cst = arith.constant dense<0.000000e+00> : vector<128x128xf32>
    %2 = tpu.matmul %0, %1, %cst {dimension_numbers = #tpu.dot_dimension_numbers<[1], [0], [0], [1], [0, 0, 1, 1], [], []>} : vector<128x128xbf16>, vector<128x128xbf16>, vector<128x128xf32> -> vector<128x128xf32>
    %cst_3 = arith.constant 5.000000e-01 : f32
    %3 = vector.broadcast %cst_3 : f32 to vector<128x128xf32>
    %4 = arith.mulf %3, %2 : vector<128x128xf32>
    %cst_4 = arith.constant 0.707106769 : f32
    %5 = vector.broadcast %cst_4 : f32 to vector<128x128xf32>
    %6 = arith.mulf %2, %5 : vector<128x128xf32>
    %7 = math.erf %6 : vector<128x128xf32>
    %cst_5 = arith.constant 1.000000e+00 : f32
    %8 = vector.broadcast %cst_5 : f32 to vector<128x128xf32>
    %9 = arith.addf %8, %7 : vector<128x128xf32>
    %10 = arith.mulf %4, %9 : vector<128x128xf32>
    %cst_6 = arith.constant dense<0.000000e+00> : vector<128xf32>
    %11 = vector.multi_reduction <add>, %10, %cst_6 [1] : vector<128x128xf32> to vector<128xf32>
    %12 = vector.shape_cast %11 : vector<128xf32> to vector<128x1xf32>
    %cst_7 = arith.constant 3.125000e-02 : f32
    %13 = vector.broadcast %cst_7 : f32 to vector<128x1xf32>
    %14 = arith.mulf %12, %13 : vector<128x1xf32>
    %15 = vector.broadcast %14 : vector<128x1xf32> to vector<128x128xf32>
    %16 = arith.subf %10, %15 : vector<128x128xf32>
    %17 = tpu.iota {dimensions = array<i32: 1>} : vector<128x128xi32>
    %c32_i32 = arith.constant 32 : i32
    %18 = vector.broadcast %c32_i32 : i32 to vector<128x128xi32>
    %19 = arith.cmpi slt, %17, %18 : vector<128x128xi32>
    %20 = arith.mulf %16, %16 : vector<128x128xf32>
    %cst_8 = arith.constant 0.000000e+00 : f32
    %21 = vector.broadcast %cst_8 : f32 to vector<128x128xf32>
    %22 = arith.select %19, %20, %21 : vector<128x128xi1>, vector<128x128xf32>
    %cst_9 = arith.constant dense<0.000000e+00> : vector<128xf32>
    %23 = vector.multi_reduction <add>, %22, %cst_9 [1] : vector<128x128xf32> to vector<128xf32>
    %24 = vector.shape_cast %23 : vector<128xf32> to vector<128x1xf32>
    %cst_10 = arith.constant 3.125000e-02 : f32
    %25 = vector.broadcast %cst_10 : f32 to vector<128x1xf32>
    %26 = arith.mulf %24, %25 : vector<128x1xf32>
    %cst_11 = arith.constant 9.99999974E-6 : f32
    %27 = vector.broadcast %cst_11 : f32 to vector<128x1xf32>
    %28 = arith.addf %26, %27 : vector<128x1xf32>
    %29 = math.rsqrt %28 : vector<128x1xf32>
    %30 = vector.broadcast %29 : vector<128x1xf32> to vector<128x128xf32>
    %31 = arith.mulf %16, %30 : vector<128x128xf32>
    %c0_12 = arith.constant 0 : index
    %c0_13 = arith.constant 0 : index
    %32 = vector.load %arg3[%c0_12, %c0_13] : memref<1x128xf32, #tpu.memory_space<vmem>>, vector<1x128xf32>
    %33 = vector.broadcast %32 : vector<1x128xf32> to vector<128x128xf32>
    %34 = arith.mulf %31, %33 : vector<128x128xf32>
    %c0_14 = arith.constant 0 : index
    %c0_15 = arith.constant 0 : index
    %35 = vector.load %arg4[%c0_14, %c0_15] : memref<1x128xf32, #tpu.memory_space<vmem>>, vector<1x128xf32>
    %36 = vector.broadcast %35 : vector<1x128xf32> to vector<128x128xf32>
    %37 = arith.addf %34, %36 : vector<128x128xf32>
    %c0_16 = arith.constant 0 : index
    %c0_17 = arith.constant 0 : index
    %38 = vector.load %arg5[%c0_16, %c0_17] : memref<1x128xf32, #tpu.memory_space<vmem>>, vector<1x128xf32>
    %39 = vector.broadcast %38 : vector<1x128xf32> to vector<128x128xf32>
    %40 = arith.mulf %37, %39 : vector<128x128xf32>
    %cst_18 = arith.constant dense<0.000000e+00> : vector<128xf32>
    %41 = vector.multi_reduction <add>, %40, %cst_18 [1] : vector<128x128xf32> to vector<128xf32>
    %42 = vector.shape_cast %41 : vector<128xf32> to vector<128x1xf32>
    %c0_19 = arith.constant 0 : index
    %c0_20 = arith.constant 0 : index
    %43 = vector.load %arg6[%c0_19, %c0_20] : memref<128x1xf32, #tpu.memory_space<vmem>>, vector<128x1xf32>
    tpu.vector_store %arg6[%c0_19, %c0_20], %42 {strides = array<i32>} : memref<128x1xf32, #tpu.memory_space<vmem>>, vector<128x1xf32>,
    return
  }
  func.func @transform_0(%arg0: i32) -> (i32, i32) {
    %c0_i32 = arith.constant 0 : i32
    %c0_i32_0 = arith.constant 0 : i32
    return %arg0, %c0_i32 : i32, i32
  }
  func.func @transform_1(%arg0: i32) -> (i32, i32) {
    %c0_i32 = arith.constant 0 : i32
    %c0_i32_0 = arith.constant 0 : i32
    %c0_i32_1 = arith.constant 0 : i32
    return %c0_i32, %c0_i32_0 : i32, i32
  }
  func.func @transform_2(%arg0: i32) -> (i32, i32) {
    %c0_i32 = arith.constant 0 : i32
    %c0_i32_0 = arith.constant 0 : i32
    %c0_i32_1 = arith.constant 0 : i32
    return %c0_i32, %c0_i32_0 : i32, i32
  }
  func.func @transform_3(%arg0: i32) -> (i32, i32) {
    %c0_i32 = arith.constant 0 : i32
    %c0_i32_0 = arith.constant 0 : i32
    %c0_i32_1 = arith.constant 0 : i32
    return %c0_i32, %c0_i32_0 : i32, i32
  }
  func.func @transform_4(%arg0: i32) -> (i32, i32) {
    %c0_i32 = arith.constant 0 : i32
    %c0_i32_0 = arith.constant 0 : i32
    %c0_i32_1 = arith.constant 0 : i32
    return %c0_i32, %c0_i32_0 : i32, i32
  }
  func.func @transform_5(%arg0: i32) -> (i32, i32) {
    %c0_i32 = arith.constant 0 : i32
    %c0_i32_0 = arith.constant 0 : i32
    return %arg0, %c0_i32 : i32, i32
  }
}

</mosaic_0001>

<llo_original>
// kernel: gcn_forward.5
$region0: #{gcn_forward.5}
  #allocation0 [shape = 'u32[]', space=smem, size = 0x4, offset = 0x4, fixed_abs, tag = 'smem constant byte address 0x4 - core index']
  #allocation1 [shape = 'u32[72,128]{1,0:T(1,128)}', space=vmem, size = 0x9000, scoped, tag = 'internal scratch']
  %s0 = inlined_call_operand.vmem [shape: bf16[128,128], index: 0, kind: input, shape index: {}]
  %s1 = inlined_call_operand.vmem [shape: bf16[128,128], index: 1, kind: input, shape index: {}]
  %s2 = inlined_call_operand.vmem [shape: bf16[128,128], index: 2, kind: output, shape index: {}]
  %s3 = sld [smem:[#allocation0]]
  $region18: #{gcn_forward.5} parent=0
    _
  %s5 = ssub.s32 1, %s3
  %s6 = scalar_select 0, %s5, %s3
  // Predicated region
  $region2: #{gcn_forward.5} parent=0 // pred_check
    _
  $region3: #{gcn_forward.5} parent=0 // pred_check_branch
    %8 = sbr.rel (0) target = $region5
  $region4: #{gcn_forward.5} parent=0 // pred_region
    _
  $region5: #{gcn_forward.5} parent=0 // pred_fallthru
    _
  // Predicated region
  $region6: #{gcn_forward.5} parent=0 // pred_check
    _
  $region7: #{gcn_forward.5} parent=0 // pred_check_branch
    %10 = sbr.rel (0) target = $region9
  $region8: #{gcn_forward.5} parent=0 // pred_region
    _
  $region9: #{gcn_forward.5} parent=0 // pred_fallthru
    _
  %v11 = vld [vmem:[%s0] sm:$0xf]
  %v12 = vld [vmem:[%s0 + $0x4] sm:$0xf]
  %v13 = vld [vmem:[%s0 + $0x8] sm:$0xf]
  %v14 = vld [vmem:[%s0 + $0xc] sm:$0xf]
  %v15 = vld [vmem:[%s0 + $0x10] sm:$0xf]
  %v16 = vld [vmem:[%s0 + $0x14] sm:$0xf]
  %v17 = vld [vmem:[%s0 + $0x18] sm:$0xf]
  %v18 = vld [vmem:[%s0 + $0x1c] sm:$0xf]
  %v19 = vld [vmem:[%s0 + $0x20] sm:$0xf]
  %v20 = vld [vmem:[%s0 + $0x24] sm:$0xf]
  %v21 = vld [vmem:[%s0 + $0x28] sm:$0xf]
  %v22 = vld [vmem:[%s0 + $0x2c] sm:$0xf]
  %v23 = vld [vmem:[%s0 + $0x30] sm:$0xf]
  %v24 = vld [vmem:[%s0 + $0x34] sm:$0xf]
  %v25 = vld [vmem:[%s0 + $0x38] sm:$0xf]
  %v26 = vld [vmem:[%s0 + $0x3c] sm:$0xf]
  %v27 = vld [vmem:[%s1] sm:$0xf]
  %v28 = vld [vmem:[%s1 + $0x4] sm:$0xf]
  %v29 = vld [vmem:[%s1 + $0x8] sm:$0xf]
  %v30 = vld [vmem:[%s1 + $0xc] sm:$0xf]
  %v31 = vld [vmem:[%s1 + $0x10] sm:$0xf]
  %v32 = vld [vmem:[%s1 + $0x14] sm:$0xf]
  %v33 = vld [vmem:[%s1 + $0x18] sm:$0xf]
  %v34 = vld [vmem:[%s1 + $0x1c] sm:$0xf]
  %v35 = vld [vmem:[%s1 + $0x20] sm:$0xf]
  %v36 = vld [vmem:[%s1 + $0x24] sm:$0xf]
  %v37 = vld [vmem:[%s1 + $0x28] sm:$0xf]
  %v38 = vld [vmem:[%s1 + $0x2c] sm:$0xf]
  %v39 = vld [vmem:[%s1 + $0x30] sm:$0xf]
  %v40 = vld [vmem:[%s1 + $0x34] sm:$0xf]
  %v41 = vld [vmem:[%s1 + $0x38] sm:$0xf]
  %v42 = vld [vmem:[%s1 + $0x3c] sm:$0xf]
  %v59 = vunpack.c.l.b16 %v11
  %v60 = vunpack.c.l.b16 %v12
  %v61 = vunpack.c.l.b16 %v13
  %v62 = vunpack.c.l.b16 %v14
  %v63 = vunpack.c.l.b16 %v15
  %v64 = vunpack.c.l.b16 %v16
  %v65 = vunpack.c.l.b16 %v17
  %v66 = vunpack.c.l.b16 %v18
  %v67 = vunpack.c.l.b16 %v19
  %v68 = vunpack.c.l.b16 %v20
  %v69 = vunpack.c.l.b16 %v21
  %v70 = vunpack.c.l.b16 %v22
  %v71 = vunpack.c.l.b16 %v23
  %v72 = vunpack.c.l.b16 %v24
  %v73 = vunpack.c.l.b16 %v25
  %v74 = vunpack.c.l.b16 %v26
  %v75 = vpack.c.b16 %v60, %v59
  %v76 = vpack.c.b16 %v62, %v61
  %v77 = vpack.c.b16 %v64, %v63
  %v78 = vpack.c.b16 %v66, %v65
  %v79 = vpack.c.b16 %v68, %v67
  %v80 = vpack.c.b16 %v70, %v69
  %v81 = vpack.c.b16 %v72, %v71
  %v82 = vpack.c.b16 %v74, %v73
  %v107 = vunpack.c.l.b16 %v27
  %v108 = vunpack.c.l.b16 %v28
  %v109 = vunpack.c.l.b16 %v29
  %v110 = vunpack.c.l.b16 %v30
  %v111 = vunpack.c.l.b16 %v31
  %v112 = vunpack.c.l.b16 %v32
  %v113 = vunpack.c.l.b16 %v33
  %v114 = vunpack.c.l.b16 %v34
  %v115 = vunpack.c.l.b16 %v35
  %v116 = vunpack.c.l.b16 %v36
  %v117 = vunpack.c.l.b16 %v37
  %v118 = vunpack.c.l.b16 %v38
  %v119 = vunpack.c.l.b16 %v39
  %v120 = vunpack.c.l.b16 %v40
  %v121 = vunpack.c.l.b16 %v41
  %v122 = vunpack.c.l.b16 %v42
  %v123 = vpack.c.b16 %v108, %v107
  %v124 = vpack.c.b16 %v110, %v109
  %v125 = vpack.c.b16 %v112, %v111
  %v126 = vpack.c.b16 %v114, %v113
  %v127 = vpack.c.b16 %v116, %v115
  %v128 = vpack.c.b16 %v118, %v117
  %v129 = vpack.c.b16 %v120, %v119
  %v130 = vpack.c.b16 %v122, %v121
  %139 = vmatpush.bf16.msra.mxu0 %v130
  %140 = vmatpush.bf16.msra.mxu0 %v129
  %141 = vmatpush.bf16.msra.mxu0 %v128
  %142 = vmatpush.bf16.msra.mxu0 %v127
  %143 = vmatpush.bf16.msra.mxu0 %v126
  %144 = vmatpush.bf16.msra.mxu0 %v125
  %145 = vmatpush.bf16.msra.mxu0 %v124
  %146 = vmatpush.bf16.msra.mxu0 %v123
  %147 = vmatmul.bf16.gmra.mxu0 %v75
  %v148 = vpop.f32.mrf.mxu0
  %v149 = vadd.f32 0.0, %v148
  %v150 = vpop.f32.mrf.mxu0
  %v151 = vadd.f32 0.0, %v150
  %152 = vmatmul.bf16.gmra.mxu0 %v76
  %v153 = vpop.f32.mrf.mxu0
  %v154 = vadd.f32 0.0, %v153
  %v155 = vpop.f32.mrf.mxu0
  %v156 = vadd.f32 0.0, %v155
  %157 = vmatmul.bf16.gmra.mxu0 %v77
  %v158 = vpop.f32.mrf.mxu0
  %v159 = vadd.f32 0.0, %v158
  %v160 = vpop.f32.mrf.mxu0
  %v161 = vadd.f32 0.0, %v160
  %162 = vmatmul.bf16.gmra.mxu0 %v78
  %v163 = vpop.f32.mrf.mxu0
  %v164 = vadd.f32 0.0, %v163
  %v165 = vpop.f32.mrf.mxu0
  %v166 = vadd.f32 0.0, %v165
  %167 = vmatmul.bf16.gmra.mxu0 %v79
  %v168 = vpop.f32.mrf.mxu0
  %v169 = vadd.f32 0.0, %v168
  %v170 = vpop.f32.mrf.mxu0
  %v171 = vadd.f32 0.0, %v170
  %172 = vmatmul.bf16.gmra.mxu0 %v80
  %v173 = vpop.f32.mrf.mxu0
  %v174 = vadd.f32 0.0, %v173
  %v175 = vpop.f32.mrf.mxu0
  %v176 = vadd.f32 0.0, %v175
  %177 = vmatmul.bf16.gmra.mxu0 %v81
  %v178 = vpop.f32.mrf.mxu0
  %v179 = vadd.f32 0.0, %v178
  %v180 = vpop.f32.mrf.mxu0
  %v181 = vadd.f32 0.0, %v180
  %182 = vmatmul.bf16.gmra.mxu0 %v82
  %v183 = vpop.f32.mrf.mxu0
  %v184 = vadd.f32 0.0, %v183
  %v185 = vpop.f32.mrf.mxu0
  %v186 = vadd.f32 0.0, %v185
  %187 = vdwg.mxu0
  %v188 = vmul.f32 %v149, 0.5
  %v189 = vmul.f32 %v151, 0.5
  %v190 = vmul.f32 %v154, 0.5
  %v191 = vmul.f32 %v156, 0.5
  %v192 = vmul.f32 %v159, 0.5
  %v193 = vmul.f32 %v161, 0.5
  %v194 = vmul.f32 %v164, 0.5
  %v195 = vmul.f32 %v166, 0.5
  %v196 = vmul.f32 %v169, 0.5
  %v197 = vmul.f32 %v171, 0.5
  %v198 = vmul.f32 %v174, 0.5
  %v199 = vmul.f32 %v176, 0.5
  %v200 = vmul.f32 %v179, 0.5
  %v201 = vmul.f32 %v181, 0.5
  %v202 = vmul.f32 %v184, 0.5
  %v203 = vmul.f32 %v186, 0.5
  %v204 = vmul.f32 %v149, 0.70710677
  %v205 = vmul.f32 %v151, 0.70710677
  %v206 = vmul.f32 %v154, 0.70710677
  %v207 = vmul.f32 %v156, 0.70710677
  %v208 = vmul.f32 %v159, 0.70710677
  %v209 = vmul.f32 %v161, 0.70710677
  %v210 = vmul.f32 %v164, 0.70710677
  %v211 = vmul.f32 %v166, 0.70710677
  %v212 = vmul.f32 %v169, 0.70710677
  %v213 = vmul.f32 %v171, 0.70710677
  %v214 = vmul.f32 %v174, 0.70710677
  %v215 = vmul.f32 %v176, 0.70710677
  %v216 = vmul.f32 %v179, 0.70710677
  %v217 = vmul.f32 %v181, 0.70710677
  %v218 = vmul.f32 %v184, 0.70710677
  %v219 = vmul.f32 %v186, 0.70710677
  %v220 = vmul.f32 %v204, %v204
  %v221 = vmin.f32 16.0, %v220
  %v222 = vmul.f32 %v221, 2.1237322e-06
  %v223 = vadd.f32 %v222, 0.00028619796
  %v224 = vmul.f32 %v221, %v223
  %v225 = vadd.f32 %v224, 0.0036580483
  %v226 = vmul.f32 %v221, %v225
  %v227 = vadd.f32 %v226, 0.05243302
  %v228 = vmul.f32 %v221, %v227
  %v229 = vadd.f32 %v228, 0.18741608
  %v230 = vmul.f32 %v221, %v229
  %v231 = vadd.f32 %v230, 1.1283791
  %v232 = vmul.f32 %v204, %v231
  %v233 = vmul.f32 %v221, 3.8918573e-05
  %v234 = vadd.f32 %v233, 0.001143296
  %v235 = vmul.f32 %v221, %v234
  %v236 = vadd.f32 %v235, 0.014752088
  %v237 = vmul.f32 %v221, %v236
  %v238 = vadd.f32 %v237, 0.112945676
  %v239 = vmul.f32 %v221, %v238
  %v240 = vadd.f32 %v239, 0.4994258
  %v241 = vmul.f32 %v221, %v240
  %v242 = vadd.f32 %v241, 1.0
  %v243 = vrcp.pop %v242
  %v244 = vmul.f32 %v242, %v243
  %v245 = vsub.f32 1.0, %v244
  %v246 = vmul.f32 %v243, %v245
  %v247 = vadd.f32 %v243, %v246
  %vm248 = vweird.f32 %v242
  %vm249 = vweird.f32 %v243
  %vm250 = vmor %vm248, %vm249
  %v251 = vsel %vm250, %v243, %v247
  %v252 = vand.u32 2147483647, %v242
  %vm253 = vcmp.eq.f32.partialorder %v252, 8.507059e+37
  %v254 = vand.u32 %v242, 2147483648
  %v255 = vor.u32 1.1754944e-38, %v254
  %v256 = vsel %vm253, %v255, %v251
  %v257 = vmul.f32 %v232, %v256
  %v258 = vmin.f32 %v257, 1.0
  %v259 = vmax.f32 %v258, -1.0
  %v260 = vmul.f32 %v205, %v205
  %v261 = vmin.f32 16.0, %v260
  %v262 = vmul.f32 %v261, 2.1237322e-06
  %v263 = vadd.f32 %v262, 0.00028619796
  %v264 = vmul.f32 %v261, %v263
  %v265 = vadd.f32 %v264, 0.0036580483
  %v266 = vmul.f32 %v261, %v265
  %v267 = vadd.f32 %v266, 0.05243302
  %v268 = vmul.f32 %v261, %v267
  %v269 = vadd.f32 %v268, 0.18741608
  %v270 = vmul.f32 %v261, %v269
  %v271 = vadd.f32 %v270, 1.1283791
  %v272 = vmul.f32 %v205, %v271
  %v273 = vmul.f32 %v261, 3.8918573e-05
  %v274 = vadd.f32 %v273, 0.001143296
  %v275 = vmul.f32 %v261, %v274
  %v276 = vadd.f32 %v275, 0.014752088
  %v277 = vmul.f32 %v261, %v276
  %v278 = vadd.f32 %v277, 0.112945676
  %v279 = vmul.f32 %v261, %v278
  %v280 = vadd.f32 %v279, 0.4994258
  %v281 = vmul.f32 %v261, %v280
  %v282 = vadd.f32 %v281, 1.0
  %v283 = vrcp.pop %v282
  %v284 = vmul.f32 %v282, %v283
  %v285 = vsub.f32 1.0, %v284
  %v286 = vmul.f32 %v283, %v285
  %v287 = vadd.f32 %v283, %v286
  %vm288 = vweird.f32 %v282
  %vm289 = vweird.f32 %v283
  %vm290 = vmor %vm288, %vm289
  %v291 = vsel %vm290, %v283, %v287
  %v292 = vand.u32 2147483647, %v282
  %vm293 = vcmp.eq.f32.partialorder %v292, 8.507059e+37
  %v294 = vand.u32 %v282, 2147483648
  %v295 = vor.u32 1.1754944e-38, %v294
  %v296 = vsel %vm293, %v295, %v291
  %v297 = vmul.f32 %v272, %v296
  %v298 = vmin.f32 %v297, 1.0
  %v299 = vmax.f32 %v298, -1.0
  %v300 = vmul.f32 %v206, %v206
  %v301 = vmin.f32 16.0, %v300
  %v302 = vmul.f32 %v301, 2.1237322e-06
  %v303 = vadd.f32 %v302, 0.00028619796
  %v304 = vmul.f32 %v301, %v303
  %v305 = vadd.f32 %v304, 0.0036580483
  %v306 = vmul.f32 %v301, %v305
  %v307 = vadd.f32 %v306, 0.05243302
  %v308 = vmul.f32 %v301, %v307
  %v309 = vadd.f32 %v308, 0.18741608
  %v310 = vmul.f32 %v301, %v309
  %v311 = vadd.f32 %v310, 1.1283791
  %v312 = vmul.f32 %v206, %v311
  %v313 = vmul.f32 %v301, 3.8918573e-05
  %v314 = vadd.f32 %v313, 0.001143296
  %v315 = vmul.f32 %v301, %v314
  %v316 = vadd.f32 %v315, 0.014752088
  %v317 = vmul.f32 %v301, %v316
  %v318 = vadd.f32 %v317, 0.112945676
  %v319 = vmul.f32 %v301, %v318
  %v320 = vadd.f32 %v319, 0.4994258
  %v321 = vmul.f32 %v301, %v320
  %v322 = vadd.f32 %v321, 1.0
  %v323 = vrcp.pop %v322
  %v324 = vmul.f32 %v322, %v323
  %v325 = vsub.f32 1.0, %v324
  %v326 = vmul.f32 %v323, %v325
  %v327 = vadd.f32 %v323, %v326
  %vm328 = vweird.f32 %v322
  %vm329 = vweird.f32 %v323
  %vm330 = vmor %vm328, %vm329
  %v331 = vsel %vm330, %v323, %v327
  %v332 = vand.u32 2147483647, %v322
  %vm333 = vcmp.eq.f32.partialorder %v332, 8.507059e+37
  %v334 = vand.u32 %v322, 2147483648
  %v335 = vor.u32 1.1754944e-38, %v334
  %v336 = vsel %vm333, %v335, %v331
  %v337 = vmul.f32 %v312, %v336
  %v338 = vmin.f32 %v337, 1.0
  %v339 = vmax.f32 %v338, -1.0
  %v340 = vmul.f32 %v207, %v207
  %v341 = vmin.f32 16.0, %v340
  %v342 = vmul.f32 %v341, 2.1237322e-06
  %v343 = vadd.f32 %v342, 0.00028619796
  %v344 = vmul.f32 %v341, %v343
  %v345 = vadd.f32 %v344, 0.0036580483
  %v346 = vmul.f32 %v341, %v345
  %v347 = vadd.f32 %v346, 0.05243302
  %v348 = vmul.f32 %v341, %v347
  %v349 = vadd.f32 %v348, 0.18741608
  %v350 = vmul.f32 %v341, %v349
  %v351 = vadd.f32 %v350, 1.1283791
  %v352 = vmul.f32 %v207, %v351
  %v353 = vmul.f32 %v341, 3.8918573e-05
  %v354 = vadd.f32 %v353, 0.001143296
  %v355 = vmul.f32 %v341, %v354
  %v356 = vadd.f32 %v355, 0.014752088
  %v357 = vmul.f32 %v341, %v356
  %v358 = vadd.f32 %v357, 0.112945676
  %v359 = vmul.f32 %v341, %v358
  %v360 = vadd.f32 %v359, 0.4994258
  %v361 = vmul.f32 %v341, %v360
  %v362 = vadd.f32 %v361, 1.0
  %v363 = vrcp.pop %v362
  %v364 = vmul.f32 %v362, %v363
  %v365 = vsub.f32 1.0, %v364
  %v366 = vmul.f32 %v363, %v365
  %v367 = vadd.f32 %v363, %v366
  %vm368 = vweird.f32 %v362
  %vm369 = vweird.f32 %v363
  %vm370 = vmor %vm368, %vm369
  %v371 = vsel %vm370, %v363, %v367
  %v372 = vand.u32 2147483647, %v362
  %vm373 = vcmp.eq.f32.partialorder %v372, 8.507059e+37
  %v374 = vand.u32 %v362, 2147483648
  %v375 = vor.u32 1.1754944e-38, %v374
  %v376 = vsel %vm373, %v375, %v371
  %v377 = vmul.f32 %v352, %v376
  %v378 = vmin.f32 %v377, 1.0
  %v379 = vmax.f32 %v378, -1.0
  %v380 = vmul.f32 %v208, %v208
  %v381 = vmin.f32 16.0, %v380
  %v382 = vmul.f32 %v381, 2.1237322e-06
  %v383 = vadd.f32 %v382, 0.00028619796
  %v384 = vmul.f32 %v381, %v383
  %v385 = vadd.f32 %v384, 0.0036580483
  %v386 = vmul.f32 %v381, %v385
  %v387 = vadd.f32 %v386, 0.05243302
  %v388 = vmul.f32 %v381, %v387
  %v389 = vadd.f32 %v388, 0.18741608
  %v390 = vmul.f32 %v381, %v389
  %v391 = vadd.f32 %v390, 1.1283791
  %v392 = vmul.f32 %v208, %v391
  %v393 = vmul.f32 %v381, 3.8918573e-05
  %v394 = vadd.f32 %v393, 0.001143296
  %v395 = vmul.f32 %v381, %v394
  %v396 = vadd.f32 %v395, 0.014752088
  %v397 = vmul.f32 %v381, %v396
  %v398 = vadd.f32 %v397, 0.112945676
  %v399 = vmul.f32 %v381, %v398
  %v400 = vadd.f32 %v399, 0.4994258
  %v401 = vmul.f32 %v381, %v400
  %v402 = vadd.f32 %v401, 1.0
  %v403 = vrcp.pop %v402
  %v404 = vmul.f32 %v402, %v403
  %v405 = vsub.f32 1.0, %v404
  %v406 = vmul.f32 %v403, %v405
  %v407 = vadd.f32 %v403, %v406
  %vm408 = vweird.f32 %v402
  %vm409 = vweird.f32 %v403
  %vm410 = vmor %vm408, %vm409
  %v411 = vsel %vm410, %v403, %v407
  %v412 = vand.u32 2147483647, %v402
  %vm413 = vcmp.eq.f32.partialorder %v412, 8.507059e+37
  %v414 = vand.u32 %v402, 2147483648
  %v415 = vor.u32 1.1754944e-38, %v414
  %v416 = vsel %vm413, %v415, %v411
  %v417 = vmul.f32 %v392, %v416
  %v418 = vmin.f32 %v417, 1.0
  %v419 = vmax.f32 %v418, -1.0
  %v420 = vmul.f32 %v209, %v209
  %v421 = vmin.f32 16.0, %v420
  %v422 = vmul.f32 %v421, 2.1237322e-06
  %v423 = vadd.f32 %v422, 0.00028619796
  %v424 = vmul.f32 %v421, %v423
  %v425 = vadd.f32 %v424, 0.0036580483
  %v426 = vmul.f32 %v421, %v425
  %v427 = vadd.f32 %v426, 0.05243302
  %v428 = vmul.f32 %v421, %v427
  %v429 = vadd.f32 %v428, 0.18741608
  %v430 = vmul.f32 %v421, %v429
  %v431 = vadd.f32 %v430, 1.1283791
  %v432 = vmul.f32 %v209, %v431
  %v433 = vmul.f32 %v421, 3.8918573e-05
  %v434 = vadd.f32 %v433, 0.001143296
  %v435 = vmul.f32 %v421, %v434
  %v436 = vadd.f32 %v435, 0.014752088
  %v437 = vmul.f32 %v421, %v436
  %v438 = vadd.f32 %v437, 0.112945676
  %v439 = vmul.f32 %v421, %v438
  %v440 = vadd.f32 %v439, 0.4994258
  %v441 = vmul.f32 %v421, %v440
  %v442 = vadd.f32 %v441, 1.0
  %v443 = vrcp.pop %v442
  %v444 = vmul.f32 %v442, %v443
  %v445 = vsub.f32 1.0, %v444
  %v446 = vmul.f32 %v443, %v445
  %v447 = vadd.f32 %v443, %v446
  %vm448 = vweird.f32 %v442
  %vm449 = vweird.f32 %v443
  %vm450 = vmor %vm448, %vm449
  %v451 = vsel %vm450, %v443, %v447
  %v452 = vand.u32 2147483647, %v442
  %vm453 = vcmp.eq.f32.partialorder %v452, 8.507059e+37
  %v454 = vand.u32 %v442, 2147483648
  %v455 = vor.u32 1.1754944e-38, %v454
  %v456 = vsel %vm453, %v455, %v451
  %v457 = vmul.f32 %v432, %v456
  %v458 = vmin.f32 %v457, 1.0
  %v459 = vmax.f32 %v458, -1.0
  %v460 = vmul.f32 %v210, %v210
  %v461 = vmin.f32 16.0, %v460
  %v462 = vmul.f32 %v461, 2.1237322e-06
  %v463 = vadd.f32 %v462, 0.00028619796
  %v464 = vmul.f32 %v461, %v463
  %v465 = vadd.f32 %v464, 0.0036580483
  %v466 = vmul.f32 %v461, %v465
  %v467 = vadd.f32 %v466, 0.05243302
  %v468 = vmul.f32 %v461, %v467
  %v469 = vadd.f32 %v468, 0.18741608
  %v470 = vmul.f32 %v461, %v469
  %v471 = vadd.f32 %v470, 1.1283791
  %v472 = vmul.f32 %v210, %v471
  %v473 = vmul.f32 %v461, 3.8918573e-05
  %v474 = vadd.f32 %v473, 0.001143296
  %v475 = vmul.f32 %v461, %v474
  %v476 = vadd.f32 %v475, 0.014752088
  %v477 = vmul.f32 %v461, %v476
  %v478 = vadd.f32 %v477, 0.112945676
  %v479 = vmul.f32 %v461, %v478
  %v480 = vadd.f32 %v479, 0.4994258
  %v481 = vmul.f32 %v461, %v480
  %v482 = vadd.f32 %v481, 1.0
  %v483 = vrcp.pop %v482
  %v484 = vmul.f32 %v482, %v483
  %v485 = vsub.f32 1.0, %v484
  %v486 = vmul.f32 %v483, %v485
  %v487 = vadd.f32 %v483, %v486
  %vm488 = vweird.f32 %v482
  %vm489 = vweird.f32 %v483
  %vm490 = vmor %vm488, %vm489
  %v491 = vsel %vm490, %v483, %v487
  %v492 = vand.u32 2147483647, %v482
  %vm493 = vcmp.eq.f32.partialorder %v492, 8.507059e+37
  %v494 = vand.u32 %v482, 2147483648
  %v495 = vor.u32 1.1754944e-38, %v494
  %v496 = vsel %vm493, %v495, %v491
  %v497 = vmul.f32 %v472, %v496
  %v498 = vmin.f32 %v497, 1.0
  %v499 = vmax.f32 %v498, -1.0
  %v500 = vmul.f32 %v211, %v211
  %v501 = vmin.f32 16.0, %v500
  %v502 = vmul.f32 %v501, 2.1237322e-06
  %v503 = vadd.f32 %v502, 0.00028619796
  %v504 = vmul.f32 %v501, %v503
  %v505 = vadd.f32 %v504, 0.0036580483
  %v506 = vmul.f32 %v501, %v505
  %v507 = vadd.f32 %v506, 0.05243302
  %v508 = vmul.f32 %v501, %v507
  %v509 = vadd.f32 %v508, 0.18741608
  %v510 = vmul.f32 %v501, %v509
  %v511 = vadd.f32 %v510, 1.1283791
  %v512 = vmul.f32 %v211, %v511
  %v513 = vmul.f32 %v501, 3.8918573e-05
  %v514 = vadd.f32 %v513, 0.001143296
  %v515 = vmul.f32 %v501, %v514
  %v516 = vadd.f32 %v515, 0.014752088
  %v517 = vmul.f32 %v501, %v516
  %v518 = vadd.f32 %v517, 0.112945676
  %v519 = vmul.f32 %v501, %v518
  %v520 = vadd.f32 %v519, 0.4994258
  %v521 = vmul.f32 %v501, %v520
  %v522 = vadd.f32 %v521, 1.0
  %v523 = vrcp.pop %v522
  %v524 = vmul.f32 %v522, %v523
  %v525 = vsub.f32 1.0, %v524
  %v526 = vmul.f32 %v523, %v525
  %v527 = vadd.f32 %v523, %v526
  %vm528 = vweird.f32 %v522
  %vm529 = vweird.f32 %v523
  %vm530 = vmor %vm528, %vm529
  %v531 = vsel %vm530, %v523, %v527
  %v532 = vand.u32 2147483647, %v522
  %vm533 = vcmp.eq.f32.partialorder %v532, 8.507059e+37
  %v534 = vand.u32 %v522, 2147483648
  %v535 = vor.u32 1.1754944e-38, %v534
  %v536 = vsel %vm533, %v535, %v531
  %v537 = vmul.f32 %v512, %v536
  %v538 = vmin.f32 %v537, 1.0
  %v539 = vmax.f32 %v538, -1.0
  %v540 = vmul.f32 %v212, %v212
  %v541 = vmin.f32 16.0, %v540
  %v542 = vmul.f32 %v541, 2.1237322e-06
  %v543 = vadd.f32 %v542, 0.00028619796
  %v544 = vmul.f32 %v541, %v543
  %v545 = vadd.f32 %v544, 0.0036580483
  %v546 = vmul.f32 %v541, %v545
  %v547 = vadd.f32 %v546, 0.05243302
  %v548 = vmul.f32 %v541, %v547
  %v549 = vadd.f32 %v548, 0.18741608
  %v550 = vmul.f32 %v541, %v549
  %v551 = vadd.f32 %v550, 1.1283791
  %v552 = vmul.f32 %v212, %v551
  %v553 = vmul.f32 %v541, 3.8918573e-05
  %v554 = vadd.f32 %v553, 0.001143296
  %v555 = vmul.f32 %v541, %v554
  %v556 = vadd.f32 %v555, 0.014752088
  %v557 = vmul.f32 %v541, %v556
  %v558 = vadd.f32 %v557, 0.112945676
  %v559 = vmul.f32 %v541, %v558
  %v560 = vadd.f32 %v559, 0.4994258
  %v561 = vmul.f32 %v541, %v560
  %v562 = vadd.f32 %v561, 1.0
  %v563 = vrcp.pop %v562
  %v564 = vmul.f32 %v562, %v563
  %v565 = vsub.f32 1.0, %v564
  %v566 = vmul.f32 %v563, %v565
  %v567 = vadd.f32 %v563, %v566
  %vm568 = vweird.f32 %v562
  %vm569 = vweird.f32 %v563
  %vm570 = vmor %vm568, %vm569
  %v571 = vsel %vm570, %v563, %v567
  %v572 = vand.u32 2147483647, %v562
  %vm573 = vcmp.eq.f32.partialorder %v572, 8.507059e+37
  %v574 = vand.u32 %v562, 2147483648
  %v575 = vor.u32 1.1754944e-38, %v574
  %v576 = vsel %vm573, %v575, %v571
  %v577 = vmul.f32 %v552, %v576
  %v578 = vmin.f32 %v577, 1.0
  %v579 = vmax.f32 %v578, -1.0
  %v580 = vmul.f32 %v213, %v213
  %v581 = vmin.f32 16.0, %v580
  %v582 = vmul.f32 %v581, 2.1237322e-06
  %v583 = vadd.f32 %v582, 0.00028619796
  %v584 = vmul.f32 %v581, %v583
  %v585 = vadd.f32 %v584, 0.0036580483
  %v586 = vmul.f32 %v581, %v585
  %v587 = vadd.f32 %v586, 0.05243302
  %v588 = vmul.f32 %v581, %v587
  %v589 = vadd.f32 %v588, 0.18741608
  %v590 = vmul.f32 %v581, %v589
  %v591 = vadd.f32 %v590, 1.1283791
  %v592 = vmul.f32 %v213, %v591
  %v593 = vmul.f32 %v581, 3.8918573e-05
  %v594 = vadd.f32 %v593, 0.001143296
  %v595 = vmul.f32 %v581, %v594
  %v596 = vadd.f32 %v595, 0.014752088
  %v597 = vmul.f32 %v581, %v596
  %v598 = vadd.f32 %v597, 0.112945676
  %v599 = vmul.f32 %v581, %v598
  %v600 = vadd.f32 %v599, 0.4994258
  %v601 = vmul.f32 %v581, %v600
  %v602 = vadd.f32 %v601, 1.0
  %v603 = vrcp.pop %v602
  %v604 = vmul.f32 %v602, %v603
  %v605 = vsub.f32 1.0, %v604
  %v606 = vmul.f32 %v603, %v605
  %v607 = vadd.f32 %v603, %v606
  %vm608 = vweird.f32 %v602
  %vm609 = vweird.f32 %v603
  %vm610 = vmor %vm608, %vm609
  %v611 = vsel %vm610, %v603, %v607
  %v612 = vand.u32 2147483647, %v602
  %vm613 = vcmp.eq.f32.partialorder %v612, 8.507059e+37
  %v614 = vand.u32 %v602, 2147483648
  %v615 = vor.u32 1.1754944e-38, %v614
  %v616 = vsel %vm613, %v615, %v611
  %v617 = vmul.f32 %v592, %v616
  %v618 = vmin.f32 %v617, 1.0
  %v619 = vmax.f32 %v618, -1.0
  %v620 = vmul.f32 %v214, %v214
  %v621 = vmin.f32 16.0, %v620
  %v622 = vmul.f32 %v621, 2.1237322e-06
  %v623 = vadd.f32 %v622, 0.00028619796
  %v624 = vmul.f32 %v621, %v623
  %v625 = vadd.f32 %v624, 0.0036580483
  %v626 = vmul.f32 %v621, %v625
  %v627 = vadd.f32 %v626, 0.05243302
  %v628 = vmul.f32 %v621, %v627
  %v629 = vadd.f32 %v628, 0.18741608
  %v630 = vmul.f32 %v621, %v629
  %v631 = vadd.f32 %v630, 1.1283791
  %v632 = vmul.f32 %v214, %v631
  %v633 = vmul.f32 %v621, 3.8918573e-05
  %v634 = vadd.f32 %v633, 0.001143296
  %v635 = vmul.f32 %v621, %v634
  %v636 = vadd.f32 %v635, 0.014752088
  %v637 = vmul.f32 %v621, %v636
  %v638 = vadd.f32 %v637, 0.112945676
  %v639 = vmul.f32 %v621, %v638
  %v640 = vadd.f32 %v639, 0.4994258
  %v641 = vmul.f32 %v621, %v640
  %v642 = vadd.f32 %v641, 1.0
  %v643 = vrcp.pop %v642
  %v644 = vmul.f32 %v642, %v643
  %v645 = vsub.f32 1.0, %v644
  %v646 = vmul.f32 %v643, %v645
  %v647 = vadd.f32 %v643, %v646
  %vm648 = vweird.f32 %v642
  %vm649 = vweird.f32 %v643
  %vm650 = vmor %vm648, %vm649
  %v651 = vsel %vm650, %v643, %v647
  %v652 = vand.u32 2147483647, %v642
  %vm653 = vcmp.eq.f32.partialorder %v652, 8.507059e+37
  %v654 = vand.u32 %v642, 2147483648
  %v655 = vor.u32 1.1754944e-38, %v654
  %v656 = vsel %vm653, %v655, %v651
  %v657 = vmul.f32 %v632, %v656
  %v658 = vmin.f32 %v657, 1.0
  %v659 = vmax.f32 %v658, -1.0
  %v660 = vmul.f32 %v215, %v215
  %v661 = vmin.f32 16.0, %v660
  %v662 = vmul.f32 %v661, 2.1237322e-06
  %v663 = vadd.f32 %v662, 0.00028619796
  %v664 = vmul.f32 %v661, %v663
  %v665 = vadd.f32 %v664, 0.0036580483
  %v666 = vmul.f32 %v661, %v665
  %v667 = vadd.f32 %v666, 0.05243302
  %v668 = vmul.f32 %v661, %v667
  %v669 = vadd.f32 %v668, 0.18741608
  %v670 = vmul.f32 %v661, %v669
  %v671 = vadd.f32 %v670, 1.1283791
  %v672 = vmul.f32 %v215, %v671
  %v673 = vmul.f32 %v661, 3.8918573e-05
  %v674 = vadd.f32 %v673, 0.001143296
  %v675 = vmul.f32 %v661, %v674
  %v676 = vadd.f32 %v675, 0.014752088
  %v677 = vmul.f32 %v661, %v676
  %v678 = vadd.f32 %v677, 0.112945676
  %v679 = vmul.f32 %v661, %v678
  %v680 = vadd.f32 %v679, 0.4994258
  %v681 = vmul.f32 %v661, %v680
  %v682 = vadd.f32 %v681, 1.0
  %v683 = vrcp.pop %v682
  %v684 = vmul.f32 %v682, %v683
  %v685 = vsub.f32 1.0, %v684
  %v686 = vmul.f32 %v683, %v685
  %v687 = vadd.f32 %v683, %v686
  %vm688 = vweird.f32 %v682
  %vm689 = vweird.f32 %v683
  %vm690 = vmor %vm688, %vm689
  %v691 = vsel %vm690, %v683, %v687
  %v692 = vand.u32 2147483647, %v682
  %vm693 = vcmp.eq.f32.partialorder %v692, 8.507059e+37
  %v694 = vand.u32 %v682, 2147483648
  %v695 = vor.u32 1.1754944e-38, %v694
  %v696 = vsel %vm693, %v695, %v691
  %v697 = vmul.f32 %v672, %v696
  %v698 = vmin.f32 %v697, 1.0
  %v699 = vmax.f32 %v698, -1.0
  %v700 = vmul.f32 %v216, %v216
  %v701 = vmin.f32 16.0, %v700
  %v702 = vmul.f32 %v701, 2.1237322e-06
  %v703 = vadd.f32 %v702, 0.00028619796
  %v704 = vmul.f32 %v701, %v703
  %v705 = vadd.f32 %v704, 0.0036580483
  %v706 = vmul.f32 %v701, %v705
  %v707 = vadd.f32 %v706, 0.05243302
  %v708 = vmul.f32 %v701, %v707
  %v709 = vadd.f32 %v708, 0.18741608
  %v710 = vmul.f32 %v701, %v709
  %v711 = vadd.f32 %v710, 1.1283791
  %v712 = vmul.f32 %v216, %v711
  %v713 = vmul.f32 %v701, 3.8918573e-05
  %v714 = vadd.f32 %v713, 0.001143296
  %v715 = vmul.f32 %v701, %v714
  %v716 = vadd.f32 %v715, 0.014752088
  %v717 = vmul.f32 %v701, %v716
  %v718 = vadd.f32 %v717, 0.112945676
  %v719 = vmul.f32 %v701, %v718
  %v720 = vadd.f32 %v719, 0.4994258
  %v721 = vmul.f32 %v701, %v720
  %v722 = vadd.f32 %v721, 1.0
  %v723 = vrcp.pop %v722
  %v724 = vmul.f32 %v722, %v723
  %v725 = vsub.f32 1.0, %v724
  %v726 = vmul.f32 %v723, %v725
  %v727 = vadd.f32 %v723, %v726
  %vm728 = vweird.f32 %v722
  %vm729 = vweird.f32 %v723
  %vm730 = vmor %vm728, %vm729
  %v731 = vsel %vm730, %v723, %v727
  %v732 = vand.u32 2147483647, %v722
  %vm733 = vcmp.eq.f32.partialorder %v732, 8.507059e+37
  %v734 = vand.u32 %v722, 2147483648
  %v735 = vor.u32 1.1754944e-38, %v734
  %v736 = vsel %vm733, %v735, %v731
  %v737 = vmul.f32 %v712, %v736
  %v738 = vmin.f32 %v737, 1.0
  %v739 = vmax.f32 %v738, -1.0
  %v740 = vmul.f32 %v217, %v217
  %v741 = vmin.f32 16.0, %v740
  %v742 = vmul.f32 %v741, 2.1237322e-06
  %v743 = vadd.f32 %v742, 0.00028619796
  %v744 = vmul.f32 %v741, %v743
  %v745 = vadd.f32 %v744, 0.0036580483
  %v746 = vmul.f32 %v741, %v745
  %v747 = vadd.f32 %v746, 0.05243302
  %v748 = vmul.f32 %v741, %v747
  %v749 = vadd.f32 %v748, 0.18741608
  %v750 = vmul.f32 %v741, %v749
  %v751 = vadd.f32 %v750, 1.1283791
  %v752 = vmul.f32 %v217, %v751
  %v753 = vmul.f32 %v741, 3.8918573e-05
  %v754 = vadd.f32 %v753, 0.001143296
  %v755 = vmul.f32 %v741, %v754
  %v756 = vadd.f32 %v755, 0.014752088
  %v757 = vmul.f32 %v741, %v756
  %v758 = vadd.f32 %v757, 0.112945676
  %v759 = vmul.f32 %v741, %v758
  %v760 = vadd.f32 %v759, 0.4994258
  %v761 = vmul.f32 %v741, %v760
  %v762 = vadd.f32 %v761, 1.0
  %v763 = vrcp.pop %v762
  %v764 = vmul.f32 %v762, %v763
  %v765 = vsub.f32 1.0, %v764
  %v766 = vmul.f32 %v763, %v765
  %v767 = vadd.f32 %v763, %v766
  %vm768 = vweird.f32 %v762
  %vm769 = vweird.f32 %v763
  %vm770 = vmor %vm768, %vm769
  %v771 = vsel %vm770, %v763, %v767
  %v772 = vand.u32 2147483647, %v762
  %vm773 = vcmp.eq.f32.partialorder %v772, 8.507059e+37
  %v774 = vand.u32 %v762, 2147483648
  %v775 = vor.u32 1.1754944e-38, %v774
  %v776 = vsel %vm773, %v775, %v771
  %v777 = vmul.f32 %v752, %v776
  %v778 = vmin.f32 %v777, 1.0
  %v779 = vmax.f32 %v778, -1.0
  %v780 = vmul.f32 %v218, %v218
  %v781 = vmin.f32 16.0, %v780
  %v782 = vmul.f32 %v781, 2.1237322e-06
  %v783 = vadd.f32 %v782, 0.00028619796
  %v784 = vmul.f32 %v781, %v783
  %v785 = vadd.f32 %v784, 0.0036580483
  %v786 = vmul.f32 %v781, %v785
  %v787 = vadd.f32 %v786, 0.05243302
  %v788 = vmul.f32 %v781, %v787
  %v789 = vadd.f32 %v788, 0.18741608
  %v790 = vmul.f32 %v781, %v789
  %v791 = vadd.f32 %v790, 1.1283791
  %v792 = vmul.f32 %v218, %v791
  %v793 = vmul.f32 %v781, 3.8918573e-05
  %v794 = vadd.f32 %v793, 0.001143296
  %v795 = vmul.f32 %v781, %v794
  %v796 = vadd.f32 %v795, 0.014752088
  %v797 = vmul.f32 %v781, %v796
  %v798 = vadd.f32 %v797, 0.112945676
  %v799 = vmul.f32 %v781, %v798
  %v800 = vadd.f32 %v799, 0.4994258
  %v801 = vmul.f32 %v781, %v800
  %v802 = vadd.f32 %v801, 1.0
  %v803 = vrcp.pop %v802
  %v804 = vmul.f32 %v802, %v803
  %v805 = vsub.f32 1.0, %v804
  %v806 = vmul.f32 %v803, %v805
  %v807 = vadd.f32 %v803, %v806
  %vm808 = vweird.f32 %v802
  %vm809 = vweird.f32 %v803
  %vm810 = vmor %vm808, %vm809
  %v811 = vsel %vm810, %v803, %v807
  %v812 = vand.u32 2147483647, %v802
  %vm813 = vcmp.eq.f32.partialorder %v812, 8.507059e+37
  %v814 = vand.u32 %v802, 2147483648
  %v815 = vor.u32 1.1754944e-38, %v814
  %v816 = vsel %vm813, %v815, %v811
  %v817 = vmul.f32 %v792, %v816
  %v818 = vmin.f32 %v817, 1.0
  %v819 = vmax.f32 %v818, -1.0
  %v820 = vmul.f32 %v219, %v219
  %v821 = vmin.f32 16.0, %v820
  %v822 = vmul.f32 %v821, 2.1237322e-06
  %v823 = vadd.f32 %v822, 0.00028619796
  %v824 = vmul.f32 %v821, %v823
  %v825 = vadd.f32 %v824, 0.0036580483
  %v826 = vmul.f32 %v821, %v825
  %v827 = vadd.f32 %v826, 0.05243302
  %v828 = vmul.f32 %v821, %v827
  %v829 = vadd.f32 %v828, 0.18741608
  %v830 = vmul.f32 %v821, %v829
  %v831 = vadd.f32 %v830, 1.1283791
  %v832 = vmul.f32 %v219, %v831
  %v833 = vmul.f32 %v821, 3.8918573e-05
  %v834 = vadd.f32 %v833, 0.001143296
  %v835 = vmul.f32 %v821, %v834
  %v836 = vadd.f32 %v835, 0.014752088
  %v837 = vmul.f32 %v821, %v836
  %v838 = vadd.f32 %v837, 0.112945676
  %v839 = vmul.f32 %v821, %v838
  %v840 = vadd.f32 %v839, 0.4994258
  %v841 = vmul.f32 %v821, %v840
  %v842 = vadd.f32 %v841, 1.0
  %v843 = vrcp.pop %v842
  %v844 = vmul.f32 %v842, %v843
  %v845 = vsub.f32 1.0, %v844
  %v846 = vmul.f32 %v843, %v845
  %v847 = vadd.f32 %v843, %v846
  %vm848 = vweird.f32 %v842
  %vm849 = vweird.f32 %v843
  %vm850 = vmor %vm848, %vm849
  %v851 = vsel %vm850, %v843, %v847
  %v852 = vand.u32 2147483647, %v842
  %vm853 = vcmp.eq.f32.partialorder %v852, 8.507059e+37
  %v854 = vand.u32 %v842, 2147483648
  %v855 = vor.u32 1.1754944e-38, %v854
  %v856 = vsel %vm853, %v855, %v851
  %v857 = vmul.f32 %v832, %v856
  %v858 = vmin.f32 %v857, 1.0
  %v859 = vmax.f32 %v858, -1.0
  %v860 = vadd.f32 %v259, 1.0
  %v861 = vadd.f32 %v299, 1.0
  %v862 = vadd.f32 %v339, 1.0
  %v863 = vadd.f32 %v379, 1.0
  %v864 = vadd.f32 %v419, 1.0
  %v865 = vadd.f32 %v459, 1.0
  %v866 = vadd.f32 %v499, 1.0
  %v867 = vadd.f32 %v539, 1.0
  %v868 = vadd.f32 %v579, 1.0
  %v869 = vadd.f32 %v619, 1.0
  %v870 = vadd.f32 %v659, 1.0
  %v871 = vadd.f32 %v699, 1.0
  %v872 = vadd.f32 %v739, 1.0
  %v873 = vadd.f32 %v779, 1.0
  %v874 = vadd.f32 %v819, 1.0
  %v875 = vadd.f32 %v859, 1.0
  %v876 = vmul.f32 %v188, %v860
  %v877 = vmul.f32 %v189, %v861
  %v878 = vmul.f32 %v190, %v862
  %v879 = vmul.f32 %v191, %v863
  %v880 = vmul.f32 %v192, %v864
  %v881 = vmul.f32 %v193, %v865
  %v882 = vmul.f32 %v194, %v866
  %v883 = vmul.f32 %v195, %v867
  %v884 = vmul.f32 %v196, %v868
  %v885 = vmul.f32 %v197, %v869
  %v886 = vmul.f32 %v198, %v870
  %v887 = vmul.f32 %v199, %v871
  %v888 = vmul.f32 %v200, %v872
  %v889 = vmul.f32 %v201, %v873
  %v890 = vmul.f32 %v202, %v874
  %v891 = vmul.f32 %v203, %v875
  %v892 = vpack.c.bf16 %v876, %v876
  %v893 = vpack.c.bf16 %v877, %v877
  %v894 = vpack.c.bf16 %v878, %v878
  %v895 = vpack.c.bf16 %v879, %v879
  %v896 = vpack.c.bf16 %v880, %v880
  %v897 = vpack.c.bf16 %v881, %v881
  %v898 = vpack.c.bf16 %v882, %v882
  %v899 = vpack.c.bf16 %v883, %v883
  %v900 = vpack.c.bf16 %v884, %v884
  %v901 = vpack.c.bf16 %v885, %v885
  %v902 = vpack.c.bf16 %v886, %v886
  %v903 = vpack.c.bf16 %v887, %v887
  %v904 = vpack.c.bf16 %v888, %v888
  %v905 = vpack.c.bf16 %v889, %v889
  %v906 = vpack.c.bf16 %v890, %v890
  %v907 = vpack.c.bf16 %v891, %v891
  %908 = vst [vmem:[%s2] sm:$0xf] %v892
  %909 = vst [vmem:[%s2 + $0x4] sm:$0xf] %v893
  %910 = vst [vmem:[%s2 + $0x8] sm:$0xf] %v894
  %911 = vst [vmem:[%s2 + $0xc] sm:$0xf] %v895
  %912 = vst [vmem:[%s2 + $0x10] sm:$0xf] %v896
  %913 = vst [vmem:[%s2 + $0x14] sm:$0xf] %v897
  %914 = vst [vmem:[%s2 + $0x18] sm:$0xf] %v898
  %915 = vst [vmem:[%s2 + $0x1c] sm:$0xf] %v899
  %916 = vst [vmem:[%s2 + $0x20] sm:$0xf] %v900
  %917 = vst [vmem:[%s2 + $0x24] sm:$0xf] %v901
  %918 = vst [vmem:[%s2 + $0x28] sm:$0xf] %v902
  %919 = vst [vmem:[%s2 + $0x2c] sm:$0xf] %v903
  %920 = vst [vmem:[%s2 + $0x30] sm:$0xf] %v904
  %921 = vst [vmem:[%s2 + $0x34] sm:$0xf] %v905
  %922 = vst [vmem:[%s2 + $0x38] sm:$0xf] %v906
  %923 = vst [vmem:[%s2 + $0x3c] sm:$0xf] %v907
  // Predicated region
  $region10: #{gcn_forward.5} parent=0 // pred_check
    _
  $region11: #{gcn_forward.5} parent=0 // pred_check_branch
    %925 = sbr.rel (0) target = $region13
  $region12: #{gcn_forward.5} parent=0 // pred_region
    _
  $region13: #{gcn_forward.5} parent=0 // pred_fallthru
    _
  // Predicated region
  $region14: #{gcn_forward.5} parent=0 // pred_check
    _
  $region15: #{gcn_forward.5} parent=0 // pred_check_branch
    %927 = sbr.rel (0) target = $region17
  $region16: #{gcn_forward.5} parent=0 // pred_region
    _
  $region17: #{gcn_forward.5} parent=0 // pred_fallthru
    _

// kernel: gcn_forward.6
$region0: #{gcn_forward.6}
  #allocation0 [shape = 'u32[]', space=smem, size = 0x4, offset = 0x4, fixed_abs, tag = 'smem constant byte address 0x4 - core index']
  #allocation1 [shape = 'u32[72,128]{1,0:T(1,128)}', space=vmem, size = 0x9000, scoped, tag = 'internal scratch']
  #allocation2 [shape = 'f32[128,128]{1,0:T(8,128)}', space=vmem, size = 0x10000, scoped, tag = 'scratch operand']
  %s0 = inlined_call_operand.vmem [shape: bf16[128,128], index: 0, kind: input, shape index: {}]
  %s1 = inlined_call_operand.vmem [shape: bf16[128,128], index: 1, kind: input, shape index: {}]
  %s2 = inlined_call_operand.vmem [shape: bf16[128,128], index: 2, kind: input, shape index: {}]
  %s3 = inlined_call_operand.vmem [shape: bf16[128,128], index: 3, kind: input, shape index: {}]
  %s4 = inlined_call_operand.vmem [shape: bf16[128,128], index: 4, kind: output, shape index: {}]
  %s5 = sld [smem:[#allocation0]]
  $region34: #{gcn_forward.6} parent=0
    _
  %s7 = ssub.s32 1, %s5
  %s8 = scalar_select 0, %s7, %s5
  // Predicated region
  $region2: #{gcn_forward.6} parent=0 // pred_check
    _
  $region3: #{gcn_forward.6} parent=0 // pred_check_branch
    %10 = sbr.rel (0) target = $region5
  $region4: #{gcn_forward.6} parent=0 // pred_region
    _
  $region5: #{gcn_forward.6} parent=0 // pred_fallthru
    _
  // Predicated region
  $region6: #{gcn_forward.6} parent=0 // pred_check
    _
  $region7: #{gcn_forward.6} parent=0 // pred_check_branch
    %12 = sbr.rel (0) target = $region9
  $region8: #{gcn_forward.6} parent=0 // pred_region
    _
  $region9: #{gcn_forward.6} parent=0 // pred_fallthru
    _
  // Predicated region
  $region10: #{gcn_forward.6} parent=0 // pred_check
    _
  $region11: #{gcn_forward.6} parent=0 // pred_check_branch
    %14 = sbr.rel (0) target = $region13
  $region12: #{gcn_forward.6} parent=0 // pred_region
    _
  $region13: #{gcn_forward.6} parent=0 // pred_fallthru
    _
  // Predicated region
  $region14: #{gcn_forward.6} parent=0 // pred_check
    _
  $region15: #{gcn_forward.6} parent=0 // pred_check_branch
    %16 = sbr.rel (0) target = $region17
  $region16: #{gcn_forward.6} parent=0 // pred_region
    _
  $region17: #{gcn_forward.6} parent=0 // pred_fallthru
    _
  %p17 = scmp.eq.s32.totalorder 0, 0
  // Predicated region
  $region18: #{gcn_forward.6} parent=0 // pred_check
    %p18 = pneg %p17
  $region19: #{gcn_forward.6} parent=0 // pred_check_branch
    %20 = sbr.rel (%p18) target = $region21
  $region20: #{gcn_forward.6} parent=0 // pred_region
    %v21 = vld [vmem:[%s2] sm:$0xf]
    %v22 = vld [vmem:[%s2 + $0x4] sm:$0xf]
    %v23 = vld [vmem:[%s2 + $0x8] sm:$0xf]
    %v24 = vld [vmem:[%s2 + $0xc] sm:$0xf]
    %v25 = vld [vmem:[%s2 + $0x10] sm:$0xf]
    %v26 = vld [vmem:[%s2 + $0x14] sm:$0xf]
    %v27 = vld [vmem:[%s2 + $0x18] sm:$0xf]
    %v28 = vld [vmem:[%s2 + $0x1c] sm:$0xf]
    %v29 = vld [vmem:[%s2 + $0x20] sm:$0xf]
    %v30 = vld [vmem:[%s2 + $0x24] sm:$0xf]
    %v31 = vld [vmem:[%s2 + $0x28] sm:$0xf]
    %v32 = vld [vmem:[%s2 + $0x2c] sm:$0xf]
    %v33 = vld [vmem:[%s2 + $0x30] sm:$0xf]
    %v34 = vld [vmem:[%s2 + $0x34] sm:$0xf]
    %v35 = vld [vmem:[%s2 + $0x38] sm:$0xf]
    %v36 = vld [vmem:[%s2 + $0x3c] sm:$0xf]
    %v37 = vld [vmem:[%s3] sm:$0xf]
    %v38 = vld [vmem:[%s3 + $0x4] sm:$0xf]
    %v39 = vld [vmem:[%s3 + $0x8] sm:$0xf]
    %v40 = vld [vmem:[%s3 + $0xc] sm:$0xf]
    %v41 = vld [vmem:[%s3 + $0x10] sm:$0xf]
    %v42 = vld [vmem:[%s3 + $0x14] sm:$0xf]
    %v43 = vld [vmem:[%s3 + $0x18] sm:$0xf]
    %v44 = vld [vmem:[%s3 + $0x1c] sm:$0xf]
    %v45 = vld [vmem:[%s3 + $0x20] sm:$0xf]
    %v46 = vld [vmem:[%s3 + $0x24] sm:$0xf]
    %v47 = vld [vmem:[%s3 + $0x28] sm:$0xf]
    %v48 = vld [vmem:[%s3 + $0x2c] sm:$0xf]
    %v49 = vld [vmem:[%s3 + $0x30] sm:$0xf]
    %v50 = vld [vmem:[%s3 + $0x34] sm:$0xf]
    %v51 = vld [vmem:[%s3 + $0x38] sm:$0xf]
    %v52 = vld [vmem:[%s3 + $0x3c] sm:$0xf]
    %v69 = vunpack.c.l.b16 %v21
    %v70 = vunpack.c.l.b16 %v22
    %v71 = vunpack.c.l.b16 %v23
    %v72 = vunpack.c.l.b16 %v24
    %v73 = vunpack.c.l.b16 %v25
    %v74 = vunpack.c.l.b16 %v26
    %v75 = vunpack.c.l.b16 %v27
    %v76 = vunpack.c.l.b16 %v28
    %v77 = vunpack.c.l.b16 %v29
    %v78 = vunpack.c.l.b16 %v30
    %v79 = vunpack.c.l.b16 %v31
    %v80 = vunpack.c.l.b16 %v32
    %v81 = vunpack.c.l.b16 %v33
    %v82 = vunpack.c.l.b16 %v34
    %v83 = vunpack.c.l.b16 %v35
    %v84 = vunpack.c.l.b16 %v36
    %v85 = vpack.c.b16 %v70, %v69
    %v86 = vpack.c.b16 %v72, %v71
    %v87 = vpack.c.b16 %v74, %v73
    %v88 = vpack.c.b16 %v76, %v75
    %v89 = vpack.c.b16 %v78, %v77
    %v90 = vpack.c.b16 %v80, %v79
    %v91 = vpack.c.b16 %v82, %v81
    %v92 = vpack.c.b16 %v84, %v83
    %v117 = vunpack.c.l.b16 %v37
    %v118 = vunpack.c.l.b16 %v38
    %v119 = vunpack.c.l.b16 %v39
    %v120 = vunpack.c.l.b16 %v40
    %v121 = vunpack.c.l.b16 %v41
    %v122 = vunpack.c.l.b16 %v42
    %v123 = vunpack.c.l.b16 %v43
    %v124 = vunpack.c.l.b16 %v44
    %v125 = vunpack.c.l.b16 %v45
    %v126 = vunpack.c.l.b16 %v46
    %v127 = vunpack.c.l.b16 %v47
    %v128 = vunpack.c.l.b16 %v48
    %v129 = vunpack.c.l.b16 %v49
    %v130 = vunpack.c.l.b16 %v50
    %v131 = vunpack.c.l.b16 %v51
    %v132 = vunpack.c.l.b16 %v52
    %v133 = vpack.c.b16 %v118, %v117
    %v134 = vpack.c.b16 %v120, %v119
    %v135 = vpack.c.b16 %v122, %v121
    %v136 = vpack.c.b16 %v124, %v123
    %v137 = vpack.c.b16 %v126, %v125
    %v138 = vpack.c.b16 %v128, %v127
    %v139 = vpack.c.b16 %v130, %v129
    %v140 = vpack.c.b16 %v132, %v131
    %149 = vmatpush.bf16.msra.mxu0 %v140
    %150 = vmatpush.bf16.msra.mxu0 %v139
    %151 = vmatpush.bf16.msra.mxu0 %v138
    %152 = vmatpush.bf16.msra.mxu0 %v137
    %153 = vmatpush.bf16.msra.mxu0 %v136
    %154 = vmatpush.bf16.msra.mxu0 %v135
    %155 = vmatpush.bf16.msra.mxu0 %v134
    %156 = vmatpush.bf16.msra.mxu0 %v133
    %157 = vmatmul.bf16.gmra.mxu0 %v85
    %v158 = vpop.f32.mrf.mxu0
    %v159 = vadd.f32 0.0, %v158
    %v160 = vpop.f32.mrf.mxu0
    %v161 = vadd.f32 0.0, %v160
    %162 = vmatmul.bf16.gmra.mxu0 %v86
    %v163 = vpop.f32.mrf.mxu0
    %v164 = vadd.f32 0.0, %v163
    %v165 = vpop.f32.mrf.mxu0
    %v166 = vadd.f32 0.0, %v165
    %167 = vmatmul.bf16.gmra.mxu0 %v87
    %v168 = vpop.f32.mrf.mxu0
    %v169 = vadd.f32 0.0, %v168
    %v170 = vpop.f32.mrf.mxu0
    %v171 = vadd.f32 0.0, %v170
    %172 = vmatmul.bf16.gmra.mxu0 %v88
    %v173 = vpop.f32.mrf.mxu0
    %v174 = vadd.f32 0.0, %v173
    %v175 = vpop.f32.mrf.mxu0
    %v176 = vadd.f32 0.0, %v175
    %177 = vmatmul.bf16.gmra.mxu0 %v89
    %v178 = vpop.f32.mrf.mxu0
    %v179 = vadd.f32 0.0, %v178
    %v180 = vpop.f32.mrf.mxu0
    %v181 = vadd.f32 0.0, %v180
    %182 = vmatmul.bf16.gmra.mxu0 %v90
    %v183 = vpop.f32.mrf.mxu0
    %v184 = vadd.f32 0.0, %v183
    %v185 = vpop.f32.mrf.mxu0
    %v186 = vadd.f32 0.0, %v185
    %187 = vmatmul.bf16.gmra.mxu0 %v91
    %v188 = vpop.f32.mrf.mxu0
    %v189 = vadd.f32 0.0, %v188
    %v190 = vpop.f32.mrf.mxu0
    %v191 = vadd.f32 0.0, %v190
    %192 = vmatmul.bf16.gmra.mxu0 %v92
    %v193 = vpop.f32.mrf.mxu0
    %v194 = vadd.f32 0.0, %v193
    %v195 = vpop.f32.mrf.mxu0
    %v196 = vadd.f32 0.0, %v195
    %197 = vdwg.mxu0
    %198 = vst [vmem:[#allocation2] sm:$0xff] %v159
    %199 = vst [vmem:[#allocation2 + $0x8] sm:$0xff] %v161
    %200 = vst [vmem:[#allocation2 + $0x10] sm:$0xff] %v164
    %201 = vst [vmem:[#allocation2 + $0x18] sm:$0xff] %v166
    %202 = vst [vmem:[#allocation2 + $0x20] sm:$0xff] %v169
    %203 = vst [vmem:[#allocation2 + $0x28] sm:$0xff] %v171
    %204 = vst [vmem:[#allocation2 + $0x30] sm:$0xff] %v174
    %205 = vst [vmem:[#allocation2 + $0x38] sm:$0xff] %v176
    %206 = vst [vmem:[#allocation2 + $0x40] sm:$0xff] %v179
    %207 = vst [vmem:[#allocation2 + $0x48] sm:$0xff] %v181
    %208 = vst [vmem:[#allocation2 + $0x50] sm:$0xff] %v184
    %209 = vst [vmem:[#allocation2 + $0x58] sm:$0xff] %v186
    %210 = vst [vmem:[#allocation2 + $0x60] sm:$0xff] %v189
    %211 = vst [vmem:[#allocation2 + $0x68] sm:$0xff] %v191
    %212 = vst [vmem:[#allocation2 + $0x70] sm:$0xff] %v194
    %213 = vst [vmem:[#allocation2 + $0x78] sm:$0xff] %v196
  $region21: #{gcn_forward.6} parent=0 // pred_fallthru
    _
  %v214 = vld [vmem:[#allocation2] sm:$0xff]
  %v215 = vld [vmem:[#allocation2 + $0x8] sm:$0xff]
  %v216 = vld [vmem:[#allocation2 + $0x10] sm:$0xff]
  %v217 = vld [vmem:[#allocation2 + $0x18] sm:$0xff]
  %v218 = vld [vmem:[#allocation2 + $0x20] sm:$0xff]
  %v219 = vld [vmem:[#allocation2 + $0x28] sm:$0xff]
  %v220 = vld [vmem:[#allocation2 + $0x30] sm:$0xff]
  %v221 = vld [vmem:[#allocation2 + $0x38] sm:$0xff]
  %v222 = vld [vmem:[#allocation2 + $0x40] sm:$0xff]
  %v223 = vld [vmem:[#allocation2 + $0x48] sm:$0xff]
  %v224 = vld [vmem:[#allocation2 + $0x50] sm:$0xff]
  %v225 = vld [vmem:[#allocation2 + $0x58] sm:$0xff]
  %v226 = vld [vmem:[#allocation2 + $0x60] sm:$0xff]
  %v227 = vld [vmem:[#allocation2 + $0x68] sm:$0xff]
  %v228 = vld [vmem:[#allocation2 + $0x70] sm:$0xff]
  %v229 = vld [vmem:[#allocation2 + $0x78] sm:$0xff]
  %v230 = vld [vmem:[%s0] sm:$0xf]
  %v231 = vld [vmem:[%s0 + $0x4] sm:$0xf]
  %v232 = vld [vmem:[%s0 + $0x8] sm:$0xf]
  %v233 = vld [vmem:[%s0 + $0xc] sm:$0xf]
  %v234 = vld [vmem:[%s0 + $0x10] sm:$0xf]
  %v235 = vld [vmem:[%s0 + $0x14] sm:$0xf]
  %v236 = vld [vmem:[%s0 + $0x18] sm:$0xf]
  %v237 = vld [vmem:[%s0 + $0x1c] sm:$0xf]
  %v238 = vld [vmem:[%s0 + $0x20] sm:$0xf]
  %v239 = vld [vmem:[%s0 + $0x24] sm:$0xf]
  %v240 = vld [vmem:[%s0 + $0x28] sm:$0xf]
  %v241 = vld [vmem:[%s0 + $0x2c] sm:$0xf]
  %v242 = vld [vmem:[%s0 + $0x30] sm:$0xf]
  %v243 = vld [vmem:[%s0 + $0x34] sm:$0xf]
  %v244 = vld [vmem:[%s0 + $0x38] sm:$0xf]
  %v245 = vld [vmem:[%s0 + $0x3c] sm:$0xf]
  %v246 = vld [vmem:[%s1] sm:$0xf]
  %v247 = vld [vmem:[%s1 + $0x4] sm:$0xf]
  %v248 = vld [vmem:[%s1 + $0x8] sm:$0xf]
  %v249 = vld [vmem:[%s1 + $0xc] sm:$0xf]
  %v250 = vld [vmem:[%s1 + $0x10] sm:$0xf]
  %v251 = vld [vmem:[%s1 + $0x14] sm:$0xf]
  %v252 = vld [vmem:[%s1 + $0x18] sm:$0xf]
  %v253 = vld [vmem:[%s1 + $0x1c] sm:$0xf]
  %v254 = vld [vmem:[%s1 + $0x20] sm:$0xf]
  %v255 = vld [vmem:[%s1 + $0x24] sm:$0xf]
  %v256 = vld [vmem:[%s1 + $0x28] sm:$0xf]
  %v257 = vld [vmem:[%s1 + $0x2c] sm:$0xf]
  %v258 = vld [vmem:[%s1 + $0x30] sm:$0xf]
  %v259 = vld [vmem:[%s1 + $0x34] sm:$0xf]
  %v260 = vld [vmem:[%s1 + $0x38] sm:$0xf]
  %v261 = vld [vmem:[%s1 + $0x3c] sm:$0xf]
  %v278 = vunpack.c.l.b16 %v230
  %v279 = vunpack.c.l.b16 %v231
  %v280 = vunpack.c.l.b16 %v232
  %v281 = vunpack.c.l.b16 %v233
  %v282 = vunpack.c.l.b16 %v234
  %v283 = vunpack.c.l.b16 %v235
  %v284 = vunpack.c.l.b16 %v236
  %v285 = vunpack.c.l.b16 %v237
  %v286 = vunpack.c.l.b16 %v238
  %v287 = vunpack.c.l.b16 %v239
  %v288 = vunpack.c.l.b16 %v240
  %v289 = vunpack.c.l.b16 %v241
  %v290 = vunpack.c.l.b16 %v242
  %v291 = vunpack.c.l.b16 %v243
  %v292 = vunpack.c.l.b16 %v244
  %v293 = vunpack.c.l.b16 %v245
  %v294 = vpack.c.b16 %v279, %v278
  %v295 = vpack.c.b16 %v281, %v280
  %v296 = vpack.c.b16 %v283, %v282
  %v297 = vpack.c.b16 %v285, %v284
  %v298 = vpack.c.b16 %v287, %v286
  %v299 = vpack.c.b16 %v289, %v288
  %v300 = vpack.c.b16 %v291, %v290
  %v301 = vpack.c.b16 %v293, %v292
  %310 = vxpose.xlu0.c.b16.start [1/8] %v294, 128
  %311 = vxpose.xlu0.c.b16.cont [2/8] %v295, 128
  %312 = vxpose.xlu0.c.b16.cont [3/8] %v296, 128
  %313 = vxpose.xlu0.c.b16.cont [4/8] %v297, 128
  %314 = vxpose.xlu0.c.b16.cont [5/8] %v298, 128
  %315 = vxpose.xlu0.c.b16.cont [6/8] %v299, 128
  %316 = vxpose.xlu0.c.b16.cont [7/8] %v300, 128
  %317 = vxpose.xlu0.c.b16.end [8/8] %v301, 128
  %v318 = vpop.trf.xlu0
  %v319 = vpop.trf.xlu0
  %v320 = vpop.trf.xlu0
  %v321 = vpop.trf.xlu0
  %v322 = vpop.trf.xlu0
  %v323 = vpop.trf.xlu0
  %v324 = vpop.trf.xlu0
  %v325 = vpop.trf.xlu0
  %v342 = vunpack.c.l.b16 %v246
  %v343 = vunpack.c.l.b16 %v247
  %v344 = vunpack.c.l.b16 %v248
  %v345 = vunpack.c.l.b16 %v249
  %v346 = vunpack.c.l.b16 %v250
  %v347 = vunpack.c.l.b16 %v251
  %v348 = vunpack.c.l.b16 %v252
  %v349 = vunpack.c.l.b16 %v253
  %v350 = vunpack.c.l.b16 %v254
  %v351 = vunpack.c.l.b16 %v255
  %v352 = vunpack.c.l.b16 %v256
  %v353 = vunpack.c.l.b16 %v257
  %v354 = vunpack.c.l.b16 %v258
  %v355 = vunpack.c.l.b16 %v259
  %v356 = vunpack.c.l.b16 %v260
  %v357 = vunpack.c.l.b16 %v261
  %v358 = vpack.c.b16 %v343, %v342
  %v359 = vpack.c.b16 %v345, %v344
  %v360 = vpack.c.b16 %v347, %v346
  %v361 = vpack.c.b16 %v349, %v348
  %v362 = vpack.c.b16 %v351, %v350
  %v363 = vpack.c.b16 %v353, %v352
  %v364 = vpack.c.b16 %v355, %v354
  %v365 = vpack.c.b16 %v357, %v356
  %374 = vmatpush.bf16.msra.mxu0 %v365
  %375 = vmatpush.bf16.msra.mxu0 %v364
  %376 = vmatpush.bf16.msra.mxu0 %v363
  %377 = vmatpush.bf16.msra.mxu0 %v362
  %378 = vmatpush.bf16.msra.mxu0 %v361
  %379 = vmatpush.bf16.msra.mxu0 %v360
  %380 = vmatpush.bf16.msra.mxu0 %v359
  %381 = vmatpush.bf16.msra.mxu0 %v358
  %382 = vmatmul.bf16.gmra.mxu0 %v318
  %v383 = vpop.f32.mrf.mxu0
  %v384 = vadd.f32 0.0, %v383
  %v385 = vpop.f32.mrf.mxu0
  %v386 = vadd.f32 0.0, %v385
  %387 = vmatmul.bf16.gmra.mxu0 %v319
  %v388 = vpop.f32.mrf.mxu0
  %v389 = vadd.f32 0.0, %v388
  %v390 = vpop.f32.mrf.mxu0
  %v391 = vadd.f32 0.0, %v390
  %392 = vmatmul.bf16.gmra.mxu0 %v320
  %v393 = vpop.f32.mrf.mxu0
  %v394 = vadd.f32 0.0, %v393
  %v395 = vpop.f32.mrf.mxu0
  %v396 = vadd.f32 0.0, %v395
  %397 = vmatmul.bf16.gmra.mxu0 %v321
  %v398 = vpop.f32.mrf.mxu0
  %v399 = vadd.f32 0.0, %v398
  %v400 = vpop.f32.mrf.mxu0
  %v401 = vadd.f32 0.0, %v400
  %402 = vmatmul.bf16.gmra.mxu0 %v322
  %v403 = vpop.f32.mrf.mxu0
  %v404 = vadd.f32 0.0, %v403
  %v405 = vpop.f32.mrf.mxu0
  %v406 = vadd.f32 0.0, %v405
  %407 = vmatmul.bf16.gmra.mxu0 %v323
  %v408 = vpop.f32.mrf.mxu0
  %v409 = vadd.f32 0.0, %v408
  %v410 = vpop.f32.mrf.mxu0
  %v411 = vadd.f32 0.0, %v410
  %412 = vmatmul.bf16.gmra.mxu0 %v324
  %v413 = vpop.f32.mrf.mxu0
  %v414 = vadd.f32 0.0, %v413
  %v415 = vpop.f32.mrf.mxu0
  %v416 = vadd.f32 0.0, %v415
  %417 = vmatmul.bf16.gmra.mxu0 %v325
  %v418 = vpop.f32.mrf.mxu0
  %v419 = vadd.f32 0.0, %v418
  %v420 = vpop.f32.mrf.mxu0
  %v421 = vadd.f32 0.0, %v420
  %422 = vdwg.mxu0
  %v423 = vadd.f32 %v214, %v384
  %v424 = vadd.f32 %v215, %v386
  %v425 = vadd.f32 %v216, %v389
  %v426 = vadd.f32 %v217, %v391
  %v427 = vadd.f32 %v218, %v394
  %v428 = vadd.f32 %v219, %v396
  %v429 = vadd.f32 %v220, %v399
  %v430 = vadd.f32 %v221, %v401
  %v431 = vadd.f32 %v222, %v404
  %v432 = vadd.f32 %v223, %v406
  %v433 = vadd.f32 %v224, %v409
  %v434 = vadd.f32 %v225, %v411
  %v435 = vadd.f32 %v226, %v414
  %v436 = vadd.f32 %v227, %v416
  %v437 = vadd.f32 %v228, %v419
  %v438 = vadd.f32 %v229, %v421
  %439 = vst [vmem:[#allocation2] sm:$0xff] %v423
  %440 = vst [vmem:[#allocation2 + $0x8] sm:$0xff] %v424
  %441 = vst [vmem:[#allocation2 + $0x10] sm:$0xff] %v425
  %442 = vst [vmem:[#allocation2 + $0x18] sm:$0xff] %v426
  %443 = vst [vmem:[#allocation2 + $0x20] sm:$0xff] %v427
  %444 = vst [vmem:[#allocation2 + $0x28] sm:$0xff] %v428
  %445 = vst [vmem:[#allocation2 + $0x30] sm:$0xff] %v429
  %446 = vst [vmem:[#allocation2 + $0x38] sm:$0xff] %v430
  %447 = vst [vmem:[#allocation2 + $0x40] sm:$0xff] %v431
  %448 = vst [vmem:[#allocation2 + $0x48] sm:$0xff] %v432
  %449 = vst [vmem:[#allocation2 + $0x50] sm:$0xff] %v433
  %450 = vst [vmem:[#allocation2 + $0x58] sm:$0xff] %v434
  %451 = vst [vmem:[#allocation2 + $0x60] sm:$0xff] %v435
  %452 = vst [vmem:[#allocation2 + $0x68] sm:$0xff] %v436
  %453 = vst [vmem:[#allocation2 + $0x70] sm:$0xff] %v437
  %454 = vst [vmem:[#allocation2 + $0x78] sm:$0xff] %v438
  // Predicated region
  $region22: #{gcn_forward.6} parent=0 // pred_check
    %p455 = pneg %p17
  $region23: #{gcn_forward.6} parent=0 // pred_check_branch
    %457 = sbr.rel (%p455) target = $region25
  $region24: #{gcn_forward.6} parent=0 // pred_region
    %v458 = vld [vmem:[#allocation2] sm:$0xff]
    %v459 = vld [vmem:[#allocation2 + $0x8] sm:$0xff]
    %v460 = vld [vmem:[#allocation2 + $0x10] sm:$0xff]
    %v461 = vld [vmem:[#allocation2 + $0x18] sm:$0xff]
    %v462 = vld [vmem:[#allocation2 + $0x20] sm:$0xff]
    %v463 = vld [vmem:[#allocation2 + $0x28] sm:$0xff]
    %v464 = vld [vmem:[#allocation2 + $0x30] sm:$0xff]
    %v465 = vld [vmem:[#allocation2 + $0x38] sm:$0xff]
    %v466 = vld [vmem:[#allocation2 + $0x40] sm:$0xff]
    %v467 = vld [vmem:[#allocation2 + $0x48] sm:$0xff]
    %v468 = vld [vmem:[#allocation2 + $0x50] sm:$0xff]
    %v469 = vld [vmem:[#allocation2 + $0x58] sm:$0xff]
    %v470 = vld [vmem:[#allocation2 + $0x60] sm:$0xff]
    %v471 = vld [vmem:[#allocation2 + $0x68] sm:$0xff]
    %v472 = vld [vmem:[#allocation2 + $0x70] sm:$0xff]
    %v473 = vld [vmem:[#allocation2 + $0x78] sm:$0xff]
    %v474 = vmul.f32 %v458, 0.5
    %v475 = vmul.f32 %v459, 0.5
    %v476 = vmul.f32 %v460, 0.5
    %v477 = vmul.f32 %v461, 0.5
    %v478 = vmul.f32 %v462, 0.5
    %v479 = vmul.f32 %v463, 0.5
    %v480 = vmul.f32 %v464, 0.5
    %v481 = vmul.f32 %v465, 0.5
    %v482 = vmul.f32 %v466, 0.5
    %v483 = vmul.f32 %v467, 0.5
    %v484 = vmul.f32 %v468, 0.5
    %v485 = vmul.f32 %v469, 0.5
    %v486 = vmul.f32 %v470, 0.5
    %v487 = vmul.f32 %v471, 0.5
    %v488 = vmul.f32 %v472, 0.5
    %v489 = vmul.f32 %v473, 0.5
    %v490 = vmul.f32 %v458, 0.70710677
    %v491 = vmul.f32 %v459, 0.70710677
    %v492 = vmul.f32 %v460, 0.70710677
    %v493 = vmul.f32 %v461, 0.70710677
    %v494 = vmul.f32 %v462, 0.70710677
    %v495 = vmul.f32 %v463, 0.70710677
    %v496 = vmul.f32 %v464, 0.70710677
    %v497 = vmul.f32 %v465, 0.70710677
    %v498 = vmul.f32 %v466, 0.70710677
    %v499 = vmul.f32 %v467, 0.70710677
    %v500 = vmul.f32 %v468, 0.70710677
    %v501 = vmul.f32 %v469, 0.70710677
    %v502 = vmul.f32 %v470, 0.70710677
    %v503 = vmul.f32 %v471, 0.70710677
    %v504 = vmul.f32 %v472, 0.70710677
    %v505 = vmul.f32 %v473, 0.70710677
    %v506 = vmul.f32 %v490, %v490
    %v507 = vmin.f32 16.0, %v506
    %v508 = vmul.f32 %v507, 2.1237322e-06
    %v509 = vadd.f32 %v508, 0.00028619796
    %v510 = vmul.f32 %v507, %v509
    %v511 = vadd.f32 %v510, 0.0036580483
    %v512 = vmul.f32 %v507, %v511
    %v513 = vadd.f32 %v512, 0.05243302
    %v514 = vmul.f32 %v507, %v513
    %v515 = vadd.f32 %v514, 0.18741608
    %v516 = vmul.f32 %v507, %v515
    %v517 = vadd.f32 %v516, 1.1283791
    %v518 = vmul.f32 %v490, %v517
    %v519 = vmul.f32 %v507, 3.8918573e-05
    %v520 = vadd.f32 %v519, 0.001143296
    %v521 = vmul.f32 %v507, %v520
    %v522 = vadd.f32 %v521, 0.014752088
    %v523 = vmul.f32 %v507, %v522
    %v524 = vadd.f32 %v523, 0.112945676
    %v525 = vmul.f32 %v507, %v524
    %v526 = vadd.f32 %v525, 0.4994258
    %v527 = vmul.f32 %v507, %v526
    %v528 = vadd.f32 %v527, 1.0
    %v529 = vrcp.pop %v528
    %v530 = vmul.f32 %v528, %v529
    %v531 = vsub.f32 1.0, %v530
    %v532 = vmul.f32 %v529, %v531
    %v533 = vadd.f32 %v529, %v532
    %vm534 = vweird.f32 %v528
    %vm535 = vweird.f32 %v529
    %vm536 = vmor %vm534, %vm535
    %v537 = vsel %vm536, %v529, %v533
    %v538 = vand.u32 2147483647, %v528
    %vm539 = vcmp.eq.f32.partialorder %v538, 8.507059e+37
    %v540 = vand.u32 %v528, 2147483648
    %v541 = vor.u32 1.1754944e-38, %v540
    %v542 = vsel %vm539, %v541, %v537
    %v543 = vmul.f32 %v518, %v542
    %v544 = vmin.f32 %v543, 1.0
    %v545 = vmax.f32 %v544, -1.0
    %v546 = vmul.f32 %v491, %v491
    %v547 = vmin.f32 16.0, %v546
    %v548 = vmul.f32 %v547, 2.1237322e-06
    %v549 = vadd.f32 %v548, 0.00028619796
    %v550 = vmul.f32 %v547, %v549
    %v551 = vadd.f32 %v550, 0.0036580483
    %v552 = vmul.f32 %v547, %v551
    %v553 = vadd.f32 %v552, 0.05243302
    %v554 = vmul.f32 %v547, %v553
    %v555 = vadd.f32 %v554, 0.18741608
    %v556 = vmul.f32 %v547, %v555
    %v557 = vadd.f32 %v556, 1.1283791
    %v558 = vmul.f32 %v491, %v557
    %v559 = vmul.f32 %v547, 3.8918573e-05
    %v560 = vadd.f32 %v559, 0.001143296
    %v561 = vmul.f32 %v547, %v560
    %v562 = vadd.f32 %v561, 0.014752088
    %v563 = vmul.f32 %v547, %v562
    %v564 = vadd.f32 %v563, 0.112945676
    %v565 = vmul.f32 %v547, %v564
    %v566 = vadd.f32 %v565, 0.4994258
    %v567 = vmul.f32 %v547, %v566
    %v568 = vadd.f32 %v567, 1.0
    %v569 = vrcp.pop %v568
    %v570 = vmul.f32 %v568, %v569
    %v571 = vsub.f32 1.0, %v570
    %v572 = vmul.f32 %v569, %v571
    %v573 = vadd.f32 %v569, %v572
    %vm574 = vweird.f32 %v568
    %vm575 = vweird.f32 %v569
    %vm576 = vmor %vm574, %vm575
    %v577 = vsel %vm576, %v569, %v573
    %v578 = vand.u32 2147483647, %v568
    %vm579 = vcmp.eq.f32.partialorder %v578, 8.507059e+37
    %v580 = vand.u32 %v568, 2147483648
    %v581 = vor.u32 1.1754944e-38, %v580
    %v582 = vsel %vm579, %v581, %v577
    %v583 = vmul.f32 %v558, %v582
    %v584 = vmin.f32 %v583, 1.0
    %v585 = vmax.f32 %v584, -1.0
    %v586 = vmul.f32 %v492, %v492
    %v587 = vmin.f32 16.0, %v586
    %v588 = vmul.f32 %v587, 2.1237322e-06
    %v589 = vadd.f32 %v588, 0.00028619796
    %v590 = vmul.f32 %v587, %v589
    %v591 = vadd.f32 %v590, 0.0036580483
    %v592 = vmul.f32 %v587, %v591
    %v593 = vadd.f32 %v592, 0.05243302
    %v594 = vmul.f32 %v587, %v593
    %v595 = vadd.f32 %v594, 0.18741608
    %v596 = vmul.f32 %v587, %v595
    %v597 = vadd.f32 %v596, 1.1283791
    %v598 = vmul.f32 %v492, %v597
    %v599 = vmul.f32 %v587, 3.8918573e-05
    %v600 = vadd.f32 %v599, 0.001143296
    %v601 = vmul.f32 %v587, %v600
    %v602 = vadd.f32 %v601, 0.014752088
    %v603 = vmul.f32 %v587, %v602
    %v604 = vadd.f32 %v603, 0.112945676
    %v605 = vmul.f32 %v587, %v604
    %v606 = vadd.f32 %v605, 0.4994258
    %v607 = vmul.f32 %v587, %v606
    %v608 = vadd.f32 %v607, 1.0
    %v609 = vrcp.pop %v608
    %v610 = vmul.f32 %v608, %v609
    %v611 = vsub.f32 1.0, %v610
    %v612 = vmul.f32 %v609, %v611
    %v613 = vadd.f32 %v609, %v612
    %vm614 = vweird.f32 %v608
    %vm615 = vweird.f32 %v609
    %vm616 = vmor %vm614, %vm615
    %v617 = vsel %vm616, %v609, %v613
    %v618 = vand.u32 2147483647, %v608
    %vm619 = vcmp.eq.f32.partialorder %v618, 8.507059e+37
    %v620 = vand.u32 %v608, 2147483648
    %v621 = vor.u32 1.1754944e-38, %v620
    %v622 = vsel %vm619, %v621, %v617
    %v623 = vmul.f32 %v598, %v622
    %v624 = vmin.f32 %v623, 1.0
    %v625 = vmax.f32 %v624, -1.0
    %v626 = vmul.f32 %v493, %v493
    %v627 = vmin.f32 16.0, %v626
    %v628 = vmul.f32 %v627, 2.1237322e-06
    %v629 = vadd.f32 %v628, 0.00028619796
    %v630 = vmul.f32 %v627, %v629
    %v631 = vadd.f32 %v630, 0.0036580483
    %v632 = vmul.f32 %v627, %v631
    %v633 = vadd.f32 %v632, 0.05243302
    %v634 = vmul.f32 %v627, %v633
    %v635 = vadd.f32 %v634, 0.18741608
    %v636 = vmul.f32 %v627, %v635
    %v637 = vadd.f32 %v636, 1.1283791
    %v638 = vmul.f32 %v493, %v637
    %v639 = vmul.f32 %v627, 3.8918573e-05
    %v640 = vadd.f32 %v639, 0.001143296
    %v641 = vmul.f32 %v627, %v640
    %v642 = vadd.f32 %v641, 0.014752088
    %v643 = vmul.f32 %v627, %v642
    %v644 = vadd.f32 %v643, 0.112945676
    %v645 = vmul.f32 %v627, %v644
    %v646 = vadd.f32 %v645, 0.4994258
    %v647 = vmul.f32 %v627, %v646
    %v648 = vadd.f32 %v647, 1.0
    %v649 = vrcp.pop %v648
    %v650 = vmul.f32 %v648, %v649
    %v651 = vsub.f32 1.0, %v650
    %v652 = vmul.f32 %v649, %v651
    %v653 = vadd.f32 %v649, %v652
    %vm654 = vweird.f32 %v648
    %vm655 = vweird.f32 %v649
    %vm656 = vmor %vm654, %vm655
    %v657 = vsel %vm656, %v649, %v653
    %v658 = vand.u32 2147483647, %v648
    %vm659 = vcmp.eq.f32.partialorder %v658, 8.507059e+37
    %v660 = vand.u32 %v648, 2147483648
    %v661 = vor.u32 1.1754944e-38, %v660
    %v662 = vsel %vm659, %v661, %v657
    %v663 = vmul.f32 %v638, %v662
    %v664 = vmin.f32 %v663, 1.0
    %v665 = vmax.f32 %v664, -1.0
    %v666 = vmul.f32 %v494, %v494
    %v667 = vmin.f32 16.0, %v666
    %v668 = vmul.f32 %v667, 2.1237322e-06
    %v669 = vadd.f32 %v668, 0.00028619796
    %v670 = vmul.f32 %v667, %v669
    %v671 = vadd.f32 %v670, 0.0036580483
    %v672 = vmul.f32 %v667, %v671
    %v673 = vadd.f32 %v672, 0.05243302
    %v674 = vmul.f32 %v667, %v673
    %v675 = vadd.f32 %v674, 0.18741608
    %v676 = vmul.f32 %v667, %v675
    %v677 = vadd.f32 %v676, 1.1283791
    %v678 = vmul.f32 %v494, %v677
    %v679 = vmul.f32 %v667, 3.8918573e-05
    %v680 = vadd.f32 %v679, 0.001143296
    %v681 = vmul.f32 %v667, %v680
    %v682 = vadd.f32 %v681, 0.014752088
    %v683 = vmul.f32 %v667, %v682
    %v684 = vadd.f32 %v683, 0.112945676
    %v685 = vmul.f32 %v667, %v684
    %v686 = vadd.f32 %v685, 0.4994258
    %v687 = vmul.f32 %v667, %v686
    %v688 = vadd.f32 %v687, 1.0
    %v689 = vrcp.pop %v688
    %v690 = vmul.f32 %v688, %v689
    %v691 = vsub.f32 1.0, %v690
    %v692 = vmul.f32 %v689, %v691
    %v693 = vadd.f32 %v689, %v692
    %vm694 = vweird.f32 %v688
    %vm695 = vweird.f32 %v689
    %vm696 = vmor %vm694, %vm695
    %v697 = vsel %vm696, %v689, %v693
    %v698 = vand.u32 2147483647, %v688
    %vm699 = vcmp.eq.f32.partialorder %v698, 8.507059e+37
    %v700 = vand.u32 %v688, 2147483648
    %v701 = vor.u32 1.1754944e-38, %v700
    %v702 = vsel %vm699, %v701, %v697
    %v703 = vmul.f32 %v678, %v702
    %v704 = vmin.f32 %v703, 1.0
    %v705 = vmax.f32 %v704, -1.0
    %v706 = vmul.f32 %v495, %v495
    %v707 = vmin.f32 16.0, %v706
    %v708 = vmul.f32 %v707, 2.1237322e-06
    %v709 = vadd.f32 %v708, 0.00028619796
    %v710 = vmul.f32 %v707, %v709
    %v711 = vadd.f32 %v710, 0.0036580483
    %v712 = vmul.f32 %v707, %v711
    %v713 = vadd.f32 %v712, 0.05243302
    %v714 = vmul.f32 %v707, %v713
    %v715 = vadd.f32 %v714, 0.18741608
    %v716 = vmul.f32 %v707, %v715
    %v717 = vadd.f32 %v716, 1.1283791
    %v718 = vmul.f32 %v495, %v717
    %v719 = vmul.f32 %v707, 3.8918573e-05
    %v720 = vadd.f32 %v719, 0.001143296
    %v721 = vmul.f32 %v707, %v720
    %v722 = vadd.f32 %v721, 0.014752088
    %v723 = vmul.f32 %v707, %v722
    %v724 = vadd.f32 %v723, 0.112945676
    %v725 = vmul.f32 %v707, %v724
    %v726 = vadd.f32 %v725, 0.4994258
    %v727 = vmul.f32 %v707, %v726
    %v728 = vadd.f32 %v727, 1.0
    %v729 = vrcp.pop %v728
    %v730 = vmul.f32 %v728, %v729
    %v731 = vsub.f32 1.0, %v730
    %v732 = vmul.f32 %v729, %v731
    %v733 = vadd.f32 %v729, %v732
    %vm734 = vweird.f32 %v728
    %vm735 = vweird.f32 %v729
    %vm736 = vmor %vm734, %vm735
    %v737 = vsel %vm736, %v729, %v733
    %v738 = vand.u32 2147483647, %v728
    %vm739 = vcmp.eq.f32.partialorder %v738, 8.507059e+37
    %v740 = vand.u32 %v728, 2147483648
    %v741 = vor.u32 1.1754944e-38, %v740
    %v742 = vsel %vm739, %v741, %v737
    %v743 = vmul.f32 %v718, %v742
    %v744 = vmin.f32 %v743, 1.0
    %v745 = vmax.f32 %v744, -1.0
    %v746 = vmul.f32 %v496, %v496
    %v747 = vmin.f32 16.0, %v746
    %v748 = vmul.f32 %v747, 2.1237322e-06
    %v749 = vadd.f32 %v748, 0.00028619796
    %v750 = vmul.f32 %v747, %v749
    %v751 = vadd.f32 %v750, 0.0036580483
    %v752 = vmul.f32 %v747, %v751
    %v753 = vadd.f32 %v752, 0.05243302
    %v754 = vmul.f32 %v747, %v753
    %v755 = vadd.f32 %v754, 0.18741608
    %v756 = vmul.f32 %v747, %v755
    %v757 = vadd.f32 %v756, 1.1283791
    %v758 = vmul.f32 %v496, %v757
    %v759 = vmul.f32 %v747, 3.8918573e-05
    %v760 = vadd.f32 %v759, 0.001143296
    %v761 = vmul.f32 %v747, %v760
    %v762 = vadd.f32 %v761, 0.014752088
    %v763 = vmul.f32 %v747, %v762
    %v764 = vadd.f32 %v763, 0.112945676
    %v765 = vmul.f32 %v747, %v764
    %v766 = vadd.f32 %v765, 0.4994258
    %v767 = vmul.f32 %v747, %v766
    %v768 = vadd.f32 %v767, 1.0
    %v769 = vrcp.pop %v768
    %v770 = vmul.f32 %v768, %v769
    %v771 = vsub.f32 1.0, %v770
    %v772 = vmul.f32 %v769, %v771
    %v773 = vadd.f32 %v769, %v772
    %vm774 = vweird.f32 %v768
    %vm775 = vweird.f32 %v769
    %vm776 = vmor %vm774, %vm775
    %v777 = vsel %vm776, %v769, %v773
    %v778 = vand.u32 2147483647, %v768
    %vm779 = vcmp.eq.f32.partialorder %v778, 8.507059e+37
    %v780 = vand.u32 %v768, 2147483648
    %v781 = vor.u32 1.1754944e-38, %v780
    %v782 = vsel %vm779, %v781, %v777
    %v783 = vmul.f32 %v758, %v782
    %v784 = vmin.f32 %v783, 1.0
    %v785 = vmax.f32 %v784, -1.0
    %v786 = vmul.f32 %v497, %v497
    %v787 = vmin.f32 16.0, %v786
    %v788 = vmul.f32 %v787, 2.1237322e-06
    %v789 = vadd.f32 %v788, 0.00028619796
    %v790 = vmul.f32 %v787, %v789
    %v791 = vadd.f32 %v790, 0.0036580483
    %v792 = vmul.f32 %v787, %v791
    %v793 = vadd.f32 %v792, 0.05243302
    %v794 = vmul.f32 %v787, %v793
    %v795 = vadd.f32 %v794, 0.18741608
    %v796 = vmul.f32 %v787, %v795
    %v797 = vadd.f32 %v796, 1.1283791
    %v798 = vmul.f32 %v497, %v797
    %v799 = vmul.f32 %v787, 3.8918573e-05
    %v800 = vadd.f32 %v799, 0.001143296
    %v801 = vmul.f32 %v787, %v800
    %v802 = vadd.f32 %v801, 0.014752088
    %v803 = vmul.f32 %v787, %v802
    %v804 = vadd.f32 %v803, 0.112945676
    %v805 = vmul.f32 %v787, %v804
    %v806 = vadd.f32 %v805, 0.4994258
    %v807 = vmul.f32 %v787, %v806
    %v808 = vadd.f32 %v807, 1.0
    %v809 = vrcp.pop %v808
    %v810 = vmul.f32 %v808, %v809
    %v811 = vsub.f32 1.0, %v810
    %v812 = vmul.f32 %v809, %v811
    %v813 = vadd.f32 %v809, %v812
    %vm814 = vweird.f32 %v808
    %vm815 = vweird.f32 %v809
    %vm816 = vmor %vm814, %vm815
    %v817 = vsel %vm816, %v809, %v813
    %v818 = vand.u32 2147483647, %v808
    %vm819 = vcmp.eq.f32.partialorder %v818, 8.507059e+37
    %v820 = vand.u32 %v808, 2147483648
    %v821 = vor.u32 1.1754944e-38, %v820
    %v822 = vsel %vm819, %v821, %v817
    %v823 = vmul.f32 %v798, %v822
    %v824 = vmin.f32 %v823, 1.0
    %v825 = vmax.f32 %v824, -1.0
    %v826 = vmul.f32 %v498, %v498
    %v827 = vmin.f32 16.0, %v826
    %v828 = vmul.f32 %v827, 2.1237322e-06
    %v829 = vadd.f32 %v828, 0.00028619796
    %v830 = vmul.f32 %v827, %v829
    %v831 = vadd.f32 %v830, 0.0036580483
    %v832 = vmul.f32 %v827, %v831
    %v833 = vadd.f32 %v832, 0.05243302
    %v834 = vmul.f32 %v827, %v833
    %v835 = vadd.f32 %v834, 0.18741608
    %v836 = vmul.f32 %v827, %v835
    %v837 = vadd.f32 %v836, 1.1283791
    %v838 = vmul.f32 %v498, %v837
    %v839 = vmul.f32 %v827, 3.8918573e-05
    %v840 = vadd.f32 %v839, 0.001143296
    %v841 = vmul.f32 %v827, %v840
    %v842 = vadd.f32 %v841, 0.014752088
    %v843 = vmul.f32 %v827, %v842
    %v844 = vadd.f32 %v843, 0.112945676
    %v845 = vmul.f32 %v827, %v844
    %v846 = vadd.f32 %v845, 0.4994258
    %v847 = vmul.f32 %v827, %v846
    %v848 = vadd.f32 %v847, 1.0
    %v849 = vrcp.pop %v848
    %v850 = vmul.f32 %v848, %v849
    %v851 = vsub.f32 1.0, %v850
    %v852 = vmul.f32 %v849, %v851
    %v853 = vadd.f32 %v849, %v852
    %vm854 = vweird.f32 %v848
    %vm855 = vweird.f32 %v849
    %vm856 = vmor %vm854, %vm855
    %v857 = vsel %vm856, %v849, %v853
    %v858 = vand.u32 2147483647, %v848
    %vm859 = vcmp.eq.f32.partialorder %v858, 8.507059e+37
    %v860 = vand.u32 %v848, 2147483648
    %v861 = vor.u32 1.1754944e-38, %v860
    %v862 = vsel %vm859, %v861, %v857
    %v863 = vmul.f32 %v838, %v862
    %v864 = vmin.f32 %v863, 1.0
    %v865 = vmax.f32 %v864, -1.0
    %v866 = vmul.f32 %v499, %v499
    %v867 = vmin.f32 16.0, %v866
    %v868 = vmul.f32 %v867, 2.1237322e-06
    %v869 = vadd.f32 %v868, 0.00028619796
    %v870 = vmul.f32 %v867, %v869
    %v871 = vadd.f32 %v870, 0.0036580483
    %v872 = vmul.f32 %v867, %v871
    %v873 = vadd.f32 %v872, 0.05243302
    %v874 = vmul.f32 %v867, %v873
    %v875 = vadd.f32 %v874, 0.18741608
    %v876 = vmul.f32 %v867, %v875
    %v877 = vadd.f32 %v876, 1.1283791
    %v878 = vmul.f32 %v499, %v877
    %v879 = vmul.f32 %v867, 3.8918573e-05
    %v880 = vadd.f32 %v879, 0.001143296
    %v881 = vmul.f32 %v867, %v880
    %v882 = vadd.f32 %v881, 0.014752088
    %v883 = vmul.f32 %v867, %v882
    %v884 = vadd.f32 %v883, 0.112945676
    %v885 = vmul.f32 %v867, %v884
    %v886 = vadd.f32 %v885, 0.4994258
    %v887 = vmul.f32 %v867, %v886
    %v888 = vadd.f32 %v887, 1.0
    %v889 = vrcp.pop %v888
    %v890 = vmul.f32 %v888, %v889
    %v891 = vsub.f32 1.0, %v890
    %v892 = vmul.f32 %v889, %v891
    %v893 = vadd.f32 %v889, %v892
    %vm894 = vweird.f32 %v888
    %vm895 = vweird.f32 %v889
    %vm896 = vmor %vm894, %vm895
    %v897 = vsel %vm896, %v889, %v893
    %v898 = vand.u32 2147483647, %v888
    %vm899 = vcmp.eq.f32.partialorder %v898, 8.507059e+37
    %v900 = vand.u32 %v888, 2147483648
    %v901 = vor.u32 1.1754944e-38, %v900
    %v902 = vsel %vm899, %v901, %v897
    %v903 = vmul.f32 %v878, %v902
    %v904 = vmin.f32 %v903, 1.0
    %v905 = vmax.f32 %v904, -1.0
    %v906 = vmul.f32 %v500, %v500
    %v907 = vmin.f32 16.0, %v906
    %v908 = vmul.f32 %v907, 2.1237322e-06
    %v909 = vadd.f32 %v908, 0.00028619796
    %v910 = vmul.f32 %v907, %v909
    %v911 = vadd.f32 %v910, 0.0036580483
    %v912 = vmul.f32 %v907, %v911
    %v913 = vadd.f32 %v912, 0.05243302
    %v914 = vmul.f32 %v907, %v913
    %v915 = vadd.f32 %v914, 0.18741608
    %v916 = vmul.f32 %v907, %v915
    %v917 = vadd.f32 %v916, 1.1283791
    %v918 = vmul.f32 %v500, %v917
    %v919 = vmul.f32 %v907, 3.8918573e-05
    %v920 = vadd.f32 %v919, 0.001143296
    %v921 = vmul.f32 %v907, %v920
    %v922 = vadd.f32 %v921, 0.014752088
    %v923 = vmul.f32 %v907, %v922
    %v924 = vadd.f32 %v923, 0.112945676
    %v925 = vmul.f32 %v907, %v924
    %v926 = vadd.f32 %v925, 0.4994258
    %v927 = vmul.f32 %v907, %v926
    %v928 = vadd.f32 %v927, 1.0
    %v929 = vrcp.pop %v928
    %v930 = vmul.f32 %v928, %v929
    %v931 = vsub.f32 1.0, %v930
    %v932 = vmul.f32 %v929, %v931
    %v933 = vadd.f32 %v929, %v932
    %vm934 = vweird.f32 %v928
    %vm935 = vweird.f32 %v929
    %vm936 = vmor %vm934, %vm935
    %v937 = vsel %vm936, %v929, %v933
    %v938 = vand.u32 2147483647, %v928
    %vm939 = vcmp.eq.f32.partialorder %v938, 8.507059e+37
    %v940 = vand.u32 %v928, 2147483648
    %v941 = vor.u32 1.1754944e-38, %v940
    %v942 = vsel %vm939, %v941, %v937
    %v943 = vmul.f32 %v918, %v942
    %v944 = vmin.f32 %v943, 1.0
    %v945 = vmax.f32 %v944, -1.0
    %v946 = vmul.f32 %v501, %v501
    %v947 = vmin.f32 16.0, %v946
    %v948 = vmul.f32 %v947, 2.1237322e-06
    %v949 = vadd.f32 %v948, 0.00028619796
    %v950 = vmul.f32 %v947, %v949
    %v951 = vadd.f32 %v950, 0.0036580483
    %v952 = vmul.f32 %v947, %v951
    %v953 = vadd.f32 %v952, 0.05243302
    %v954 = vmul.f32 %v947, %v953
    %v955 = vadd.f32 %v954, 0.18741608
    %v956 = vmul.f32 %v947, %v955
    %v957 = vadd.f32 %v956, 1.1283791
    %v958 = vmul.f32 %v501, %v957
    %v959 = vmul.f32 %v947, 3.8918573e-05
    %v960 = vadd.f32 %v959, 0.001143296
    %v961 = vmul.f32 %v947, %v960
    %v962 = vadd.f32 %v961, 0.014752088
    %v963 = vmul.f32 %v947, %v962
    %v964 = vadd.f32 %v963, 0.112945676
    %v965 = vmul.f32 %v947, %v964
    %v966 = vadd.f32 %v965, 0.4994258
    %v967 = vmul.f32 %v947, %v966
    %v968 = vadd.f32 %v967, 1.0
    %v969 = vrcp.pop %v968
    %v970 = vmul.f32 %v968, %v969
    %v971 = vsub.f32 1.0, %v970
    %v972 = vmul.f32 %v969, %v971
    %v973 = vadd.f32 %v969, %v972
    %vm974 = vweird.f32 %v968
    %vm975 = vweird.f32 %v969
    %vm976 = vmor %vm974, %vm975
    %v977 = vsel %vm976, %v969, %v973
    %v978 = vand.u32 2147483647, %v968
    %vm979 = vcmp.eq.f32.partialorder %v978, 8.507059e+37
    %v980 = vand.u32 %v968, 2147483648
    %v981 = vor.u32 1.1754944e-38, %v980
    %v982 = vsel %vm979, %v981, %v977
    %v983 = vmul.f32 %v958, %v982
    %v984 = vmin.f32 %v983, 1.0
    %v985 = vmax.f32 %v984, -1.0
    %v986 = vmul.f32 %v502, %v502
    %v987 = vmin.f32 16.0, %v986
    %v988 = vmul.f32 %v987, 2.1237322e-06
    %v989 = vadd.f32 %v988, 0.00028619796
    %v990 = vmul.f32 %v987, %v989
    %v991 = vadd.f32 %v990, 0.0036580483
    %v992 = vmul.f32 %v987, %v991
    %v993 = vadd.f32 %v992, 0.05243302
    %v994 = vmul.f32 %v987, %v993
    %v995 = vadd.f32 %v994, 0.18741608
    %v996 = vmul.f32 %v987, %v995
    %v997 = vadd.f32 %v996, 1.1283791
    %v998 = vmul.f32 %v502, %v997
    %v999 = vmul.f32 %v987, 3.8918573e-05
    %v1000 = vadd.f32 %v999, 0.001143296
    %v1001 = vmul.f32 %v987, %v1000
    %v1002 = vadd.f32 %v1001, 0.014752088
    %v1003 = vmul.f32 %v987, %v1002
    %v1004 = vadd.f32 %v1003, 0.112945676
    %v1005 = vmul.f32 %v987, %v1004
    %v1006 = vadd.f32 %v1005, 0.4994258
    %v1007 = vmul.f32 %v987, %v1006
    %v1008 = vadd.f32 %v1007, 1.0
    %v1009 = vrcp.pop %v1008
    %v1010 = vmul.f32 %v1008, %v1009
    %v1011 = vsub.f32 1.0, %v1010
    %v1012 = vmul.f32 %v1009, %v1011
    %v1013 = vadd.f32 %v1009, %v1012
    %vm1014 = vweird.f32 %v1008
    %vm1015 = vweird.f32 %v1009
    %vm1016 = vmor %vm1014, %vm1015
    %v1017 = vsel %vm1016, %v1009, %v1013
    %v1018 = vand.u32 2147483647, %v1008
    %vm1019 = vcmp.eq.f32.partialorder %v1018, 8.507059e+37
    %v1020 = vand.u32 %v1008, 2147483648
    %v1021 = vor.u32 1.1754944e-38, %v1020
    %v1022 = vsel %vm1019, %v1021, %v1017
    %v1023 = vmul.f32 %v998, %v1022
    %v1024 = vmin.f32 %v1023, 1.0
    %v1025 = vmax.f32 %v1024, -1.0
    %v1026 = vmul.f32 %v503, %v503
    %v1027 = vmin.f32 16.0, %v1026
    %v1028 = vmul.f32 %v1027, 2.1237322e-06
    %v1029 = vadd.f32 %v1028, 0.00028619796
    %v1030 = vmul.f32 %v1027, %v1029
    %v1031 = vadd.f32 %v1030, 0.0036580483
    %v1032 = vmul.f32 %v1027, %v1031
    %v1033 = vadd.f32 %v1032, 0.05243302
    %v1034 = vmul.f32 %v1027, %v1033
    %v1035 = vadd.f32 %v1034, 0.18741608
    %v1036 = vmul.f32 %v1027, %v1035
    %v1037 = vadd.f32 %v1036, 1.1283791
    %v1038 = vmul.f32 %v503, %v1037
    %v1039 = vmul.f32 %v1027, 3.8918573e-05
    %v1040 = vadd.f32 %v1039, 0.001143296
    %v1041 = vmul.f32 %v1027, %v1040
    %v1042 = vadd.f32 %v1041, 0.014752088
    %v1043 = vmul.f32 %v1027, %v1042
    %v1044 = vadd.f32 %v1043, 0.112945676
    %v1045 = vmul.f32 %v1027, %v1044
    %v1046 = vadd.f32 %v1045, 0.4994258
    %v1047 = vmul.f32 %v1027, %v1046
    %v1048 = vadd.f32 %v1047, 1.0
    %v1049 = vrcp.pop %v1048
    %v1050 = vmul.f32 %v1048, %v1049
    %v1051 = vsub.f32 1.0, %v1050
    %v1052 = vmul.f32 %v1049, %v1051
    %v1053 = vadd.f32 %v1049, %v1052
    %vm1054 = vweird.f32 %v1048
    %vm1055 = vweird.f32 %v1049
    %vm1056 = vmor %vm1054, %vm1055
    %v1057 = vsel %vm1056, %v1049, %v1053
    %v1058 = vand.u32 2147483647, %v1048
    %vm1059 = vcmp.eq.f32.partialorder %v1058, 8.507059e+37
    %v1060 = vand.u32 %v1048, 2147483648
    %v1061 = vor.u32 1.1754944e-38, %v1060
    %v1062 = vsel %vm1059, %v1061, %v1057
    %v1063 = vmul.f32 %v1038, %v1062
    %v1064 = vmin.f32 %v1063, 1.0
    %v1065 = vmax.f32 %v1064, -1.0
    %v1066 = vmul.f32 %v504, %v504
    %v1067 = vmin.f32 16.0, %v1066
    %v1068 = vmul.f32 %v1067, 2.1237322e-06
    %v1069 = vadd.f32 %v1068, 0.00028619796
    %v1070 = vmul.f32 %v1067, %v1069
    %v1071 = vadd.f32 %v1070, 0.0036580483
    %v1072 = vmul.f32 %v1067, %v1071
    %v1073 = vadd.f32 %v1072, 0.05243302
    %v1074 = vmul.f32 %v1067, %v1073
    %v1075 = vadd.f32 %v1074, 0.18741608
    %v1076 = vmul.f32 %v1067, %v1075
    %v1077 = vadd.f32 %v1076, 1.1283791
    %v1078 = vmul.f32 %v504, %v1077
    %v1079 = vmul.f32 %v1067, 3.8918573e-05
    %v1080 = vadd.f32 %v1079, 0.001143296
    %v1081 = vmul.f32 %v1067, %v1080
    %v1082 = vadd.f32 %v1081, 0.014752088
    %v1083 = vmul.f32 %v1067, %v1082
    %v1084 = vadd.f32 %v1083, 0.112945676
    %v1085 = vmul.f32 %v1067, %v1084
    %v1086 = vadd.f32 %v1085, 0.4994258
    %v1087 = vmul.f32 %v1067, %v1086
    %v1088 = vadd.f32 %v1087, 1.0
    %v1089 = vrcp.pop %v1088
    %v1090 = vmul.f32 %v1088, %v1089
    %v1091 = vsub.f32 1.0, %v1090
    %v1092 = vmul.f32 %v1089, %v1091
    %v1093 = vadd.f32 %v1089, %v1092
    %vm1094 = vweird.f32 %v1088
    %vm1095 = vweird.f32 %v1089
    %vm1096 = vmor %vm1094, %vm1095
    %v1097 = vsel %vm1096, %v1089, %v1093
    %v1098 = vand.u32 2147483647, %v1088
    %vm1099 = vcmp.eq.f32.partialorder %v1098, 8.507059e+37
    %v1100 = vand.u32 %v1088, 2147483648
    %v1101 = vor.u32 1.1754944e-38, %v1100
    %v1102 = vsel %vm1099, %v1101, %v1097
    %v1103 = vmul.f32 %v1078, %v1102
    %v1104 = vmin.f32 %v1103, 1.0
    %v1105 = vmax.f32 %v1104, -1.0
    %v1106 = vmul.f32 %v505, %v505
    %v1107 = vmin.f32 16.0, %v1106
    %v1108 = vmul.f32 %v1107, 2.1237322e-06
    %v1109 = vadd.f32 %v1108, 0.00028619796
    %v1110 = vmul.f32 %v1107, %v1109
    %v1111 = vadd.f32 %v1110, 0.0036580483
    %v1112 = vmul.f32 %v1107, %v1111
    %v1113 = vadd.f32 %v1112, 0.05243302
    %v1114 = vmul.f32 %v1107, %v1113
    %v1115 = vadd.f32 %v1114, 0.18741608
    %v1116 = vmul.f32 %v1107, %v1115
    %v1117 = vadd.f32 %v1116, 1.1283791
    %v1118 = vmul.f32 %v505, %v1117
    %v1119 = vmul.f32 %v1107, 3.8918573e-05
    %v1120 = vadd.f32 %v1119, 0.001143296
    %v1121 = vmul.f32 %v1107, %v1120
    %v1122 = vadd.f32 %v1121, 0.014752088
    %v1123 = vmul.f32 %v1107, %v1122
    %v1124 = vadd.f32 %v1123, 0.112945676
    %v1125 = vmul.f32 %v1107, %v1124
    %v1126 = vadd.f32 %v1125, 0.4994258
    %v1127 = vmul.f32 %v1107, %v1126
    %v1128 = vadd.f32 %v1127, 1.0
    %v1129 = vrcp.pop %v1128
    %v1130 = vmul.f32 %v1128, %v1129
    %v1131 = vsub.f32 1.0, %v1130
    %v1132 = vmul.f32 %v1129, %v1131
    %v1133 = vadd.f32 %v1129, %v1132
    %vm1134 = vweird.f32 %v1128
    %vm1135 = vweird.f32 %v1129
    %vm1136 = vmor %vm1134, %vm1135
    %v1137 = vsel %vm1136, %v1129, %v1133
    %v1138 = vand.u32 2147483647, %v1128
    %vm1139 = vcmp.eq.f32.partialorder %v1138, 8.507059e+37
    %v1140 = vand.u32 %v1128, 2147483648
    %v1141 = vor.u32 1.1754944e-38, %v1140
    %v1142 = vsel %vm1139, %v1141, %v1137
    %v1143 = vmul.f32 %v1118, %v1142
    %v1144 = vmin.f32 %v1143, 1.0
    %v1145 = vmax.f32 %v1144, -1.0
    %v1146 = vadd.f32 %v545, 1.0
    %v1147 = vadd.f32 %v585, 1.0
    %v1148 = vadd.f32 %v625, 1.0
    %v1149 = vadd.f32 %v665, 1.0
    %v1150 = vadd.f32 %v705, 1.0
    %v1151 = vadd.f32 %v745, 1.0
    %v1152 = vadd.f32 %v785, 1.0
    %v1153 = vadd.f32 %v825, 1.0
    %v1154 = vadd.f32 %v865, 1.0
    %v1155 = vadd.f32 %v905, 1.0
    %v1156 = vadd.f32 %v945, 1.0
    %v1157 = vadd.f32 %v985, 1.0
    %v1158 = vadd.f32 %v1025, 1.0
    %v1159 = vadd.f32 %v1065, 1.0
    %v1160 = vadd.f32 %v1105, 1.0
    %v1161 = vadd.f32 %v1145, 1.0
    %v1162 = vmul.f32 %v474, %v1146
    %v1163 = vmul.f32 %v475, %v1147
    %v1164 = vmul.f32 %v476, %v1148
    %v1165 = vmul.f32 %v477, %v1149
    %v1166 = vmul.f32 %v478, %v1150
    %v1167 = vmul.f32 %v479, %v1151
    %v1168 = vmul.f32 %v480, %v1152
    %v1169 = vmul.f32 %v481, %v1153
    %v1170 = vmul.f32 %v482, %v1154
    %v1171 = vmul.f32 %v483, %v1155
    %v1172 = vmul.f32 %v484, %v1156
    %v1173 = vmul.f32 %v485, %v1157
    %v1174 = vmul.f32 %v486, %v1158
    %v1175 = vmul.f32 %v487, %v1159
    %v1176 = vmul.f32 %v488, %v1160
    %v1177 = vmul.f32 %v489, %v1161
    %v1178 = vpack.c.bf16 %v1162, %v1162
    %v1179 = vpack.c.bf16 %v1163, %v1163
    %v1180 = vpack.c.bf16 %v1164, %v1164
    %v1181 = vpack.c.bf16 %v1165, %v1165
    %v1182 = vpack.c.bf16 %v1166, %v1166
    %v1183 = vpack.c.bf16 %v1167, %v1167
    %v1184 = vpack.c.bf16 %v1168, %v1168
    %v1185 = vpack.c.bf16 %v1169, %v1169
    %v1186 = vpack.c.bf16 %v1170, %v1170
    %v1187 = vpack.c.bf16 %v1171, %v1171
    %v1188 = vpack.c.bf16 %v1172, %v1172
    %v1189 = vpack.c.bf16 %v1173, %v1173
    %v1190 = vpack.c.bf16 %v1174, %v1174
    %v1191 = vpack.c.bf16 %v1175, %v1175
    %v1192 = vpack.c.bf16 %v1176, %v1176
    %v1193 = vpack.c.bf16 %v1177, %v1177
    %1194 = vst [vmem:[%s4] sm:$0xf] %v1178
    %1195 = vst [vmem:[%s4 + $0x4] sm:$0xf] %v1179
    %1196 = vst [vmem:[%s4 + $0x8] sm:$0xf] %v1180
    %1197 = vst [vmem:[%s4 + $0xc] sm:$0xf] %v1181
    %1198 = vst [vmem:[%s4 + $0x10] sm:$0xf] %v1182
    %1199 = vst [vmem:[%s4 + $0x14] sm:$0xf] %v1183
    %1200 = vst [vmem:[%s4 + $0x18] sm:$0xf] %v1184
    %1201 = vst [vmem:[%s4 + $0x1c] sm:$0xf] %v1185
    %1202 = vst [vmem:[%s4 + $0x20] sm:$0xf] %v1186
    %1203 = vst [vmem:[%s4 + $0x24] sm:$0xf] %v1187
    %1204 = vst [vmem:[%s4 + $0x28] sm:$0xf] %v1188
    %1205 = vst [vmem:[%s4 + $0x2c] sm:$0xf] %v1189
    %1206 = vst [vmem:[%s4 + $0x30] sm:$0xf] %v1190
    %1207 = vst [vmem:[%s4 + $0x34] sm:$0xf] %v1191
    %1208 = vst [vmem:[%s4 + $0x38] sm:$0xf] %v1192
    %1209 = vst [vmem:[%s4 + $0x3c] sm:$0xf] %v1193
  $region25: #{gcn_forward.6} parent=0 // pred_fallthru
    _
  // Predicated region
  $region26: #{gcn_forward.6} parent=0 // pred_check
    _
  $region27: #{gcn_forward.6} parent=0 // pred_check_branch
    %1211 = sbr.rel (0) target = $region29
  $region28: #{gcn_forward.6} parent=0 // pred_region
    _
  $region29: #{gcn_forward.6} parent=0 // pred_fallthru
    _
  // Predicated region
  $region30: #{gcn_forward.6} parent=0 // pred_check
    _
  $region31: #{gcn_forward.6} parent=0 // pred_check_branch
    %1213 = sbr.rel (0) target = $region33
  $region32: #{gcn_forward.6} parent=0 // pred_region
    _
  $region33: #{gcn_forward.6} parent=0 // pred_fallthru
    _

// kernel: gcn_forward.9
$region0: #{gcn_forward.9}
  #allocation0 [shape = 'u32[]', space=smem, size = 0x4, offset = 0x4, fixed_abs, tag = 'smem constant byte address 0x4 - core index']
  #allocation1 [shape = 'u32[72,128]{1,0:T(1,128)}', space=vmem, size = 0x9000, scoped, tag = 'internal scratch']
  %s0 = inlined_call_operand.vmem [shape: bf16[128,128], index: 0, kind: input, shape index: {}]
  %s1 = inlined_call_operand.vmem [shape: bf16[128,128], index: 1, kind: input, shape index: {}]
  %s2 = inlined_call_operand.vmem [shape: f32[1,128], index: 2, kind: input, shape index: {}]
  %s3 = inlined_call_operand.vmem [shape: f32[1,128], index: 3, kind: input, shape index: {}]
  %s4 = inlined_call_operand.vmem [shape: f32[1,128], index: 4, kind: input, shape index: {}]
  %s5 = inlined_call_operand.vmem [shape: f32[128,1], index: 5, kind: output, shape index: {}]
  %s6 = sld [smem:[#allocation0]]
  $region30: #{gcn_forward.9} parent=0
    _
  %s8 = ssub.s32 1, %s6
  %s9 = scalar_select 0, %s8, %s6
  // Predicated region
  $region2: #{gcn_forward.9} parent=0 // pred_check
    _
  $region3: #{gcn_forward.9} parent=0 // pred_check_branch
    %11 = sbr.rel (0) target = $region5
  $region4: #{gcn_forward.9} parent=0 // pred_region
    _
  $region5: #{gcn_forward.9} parent=0 // pred_fallthru
    _
  // Predicated region
  $region6: #{gcn_forward.9} parent=0 // pred_check
    _
  $region7: #{gcn_forward.9} parent=0 // pred_check_branch
    %13 = sbr.rel (0) target = $region9
  $region8: #{gcn_forward.9} parent=0 // pred_region
    _
  $region9: #{gcn_forward.9} parent=0 // pred_fallthru
    _
  // Predicated region
  $region10: #{gcn_forward.9} parent=0 // pred_check
    _
  $region11: #{gcn_forward.9} parent=0 // pred_check_branch
    %15 = sbr.rel (0) target = $region13
  $region12: #{gcn_forward.9} parent=0 // pred_region
    _
  $region13: #{gcn_forward.9} parent=0 // pred_fallthru
    _
  // Predicated region
  $region14: #{gcn_forward.9} parent=0 // pred_check
    _
  $region15: #{gcn_forward.9} parent=0 // pred_check_branch
    %17 = sbr.rel (0) target = $region17
  $region16: #{gcn_forward.9} parent=0 // pred_region
    _
  $region17: #{gcn_forward.9} parent=0 // pred_fallthru
    _
  // Predicated region
  $region18: #{gcn_forward.9} parent=0 // pred_check
    _
  $region19: #{gcn_forward.9} parent=0 // pred_check_branch
    %19 = sbr.rel (0) target = $region21
  $region20: #{gcn_forward.9} parent=0 // pred_region
    _
  $region21: #{gcn_forward.9} parent=0 // pred_fallthru
    _
  %v20 = vld [vmem:[%s0] sm:$0xf]
  %v21 = vld [vmem:[%s0 + $0x4] sm:$0xf]
  %v22 = vld [vmem:[%s0 + $0x8] sm:$0xf]
  %v23 = vld [vmem:[%s0 + $0xc] sm:$0xf]
  %v24 = vld [vmem:[%s0 + $0x10] sm:$0xf]
  %v25 = vld [vmem:[%s0 + $0x14] sm:$0xf]
  %v26 = vld [vmem:[%s0 + $0x18] sm:$0xf]
  %v27 = vld [vmem:[%s0 + $0x1c] sm:$0xf]
  %v28 = vld [vmem:[%s0 + $0x20] sm:$0xf]
  %v29 = vld [vmem:[%s0 + $0x24] sm:$0xf]
  %v30 = vld [vmem:[%s0 + $0x28] sm:$0xf]
  %v31 = vld [vmem:[%s0 + $0x2c] sm:$0xf]
  %v32 = vld [vmem:[%s0 + $0x30] sm:$0xf]
  %v33 = vld [vmem:[%s0 + $0x34] sm:$0xf]
  %v34 = vld [vmem:[%s0 + $0x38] sm:$0xf]
  %v35 = vld [vmem:[%s0 + $0x3c] sm:$0xf]
  %v36 = vld [vmem:[%s1] sm:$0xf]
  %v37 = vld [vmem:[%s1 + $0x4] sm:$0xf]
  %v38 = vld [vmem:[%s1 + $0x8] sm:$0xf]
  %v39 = vld [vmem:[%s1 + $0xc] sm:$0xf]
  %v40 = vld [vmem:[%s1 + $0x10] sm:$0xf]
  %v41 = vld [vmem:[%s1 + $0x14] sm:$0xf]
  %v42 = vld [vmem:[%s1 + $0x18] sm:$0xf]
  %v43 = vld [vmem:[%s1 + $0x1c] sm:$0xf]
  %v44 = vld [vmem:[%s1 + $0x20] sm:$0xf]
  %v45 = vld [vmem:[%s1 + $0x24] sm:$0xf]
  %v46 = vld [vmem:[%s1 + $0x28] sm:$0xf]
  %v47 = vld [vmem:[%s1 + $0x2c] sm:$0xf]
  %v48 = vld [vmem:[%s1 + $0x30] sm:$0xf]
  %v49 = vld [vmem:[%s1 + $0x34] sm:$0xf]
  %v50 = vld [vmem:[%s1 + $0x38] sm:$0xf]
  %v51 = vld [vmem:[%s1 + $0x3c] sm:$0xf]
  %v68 = vunpack.c.l.b16 %v20
  %v69 = vunpack.c.l.b16 %v21
  %v70 = vunpack.c.l.b16 %v22
  %v71 = vunpack.c.l.b16 %v23
  %v72 = vunpack.c.l.b16 %v24
  %v73 = vunpack.c.l.b16 %v25
  %v74 = vunpack.c.l.b16 %v26
  %v75 = vunpack.c.l.b16 %v27
  %v76 = vunpack.c.l.b16 %v28
  %v77 = vunpack.c.l.b16 %v29
  %v78 = vunpack.c.l.b16 %v30
  %v79 = vunpack.c.l.b16 %v31
  %v80 = vunpack.c.l.b16 %v32
  %v81 = vunpack.c.l.b16 %v33
  %v82 = vunpack.c.l.b16 %v34
  %v83 = vunpack.c.l.b16 %v35
  %v84 = vpack.c.b16 %v69, %v68
  %v85 = vpack.c.b16 %v71, %v70
  %v86 = vpack.c.b16 %v73, %v72
  %v87 = vpack.c.b16 %v75, %v74
  %v88 = vpack.c.b16 %v77, %v76
  %v89 = vpack.c.b16 %v79, %v78
  %v90 = vpack.c.b16 %v81, %v80
  %v91 = vpack.c.b16 %v83, %v82
  %v116 = vunpack.c.l.b16 %v36
  %v117 = vunpack.c.l.b16 %v37
  %v118 = vunpack.c.l.b16 %v38
  %v119 = vunpack.c.l.b16 %v39
  %v120 = vunpack.c.l.b16 %v40
  %v121 = vunpack.c.l.b16 %v41
  %v122 = vunpack.c.l.b16 %v42
  %v123 = vunpack.c.l.b16 %v43
  %v124 = vunpack.c.l.b16 %v44
  %v125 = vunpack.c.l.b16 %v45
  %v126 = vunpack.c.l.b16 %v46
  %v127 = vunpack.c.l.b16 %v47
  %v128 = vunpack.c.l.b16 %v48
  %v129 = vunpack.c.l.b16 %v49
  %v130 = vunpack.c.l.b16 %v50
  %v131 = vunpack.c.l.b16 %v51
  %v132 = vpack.c.b16 %v117, %v116
  %v133 = vpack.c.b16 %v119, %v118
  %v134 = vpack.c.b16 %v121, %v120
  %v135 = vpack.c.b16 %v123, %v122
  %v136 = vpack.c.b16 %v125, %v124
  %v137 = vpack.c.b16 %v127, %v126
  %v138 = vpack.c.b16 %v129, %v128
  %v139 = vpack.c.b16 %v131, %v130
  %148 = vmatpush.bf16.msra.mxu0 %v139
  %149 = vmatpush.bf16.msra.mxu0 %v138
  %150 = vmatpush.bf16.msra.mxu0 %v137
  %151 = vmatpush.bf16.msra.mxu0 %v136
  %152 = vmatpush.bf16.msra.mxu0 %v135
  %153 = vmatpush.bf16.msra.mxu0 %v134
  %154 = vmatpush.bf16.msra.mxu0 %v133
  %155 = vmatpush.bf16.msra.mxu0 %v132
  %156 = vmatmul.bf16.gmra.mxu0 %v84
  %v157 = vpop.f32.mrf.mxu0
  %v158 = vadd.f32 0.0, %v157
  %v159 = vpop.f32.mrf.mxu0
  %v160 = vadd.f32 0.0, %v159
  %161 = vmatmul.bf16.gmra.mxu0 %v85
  %v162 = vpop.f32.mrf.mxu0
  %v163 = vadd.f32 0.0, %v162
  %v164 = vpop.f32.mrf.mxu0
  %v165 = vadd.f32 0.0, %v164
  %166 = vmatmul.bf16.gmra.mxu0 %v86
  %v167 = vpop.f32.mrf.mxu0
  %v168 = vadd.f32 0.0, %v167
  %v169 = vpop.f32.mrf.mxu0
  %v170 = vadd.f32 0.0, %v169
  %171 = vmatmul.bf16.gmra.mxu0 %v87
  %v172 = vpop.f32.mrf.mxu0
  %v173 = vadd.f32 0.0, %v172
  %v174 = vpop.f32.mrf.mxu0
  %v175 = vadd.f32 0.0, %v174
  %176 = vmatmul.bf16.gmra.mxu0 %v88
  %v177 = vpop.f32.mrf.mxu0
  %v178 = vadd.f32 0.0, %v177
  %v179 = vpop.f32.mrf.mxu0
  %v180 = vadd.f32 0.0, %v179
  %181 = vmatmul.bf16.gmra.mxu0 %v89
  %v182 = vpop.f32.mrf.mxu0
  %v183 = vadd.f32 0.0, %v182
  %v184 = vpop.f32.mrf.mxu0
  %v185 = vadd.f32 0.0, %v184
  %186 = vmatmul.bf16.gmra.mxu0 %v90
  %v187 = vpop.f32.mrf.mxu0
  %v188 = vadd.f32 0.0, %v187
  %v189 = vpop.f32.mrf.mxu0
  %v190 = vadd.f32 0.0, %v189
  %191 = vmatmul.bf16.gmra.mxu0 %v91
  %v192 = vpop.f32.mrf.mxu0
  %v193 = vadd.f32 0.0, %v192
  %v194 = vpop.f32.mrf.mxu0
  %v195 = vadd.f32 0.0, %v194
  %196 = vdwg.mxu0
  %v197 = vmul.f32 %v158, 0.5
  %v198 = vmul.f32 %v160, 0.5
  %v199 = vmul.f32 %v163, 0.5
  %v200 = vmul.f32 %v165, 0.5
  %v201 = vmul.f32 %v168, 0.5
  %v202 = vmul.f32 %v170, 0.5
  %v203 = vmul.f32 %v173, 0.5
  %v204 = vmul.f32 %v175, 0.5
  %v205 = vmul.f32 %v178, 0.5
  %v206 = vmul.f32 %v180, 0.5
  %v207 = vmul.f32 %v183, 0.5
  %v208 = vmul.f32 %v185, 0.5
  %v209 = vmul.f32 %v188, 0.5
  %v210 = vmul.f32 %v190, 0.5
  %v211 = vmul.f32 %v193, 0.5
  %v212 = vmul.f32 %v195, 0.5
  %v213 = vmul.f32 %v158, 0.70710677
  %v214 = vmul.f32 %v160, 0.70710677
  %v215 = vmul.f32 %v163, 0.70710677
  %v216 = vmul.f32 %v165, 0.70710677
  %v217 = vmul.f32 %v168, 0.70710677
  %v218 = vmul.f32 %v170, 0.70710677
  %v219 = vmul.f32 %v173, 0.70710677
  %v220 = vmul.f32 %v175, 0.70710677
  %v221 = vmul.f32 %v178, 0.70710677
  %v222 = vmul.f32 %v180, 0.70710677
  %v223 = vmul.f32 %v183, 0.70710677
  %v224 = vmul.f32 %v185, 0.70710677
  %v225 = vmul.f32 %v188, 0.70710677
  %v226 = vmul.f32 %v190, 0.70710677
  %v227 = vmul.f32 %v193, 0.70710677
  %v228 = vmul.f32 %v195, 0.70710677
  %v229 = vmul.f32 %v213, %v213
  %v230 = vmin.f32 16.0, %v229
  %v231 = vmul.f32 %v230, 2.1237322e-06
  %v232 = vadd.f32 %v231, 0.00028619796
  %v233 = vmul.f32 %v230, %v232
  %v234 = vadd.f32 %v233, 0.0036580483
  %v235 = vmul.f32 %v230, %v234
  %v236 = vadd.f32 %v235, 0.05243302
  %v237 = vmul.f32 %v230, %v236
  %v238 = vadd.f32 %v237, 0.18741608
  %v239 = vmul.f32 %v230, %v238
  %v240 = vadd.f32 %v239, 1.1283791
  %v241 = vmul.f32 %v213, %v240
  %v242 = vmul.f32 %v230, 3.8918573e-05
  %v243 = vadd.f32 %v242, 0.001143296
  %v244 = vmul.f32 %v230, %v243
  %v245 = vadd.f32 %v244, 0.014752088
  %v246 = vmul.f32 %v230, %v245
  %v247 = vadd.f32 %v246, 0.112945676
  %v248 = vmul.f32 %v230, %v247
  %v249 = vadd.f32 %v248, 0.4994258
  %v250 = vmul.f32 %v230, %v249
  %v251 = vadd.f32 %v250, 1.0
  %v252 = vrcp.pop %v251
  %v253 = vmul.f32 %v251, %v252
  %v254 = vsub.f32 1.0, %v253
  %v255 = vmul.f32 %v252, %v254
  %v256 = vadd.f32 %v252, %v255
  %vm257 = vweird.f32 %v251
  %vm258 = vweird.f32 %v252
  %vm259 = vmor %vm257, %vm258
  %v260 = vsel %vm259, %v252, %v256
  %v261 = vand.u32 2147483647, %v251
  %vm262 = vcmp.eq.f32.partialorder %v261, 8.507059e+37
  %v263 = vand.u32 %v251, 2147483648
  %v264 = vor.u32 1.1754944e-38, %v263
  %v265 = vsel %vm262, %v264, %v260
  %v266 = vmul.f32 %v241, %v265
  %v267 = vmin.f32 %v266, 1.0
  %v268 = vmax.f32 %v267, -1.0
  %v269 = vmul.f32 %v214, %v214
  %v270 = vmin.f32 16.0, %v269
  %v271 = vmul.f32 %v270, 2.1237322e-06
  %v272 = vadd.f32 %v271, 0.00028619796
  %v273 = vmul.f32 %v270, %v272
  %v274 = vadd.f32 %v273, 0.0036580483
  %v275 = vmul.f32 %v270, %v274
  %v276 = vadd.f32 %v275, 0.05243302
  %v277 = vmul.f32 %v270, %v276
  %v278 = vadd.f32 %v277, 0.18741608
  %v279 = vmul.f32 %v270, %v278
  %v280 = vadd.f32 %v279, 1.1283791
  %v281 = vmul.f32 %v214, %v280
  %v282 = vmul.f32 %v270, 3.8918573e-05
  %v283 = vadd.f32 %v282, 0.001143296
  %v284 = vmul.f32 %v270, %v283
  %v285 = vadd.f32 %v284, 0.014752088
  %v286 = vmul.f32 %v270, %v285
  %v287 = vadd.f32 %v286, 0.112945676
  %v288 = vmul.f32 %v270, %v287
  %v289 = vadd.f32 %v288, 0.4994258
  %v290 = vmul.f32 %v270, %v289
  %v291 = vadd.f32 %v290, 1.0
  %v292 = vrcp.pop %v291
  %v293 = vmul.f32 %v291, %v292
  %v294 = vsub.f32 1.0, %v293
  %v295 = vmul.f32 %v292, %v294
  %v296 = vadd.f32 %v292, %v295
  %vm297 = vweird.f32 %v291
  %vm298 = vweird.f32 %v292
  %vm299 = vmor %vm297, %vm298
  %v300 = vsel %vm299, %v292, %v296
  %v301 = vand.u32 2147483647, %v291
  %vm302 = vcmp.eq.f32.partialorder %v301, 8.507059e+37
  %v303 = vand.u32 %v291, 2147483648
  %v304 = vor.u32 1.1754944e-38, %v303
  %v305 = vsel %vm302, %v304, %v300
  %v306 = vmul.f32 %v281, %v305
  %v307 = vmin.f32 %v306, 1.0
  %v308 = vmax.f32 %v307, -1.0
  %v309 = vmul.f32 %v215, %v215
  %v310 = vmin.f32 16.0, %v309
  %v311 = vmul.f32 %v310, 2.1237322e-06
  %v312 = vadd.f32 %v311, 0.00028619796
  %v313 = vmul.f32 %v310, %v312
  %v314 = vadd.f32 %v313, 0.0036580483
  %v315 = vmul.f32 %v310, %v314
  %v316 = vadd.f32 %v315, 0.05243302
  %v317 = vmul.f32 %v310, %v316
  %v318 = vadd.f32 %v317, 0.18741608
  %v319 = vmul.f32 %v310, %v318
  %v320 = vadd.f32 %v319, 1.1283791
  %v321 = vmul.f32 %v215, %v320
  %v322 = vmul.f32 %v310, 3.8918573e-05
  %v323 = vadd.f32 %v322, 0.001143296
  %v324 = vmul.f32 %v310, %v323
  %v325 = vadd.f32 %v324, 0.014752088
  %v326 = vmul.f32 %v310, %v325
  %v327 = vadd.f32 %v326, 0.112945676
  %v328 = vmul.f32 %v310, %v327
  %v329 = vadd.f32 %v328, 0.4994258
  %v330 = vmul.f32 %v310, %v329
  %v331 = vadd.f32 %v330, 1.0
  %v332 = vrcp.pop %v331
  %v333 = vmul.f32 %v331, %v332
  %v334 = vsub.f32 1.0, %v333
  %v335 = vmul.f32 %v332, %v334
  %v336 = vadd.f32 %v332, %v335
  %vm337 = vweird.f32 %v331
  %vm338 = vweird.f32 %v332
  %vm339 = vmor %vm337, %vm338
  %v340 = vsel %vm339, %v332, %v336
  %v341 = vand.u32 2147483647, %v331
  %vm342 = vcmp.eq.f32.partialorder %v341, 8.507059e+37
  %v343 = vand.u32 %v331, 2147483648
  %v344 = vor.u32 1.1754944e-38, %v343
  %v345 = vsel %vm342, %v344, %v340
  %v346 = vmul.f32 %v321, %v345
  %v347 = vmin.f32 %v346, 1.0
  %v348 = vmax.f32 %v347, -1.0
  %v349 = vmul.f32 %v216, %v216
  %v350 = vmin.f32 16.0, %v349
  %v351 = vmul.f32 %v350, 2.1237322e-06
  %v352 = vadd.f32 %v351, 0.00028619796
  %v353 = vmul.f32 %v350, %v352
  %v354 = vadd.f32 %v353, 0.0036580483
  %v355 = vmul.f32 %v350, %v354
  %v356 = vadd.f32 %v355, 0.05243302
  %v357 = vmul.f32 %v350, %v356
  %v358 = vadd.f32 %v357, 0.18741608
  %v359 = vmul.f32 %v350, %v358
  %v360 = vadd.f32 %v359, 1.1283791
  %v361 = vmul.f32 %v216, %v360
  %v362 = vmul.f32 %v350, 3.8918573e-05
  %v363 = vadd.f32 %v362, 0.001143296
  %v364 = vmul.f32 %v350, %v363
  %v365 = vadd.f32 %v364, 0.014752088
  %v366 = vmul.f32 %v350, %v365
  %v367 = vadd.f32 %v366, 0.112945676
  %v368 = vmul.f32 %v350, %v367
  %v369 = vadd.f32 %v368, 0.4994258
  %v370 = vmul.f32 %v350, %v369
  %v371 = vadd.f32 %v370, 1.0
  %v372 = vrcp.pop %v371
  %v373 = vmul.f32 %v371, %v372
  %v374 = vsub.f32 1.0, %v373
  %v375 = vmul.f32 %v372, %v374
  %v376 = vadd.f32 %v372, %v375
  %vm377 = vweird.f32 %v371
  %vm378 = vweird.f32 %v372
  %vm379 = vmor %vm377, %vm378
  %v380 = vsel %vm379, %v372, %v376
  %v381 = vand.u32 2147483647, %v371
  %vm382 = vcmp.eq.f32.partialorder %v381, 8.507059e+37
  %v383 = vand.u32 %v371, 2147483648
  %v384 = vor.u32 1.1754944e-38, %v383
  %v385 = vsel %vm382, %v384, %v380
  %v386 = vmul.f32 %v361, %v385
  %v387 = vmin.f32 %v386, 1.0
  %v388 = vmax.f32 %v387, -1.0
  %v389 = vmul.f32 %v217, %v217
  %v390 = vmin.f32 16.0, %v389
  %v391 = vmul.f32 %v390, 2.1237322e-06
  %v392 = vadd.f32 %v391, 0.00028619796
  %v393 = vmul.f32 %v390, %v392
  %v394 = vadd.f32 %v393, 0.0036580483
  %v395 = vmul.f32 %v390, %v394
  %v396 = vadd.f32 %v395, 0.05243302
  %v397 = vmul.f32 %v390, %v396
  %v398 = vadd.f32 %v397, 0.18741608
  %v399 = vmul.f32 %v390, %v398
  %v400 = vadd.f32 %v399, 1.1283791
  %v401 = vmul.f32 %v217, %v400
  %v402 = vmul.f32 %v390, 3.8918573e-05
  %v403 = vadd.f32 %v402, 0.001143296
  %v404 = vmul.f32 %v390, %v403
  %v405 = vadd.f32 %v404, 0.014752088
  %v406 = vmul.f32 %v390, %v405
  %v407 = vadd.f32 %v406, 0.112945676
  %v408 = vmul.f32 %v390, %v407
  %v409 = vadd.f32 %v408, 0.4994258
  %v410 = vmul.f32 %v390, %v409
  %v411 = vadd.f32 %v410, 1.0
  %v412 = vrcp.pop %v411
  %v413 = vmul.f32 %v411, %v412
  %v414 = vsub.f32 1.0, %v413
  %v415 = vmul.f32 %v412, %v414
  %v416 = vadd.f32 %v412, %v415
  %vm417 = vweird.f32 %v411
  %vm418 = vweird.f32 %v412
  %vm419 = vmor %vm417, %vm418
  %v420 = vsel %vm419, %v412, %v416
  %v421 = vand.u32 2147483647, %v411
  %vm422 = vcmp.eq.f32.partialorder %v421, 8.507059e+37
  %v423 = vand.u32 %v411, 2147483648
  %v424 = vor.u32 1.1754944e-38, %v423
  %v425 = vsel %vm422, %v424, %v420
  %v426 = vmul.f32 %v401, %v425
  %v427 = vmin.f32 %v426, 1.0
  %v428 = vmax.f32 %v427, -1.0
  %v429 = vmul.f32 %v218, %v218
  %v430 = vmin.f32 16.0, %v429
  %v431 = vmul.f32 %v430, 2.1237322e-06
  %v432 = vadd.f32 %v431, 0.00028619796
  %v433 = vmul.f32 %v430, %v432
  %v434 = vadd.f32 %v433, 0.0036580483
  %v435 = vmul.f32 %v430, %v434
  %v436 = vadd.f32 %v435, 0.05243302
  %v437 = vmul.f32 %v430, %v436
  %v438 = vadd.f32 %v437, 0.18741608
  %v439 = vmul.f32 %v430, %v438
  %v440 = vadd.f32 %v439, 1.1283791
  %v441 = vmul.f32 %v218, %v440
  %v442 = vmul.f32 %v430, 3.8918573e-05
  %v443 = vadd.f32 %v442, 0.001143296
  %v444 = vmul.f32 %v430, %v443
  %v445 = vadd.f32 %v444, 0.014752088
  %v446 = vmul.f32 %v430, %v445
  %v447 = vadd.f32 %v446, 0.112945676
  %v448 = vmul.f32 %v430, %v447
  %v449 = vadd.f32 %v448, 0.4994258
  %v450 = vmul.f32 %v430, %v449
  %v451 = vadd.f32 %v450, 1.0
  %v452 = vrcp.pop %v451
  %v453 = vmul.f32 %v451, %v452
  %v454 = vsub.f32 1.0, %v453
  %v455 = vmul.f32 %v452, %v454
  %v456 = vadd.f32 %v452, %v455
  %vm457 = vweird.f32 %v451
  %vm458 = vweird.f32 %v452
  %vm459 = vmor %vm457, %vm458
  %v460 = vsel %vm459, %v452, %v456
  %v461 = vand.u32 2147483647, %v451
  %vm462 = vcmp.eq.f32.partialorder %v461, 8.507059e+37
  %v463 = vand.u32 %v451, 2147483648
  %v464 = vor.u32 1.1754944e-38, %v463
  %v465 = vsel %vm462, %v464, %v460
  %v466 = vmul.f32 %v441, %v465
  %v467 = vmin.f32 %v466, 1.0
  %v468 = vmax.f32 %v467, -1.0
  %v469 = vmul.f32 %v219, %v219
  %v470 = vmin.f32 16.0, %v469
  %v471 = vmul.f32 %v470, 2.1237322e-06
  %v472 = vadd.f32 %v471, 0.00028619796
  %v473 = vmul.f32 %v470, %v472
  %v474 = vadd.f32 %v473, 0.0036580483
  %v475 = vmul.f32 %v470, %v474
  %v476 = vadd.f32 %v475, 0.05243302
  %v477 = vmul.f32 %v470, %v476
  %v478 = vadd.f32 %v477, 0.18741608
  %v479 = vmul.f32 %v470, %v478
  %v480 = vadd.f32 %v479, 1.1283791
  %v481 = vmul.f32 %v219, %v480
  %v482 = vmul.f32 %v470, 3.8918573e-05
  %v483 = vadd.f32 %v482, 0.001143296
  %v484 = vmul.f32 %v470, %v483
  %v485 = vadd.f32 %v484, 0.014752088
  %v486 = vmul.f32 %v470, %v485
  %v487 = vadd.f32 %v486, 0.112945676
  %v488 = vmul.f32 %v470, %v487
  %v489 = vadd.f32 %v488, 0.4994258
  %v490 = vmul.f32 %v470, %v489
  %v491 = vadd.f32 %v490, 1.0
  %v492 = vrcp.pop %v491
  %v493 = vmul.f32 %v491, %v492
  %v494 = vsub.f32 1.0, %v493
  %v495 = vmul.f32 %v492, %v494
  %v496 = vadd.f32 %v492, %v495
  %vm497 = vweird.f32 %v491
  %vm498 = vweird.f32 %v492
  %vm499 = vmor %vm497, %vm498
  %v500 = vsel %vm499, %v492, %v496
  %v501 = vand.u32 2147483647, %v491
  %vm502 = vcmp.eq.f32.partialorder %v501, 8.507059e+37
  %v503 = vand.u32 %v491, 2147483648
  %v504 = vor.u32 1.1754944e-38, %v503
  %v505 = vsel %vm502, %v504, %v500
  %v506 = vmul.f32 %v481, %v505
  %v507 = vmin.f32 %v506, 1.0
  %v508 = vmax.f32 %v507, -1.0
  %v509 = vmul.f32 %v220, %v220
  %v510 = vmin.f32 16.0, %v509
  %v511 = vmul.f32 %v510, 2.1237322e-06
  %v512 = vadd.f32 %v511, 0.00028619796
  %v513 = vmul.f32 %v510, %v512
  %v514 = vadd.f32 %v513, 0.0036580483
  %v515 = vmul.f32 %v510, %v514
  %v516 = vadd.f32 %v515, 0.05243302
  %v517 = vmul.f32 %v510, %v516
  %v518 = vadd.f32 %v517, 0.18741608
  %v519 = vmul.f32 %v510, %v518
  %v520 = vadd.f32 %v519, 1.1283791
  %v521 = vmul.f32 %v220, %v520
  %v522 = vmul.f32 %v510, 3.8918573e-05
  %v523 = vadd.f32 %v522, 0.001143296
  %v524 = vmul.f32 %v510, %v523
  %v525 = vadd.f32 %v524, 0.014752088
  %v526 = vmul.f32 %v510, %v525
  %v527 = vadd.f32 %v526, 0.112945676
  %v528 = vmul.f32 %v510, %v527
  %v529 = vadd.f32 %v528, 0.4994258
  %v530 = vmul.f32 %v510, %v529
  %v531 = vadd.f32 %v530, 1.0
  %v532 = vrcp.pop %v531
  %v533 = vmul.f32 %v531, %v532
  %v534 = vsub.f32 1.0, %v533
  %v535 = vmul.f32 %v532, %v534
  %v536 = vadd.f32 %v532, %v535
  %vm537 = vweird.f32 %v531
  %vm538 = vweird.f32 %v532
  %vm539 = vmor %vm537, %vm538
  %v540 = vsel %vm539, %v532, %v536
  %v541 = vand.u32 2147483647, %v531
  %vm542 = vcmp.eq.f32.partialorder %v541, 8.507059e+37
  %v543 = vand.u32 %v531, 2147483648
  %v544 = vor.u32 1.1754944e-38, %v543
  %v545 = vsel %vm542, %v544, %v540
  %v546 = vmul.f32 %v521, %v545
  %v547 = vmin.f32 %v546, 1.0
  %v548 = vmax.f32 %v547, -1.0
  %v549 = vmul.f32 %v221, %v221
  %v550 = vmin.f32 16.0, %v549
  %v551 = vmul.f32 %v550, 2.1237322e-06
  %v552 = vadd.f32 %v551, 0.00028619796
  %v553 = vmul.f32 %v550, %v552
  %v554 = vadd.f32 %v553, 0.0036580483
  %v555 = vmul.f32 %v550, %v554
  %v556 = vadd.f32 %v555, 0.05243302
  %v557 = vmul.f32 %v550, %v556
  %v558 = vadd.f32 %v557, 0.18741608
  %v559 = vmul.f32 %v550, %v558
  %v560 = vadd.f32 %v559, 1.1283791
  %v561 = vmul.f32 %v221, %v560
  %v562 = vmul.f32 %v550, 3.8918573e-05
  %v563 = vadd.f32 %v562, 0.001143296
  %v564 = vmul.f32 %v550, %v563
  %v565 = vadd.f32 %v564, 0.014752088
  %v566 = vmul.f32 %v550, %v565
  %v567 = vadd.f32 %v566, 0.112945676
  %v568 = vmul.f32 %v550, %v567
  %v569 = vadd.f32 %v568, 0.4994258
  %v570 = vmul.f32 %v550, %v569
  %v571 = vadd.f32 %v570, 1.0
  %v572 = vrcp.pop %v571
  %v573 = vmul.f32 %v571, %v572
  %v574 = vsub.f32 1.0, %v573
  %v575 = vmul.f32 %v572, %v574
  %v576 = vadd.f32 %v572, %v575
  %vm577 = vweird.f32 %v571
  %vm578 = vweird.f32 %v572
  %vm579 = vmor %vm577, %vm578
  %v580 = vsel %vm579, %v572, %v576
  %v581 = vand.u32 2147483647, %v571
  %vm582 = vcmp.eq.f32.partialorder %v581, 8.507059e+37
  %v583 = vand.u32 %v571, 2147483648
  %v584 = vor.u32 1.1754944e-38, %v583
  %v585 = vsel %vm582, %v584, %v580
  %v586 = vmul.f32 %v561, %v585
  %v587 = vmin.f32 %v586, 1.0
  %v588 = vmax.f32 %v587, -1.0
  %v589 = vmul.f32 %v222, %v222
  %v590 = vmin.f32 16.0, %v589
  %v591 = vmul.f32 %v590, 2.1237322e-06
  %v592 = vadd.f32 %v591, 0.00028619796
  %v593 = vmul.f32 %v590, %v592
  %v594 = vadd.f32 %v593, 0.0036580483
  %v595 = vmul.f32 %v590, %v594
  %v596 = vadd.f32 %v595, 0.05243302
  %v597 = vmul.f32 %v590, %v596
  %v598 = vadd.f32 %v597, 0.18741608
  %v599 = vmul.f32 %v590, %v598
  %v600 = vadd.f32 %v599, 1.1283791
  %v601 = vmul.f32 %v222, %v600
  %v602 = vmul.f32 %v590, 3.8918573e-05
  %v603 = vadd.f32 %v602, 0.001143296
  %v604 = vmul.f32 %v590, %v603
  %v605 = vadd.f32 %v604, 0.014752088
  %v606 = vmul.f32 %v590, %v605
  %v607 = vadd.f32 %v606, 0.112945676
  %v608 = vmul.f32 %v590, %v607
  %v609 = vadd.f32 %v608, 0.4994258
  %v610 = vmul.f32 %v590, %v609
  %v611 = vadd.f32 %v610, 1.0
  %v612 = vrcp.pop %v611
  %v613 = vmul.f32 %v611, %v612
  %v614 = vsub.f32 1.0, %v613
  %v615 = vmul.f32 %v612, %v614
  %v616 = vadd.f32 %v612, %v615
  %vm617 = vweird.f32 %v611
  %vm618 = vweird.f32 %v612
  %vm619 = vmor %vm617, %vm618
  %v620 = vsel %vm619, %v612, %v616
  %v621 = vand.u32 2147483647, %v611
  %vm622 = vcmp.eq.f32.partialorder %v621, 8.507059e+37
  %v623 = vand.u32 %v611, 2147483648
  %v624 = vor.u32 1.1754944e-38, %v623
  %v625 = vsel %vm622, %v624, %v620
  %v626 = vmul.f32 %v601, %v625
  %v627 = vmin.f32 %v626, 1.0
  %v628 = vmax.f32 %v627, -1.0
  %v629 = vmul.f32 %v223, %v223
  %v630 = vmin.f32 16.0, %v629
  %v631 = vmul.f32 %v630, 2.1237322e-06
  %v632 = vadd.f32 %v631, 0.00028619796
  %v633 = vmul.f32 %v630, %v632
  %v634 = vadd.f32 %v633, 0.0036580483
  %v635 = vmul.f32 %v630, %v634
  %v636 = vadd.f32 %v635, 0.05243302
  %v637 = vmul.f32 %v630, %v636
  %v638 = vadd.f32 %v637, 0.18741608
  %v639 = vmul.f32 %v630, %v638
  %v640 = vadd.f32 %v639, 1.1283791
  %v641 = vmul.f32 %v223, %v640
  %v642 = vmul.f32 %v630, 3.8918573e-05
  %v643 = vadd.f32 %v642, 0.001143296
  %v644 = vmul.f32 %v630, %v643
  %v645 = vadd.f32 %v644, 0.014752088
  %v646 = vmul.f32 %v630, %v645
  %v647 = vadd.f32 %v646, 0.112945676
  %v648 = vmul.f32 %v630, %v647
  %v649 = vadd.f32 %v648, 0.4994258
  %v650 = vmul.f32 %v630, %v649
  %v651 = vadd.f32 %v650, 1.0
  %v652 = vrcp.pop %v651
  %v653 = vmul.f32 %v651, %v652
  %v654 = vsub.f32 1.0, %v653
  %v655 = vmul.f32 %v652, %v654
  %v656 = vadd.f32 %v652, %v655
  %vm657 = vweird.f32 %v651
  %vm658 = vweird.f32 %v652
  %vm659 = vmor %vm657, %vm658
  %v660 = vsel %vm659, %v652, %v656
  %v661 = vand.u32 2147483647, %v651
  %vm662 = vcmp.eq.f32.partialorder %v661, 8.507059e+37
  %v663 = vand.u32 %v651, 2147483648
  %v664 = vor.u32 1.1754944e-38, %v663
  %v665 = vsel %vm662, %v664, %v660
  %v666 = vmul.f32 %v641, %v665
  %v667 = vmin.f32 %v666, 1.0
  %v668 = vmax.f32 %v667, -1.0
  %v669 = vmul.f32 %v224, %v224
  %v670 = vmin.f32 16.0, %v669
  %v671 = vmul.f32 %v670, 2.1237322e-06
  %v672 = vadd.f32 %v671, 0.00028619796
  %v673 = vmul.f32 %v670, %v672
  %v674 = vadd.f32 %v673, 0.0036580483
  %v675 = vmul.f32 %v670, %v674
  %v676 = vadd.f32 %v675, 0.05243302
  %v677 = vmul.f32 %v670, %v676
  %v678 = vadd.f32 %v677, 0.18741608
  %v679 = vmul.f32 %v670, %v678
  %v680 = vadd.f32 %v679, 1.1283791
  %v681 = vmul.f32 %v224, %v680
  %v682 = vmul.f32 %v670, 3.8918573e-05
  %v683 = vadd.f32 %v682, 0.001143296
  %v684 = vmul.f32 %v670, %v683
  %v685 = vadd.f32 %v684, 0.014752088
  %v686 = vmul.f32 %v670, %v685
  %v687 = vadd.f32 %v686, 0.112945676
  %v688 = vmul.f32 %v670, %v687
  %v689 = vadd.f32 %v688, 0.4994258
  %v690 = vmul.f32 %v670, %v689
  %v691 = vadd.f32 %v690, 1.0
  %v692 = vrcp.pop %v691
  %v693 = vmul.f32 %v691, %v692
  %v694 = vsub.f32 1.0, %v693
  %v695 = vmul.f32 %v692, %v694
  %v696 = vadd.f32 %v692, %v695
  %vm697 = vweird.f32 %v691
  %vm698 = vweird.f32 %v692
  %vm699 = vmor %vm697, %vm698
  %v700 = vsel %vm699, %v692, %v696
  %v701 = vand.u32 2147483647, %v691
  %vm702 = vcmp.eq.f32.partialorder %v701, 8.507059e+37
  %v703 = vand.u32 %v691, 2147483648
  %v704 = vor.u32 1.1754944e-38, %v703
  %v705 = vsel %vm702, %v704, %v700
  %v706 = vmul.f32 %v681, %v705
  %v707 = vmin.f32 %v706, 1.0
  %v708 = vmax.f32 %v707, -1.0
  %v709 = vmul.f32 %v225, %v225
  %v710 = vmin.f32 16.0, %v709
  %v711 = vmul.f32 %v710, 2.1237322e-06
  %v712 = vadd.f32 %v711, 0.00028619796
  %v713 = vmul.f32 %v710, %v712
  %v714 = vadd.f32 %v713, 0.0036580483
  %v715 = vmul.f32 %v710, %v714
  %v716 = vadd.f32 %v715, 0.05243302
  %v717 = vmul.f32 %v710, %v716
  %v718 = vadd.f32 %v717, 0.18741608
  %v719 = vmul.f32 %v710, %v718
  %v720 = vadd.f32 %v719, 1.1283791
  %v721 = vmul.f32 %v225, %v720
  %v722 = vmul.f32 %v710, 3.8918573e-05
  %v723 = vadd.f32 %v722, 0.001143296
  %v724 = vmul.f32 %v710, %v723
  %v725 = vadd.f32 %v724, 0.014752088
  %v726 = vmul.f32 %v710, %v725
  %v727 = vadd.f32 %v726, 0.112945676
  %v728 = vmul.f32 %v710, %v727
  %v729 = vadd.f32 %v728, 0.4994258
  %v730 = vmul.f32 %v710, %v729
  %v731 = vadd.f32 %v730, 1.0
  %v732 = vrcp.pop %v731
  %v733 = vmul.f32 %v731, %v732
  %v734 = vsub.f32 1.0, %v733
  %v735 = vmul.f32 %v732, %v734
  %v736 = vadd.f32 %v732, %v735
  %vm737 = vweird.f32 %v731
  %vm738 = vweird.f32 %v732
  %vm739 = vmor %vm737, %vm738
  %v740 = vsel %vm739, %v732, %v736
  %v741 = vand.u32 2147483647, %v731
  %vm742 = vcmp.eq.f32.partialorder %v741, 8.507059e+37
  %v743 = vand.u32 %v731, 2147483648
  %v744 = vor.u32 1.1754944e-38, %v743
  %v745 = vsel %vm742, %v744, %v740
  %v746 = vmul.f32 %v721, %v745
  %v747 = vmin.f32 %v746, 1.0
  %v748 = vmax.f32 %v747, -1.0
  %v749 = vmul.f32 %v226, %v226
  %v750 = vmin.f32 16.0, %v749
  %v751 = vmul.f32 %v750, 2.1237322e-06
  %v752 = vadd.f32 %v751, 0.00028619796
  %v753 = vmul.f32 %v750, %v752
  %v754 = vadd.f32 %v753, 0.0036580483
  %v755 = vmul.f32 %v750, %v754
  %v756 = vadd.f32 %v755, 0.05243302
  %v757 = vmul.f32 %v750, %v756
  %v758 = vadd.f32 %v757, 0.18741608
  %v759 = vmul.f32 %v750, %v758
  %v760 = vadd.f32 %v759, 1.1283791
  %v761 = vmul.f32 %v226, %v760
  %v762 = vmul.f32 %v750, 3.8918573e-05
  %v763 = vadd.f32 %v762, 0.001143296
  %v764 = vmul.f32 %v750, %v763
  %v765 = vadd.f32 %v764, 0.014752088
  %v766 = vmul.f32 %v750, %v765
  %v767 = vadd.f32 %v766, 0.112945676
  %v768 = vmul.f32 %v750, %v767
  %v769 = vadd.f32 %v768, 0.4994258
  %v770 = vmul.f32 %v750, %v769
  %v771 = vadd.f32 %v770, 1.0
  %v772 = vrcp.pop %v771
  %v773 = vmul.f32 %v771, %v772
  %v774 = vsub.f32 1.0, %v773
  %v775 = vmul.f32 %v772, %v774
  %v776 = vadd.f32 %v772, %v775
  %vm777 = vweird.f32 %v771
  %vm778 = vweird.f32 %v772
  %vm779 = vmor %vm777, %vm778
  %v780 = vsel %vm779, %v772, %v776
  %v781 = vand.u32 2147483647, %v771
  %vm782 = vcmp.eq.f32.partialorder %v781, 8.507059e+37
  %v783 = vand.u32 %v771, 2147483648
  %v784 = vor.u32 1.1754944e-38, %v783
  %v785 = vsel %vm782, %v784, %v780
  %v786 = vmul.f32 %v761, %v785
  %v787 = vmin.f32 %v786, 1.0
  %v788 = vmax.f32 %v787, -1.0
  %v789 = vmul.f32 %v227, %v227
  %v790 = vmin.f32 16.0, %v789
  %v791 = vmul.f32 %v790, 2.1237322e-06
  %v792 = vadd.f32 %v791, 0.00028619796
  %v793 = vmul.f32 %v790, %v792
  %v794 = vadd.f32 %v793, 0.0036580483
  %v795 = vmul.f32 %v790, %v794
  %v796 = vadd.f32 %v795, 0.05243302
  %v797 = vmul.f32 %v790, %v796
  %v798 = vadd.f32 %v797, 0.18741608
  %v799 = vmul.f32 %v790, %v798
  %v800 = vadd.f32 %v799, 1.1283791
  %v801 = vmul.f32 %v227, %v800
  %v802 = vmul.f32 %v790, 3.8918573e-05
  %v803 = vadd.f32 %v802, 0.001143296
  %v804 = vmul.f32 %v790, %v803
  %v805 = vadd.f32 %v804, 0.014752088
  %v806 = vmul.f32 %v790, %v805
  %v807 = vadd.f32 %v806, 0.112945676
  %v808 = vmul.f32 %v790, %v807
  %v809 = vadd.f32 %v808, 0.4994258
  %v810 = vmul.f32 %v790, %v809
  %v811 = vadd.f32 %v810, 1.0
  %v812 = vrcp.pop %v811
  %v813 = vmul.f32 %v811, %v812
  %v814 = vsub.f32 1.0, %v813
  %v815 = vmul.f32 %v812, %v814
  %v816 = vadd.f32 %v812, %v815
  %vm817 = vweird.f32 %v811
  %vm818 = vweird.f32 %v812
  %vm819 = vmor %vm817, %vm818
  %v820 = vsel %vm819, %v812, %v816
  %v821 = vand.u32 2147483647, %v811
  %vm822 = vcmp.eq.f32.partialorder %v821, 8.507059e+37
  %v823 = vand.u32 %v811, 2147483648
  %v824 = vor.u32 1.1754944e-38, %v823
  %v825 = vsel %vm822, %v824, %v820
  %v826 = vmul.f32 %v801, %v825
  %v827 = vmin.f32 %v826, 1.0
  %v828 = vmax.f32 %v827, -1.0
  %v829 = vmul.f32 %v228, %v228
  %v830 = vmin.f32 16.0, %v829
  %v831 = vmul.f32 %v830, 2.1237322e-06
  %v832 = vadd.f32 %v831, 0.00028619796
  %v833 = vmul.f32 %v830, %v832
  %v834 = vadd.f32 %v833, 0.0036580483
  %v835 = vmul.f32 %v830, %v834
  %v836 = vadd.f32 %v835, 0.05243302
  %v837 = vmul.f32 %v830, %v836
  %v838 = vadd.f32 %v837, 0.18741608
  %v839 = vmul.f32 %v830, %v838
  %v840 = vadd.f32 %v839, 1.1283791
  %v841 = vmul.f32 %v228, %v840
  %v842 = vmul.f32 %v830, 3.8918573e-05
  %v843 = vadd.f32 %v842, 0.001143296
  %v844 = vmul.f32 %v830, %v843
  %v845 = vadd.f32 %v844, 0.014752088
  %v846 = vmul.f32 %v830, %v845
  %v847 = vadd.f32 %v846, 0.112945676
  %v848 = vmul.f32 %v830, %v847
  %v849 = vadd.f32 %v848, 0.4994258
  %v850 = vmul.f32 %v830, %v849
  %v851 = vadd.f32 %v850, 1.0
  %v852 = vrcp.pop %v851
  %v853 = vmul.f32 %v851, %v852
  %v854 = vsub.f32 1.0, %v853
  %v855 = vmul.f32 %v852, %v854
  %v856 = vadd.f32 %v852, %v855
  %vm857 = vweird.f32 %v851
  %vm858 = vweird.f32 %v852
  %vm859 = vmor %vm857, %vm858
  %v860 = vsel %vm859, %v852, %v856
  %v861 = vand.u32 2147483647, %v851
  %vm862 = vcmp.eq.f32.partialorder %v861, 8.507059e+37
  %v863 = vand.u32 %v851, 2147483648
  %v864 = vor.u32 1.1754944e-38, %v863
  %v865 = vsel %vm862, %v864, %v860
  %v866 = vmul.f32 %v841, %v865
  %v867 = vmin.f32 %v866, 1.0
  %v868 = vmax.f32 %v867, -1.0
  %v869 = vadd.f32 %v268, 1.0
  %v870 = vadd.f32 %v308, 1.0
  %v871 = vadd.f32 %v348, 1.0
  %v872 = vadd.f32 %v388, 1.0
  %v873 = vadd.f32 %v428, 1.0
  %v874 = vadd.f32 %v468, 1.0
  %v875 = vadd.f32 %v508, 1.0
  %v876 = vadd.f32 %v548, 1.0
  %v877 = vadd.f32 %v588, 1.0
  %v878 = vadd.f32 %v628, 1.0
  %v879 = vadd.f32 %v668, 1.0
  %v880 = vadd.f32 %v708, 1.0
  %v881 = vadd.f32 %v748, 1.0
  %v882 = vadd.f32 %v788, 1.0
  %v883 = vadd.f32 %v828, 1.0
  %v884 = vadd.f32 %v868, 1.0
  %v885 = vmul.f32 %v197, %v869
  %v886 = vmul.f32 %v198, %v870
  %v887 = vmul.f32 %v199, %v871
  %v888 = vmul.f32 %v200, %v872
  %v889 = vmul.f32 %v201, %v873
  %v890 = vmul.f32 %v202, %v874
  %v891 = vmul.f32 %v203, %v875
  %v892 = vmul.f32 %v204, %v876
  %v893 = vmul.f32 %v205, %v877
  %v894 = vmul.f32 %v206, %v878
  %v895 = vmul.f32 %v207, %v879
  %v896 = vmul.f32 %v208, %v880
  %v897 = vmul.f32 %v209, %v881
  %v898 = vmul.f32 %v210, %v882
  %v899 = vmul.f32 %v211, %v883
  %v900 = vmul.f32 %v212, %v884
  %901 = vadd.xlane.f32.xlu0 %v885
  %v902 = vpop.xlane.xlu0 %901
  %903 = vadd.xlane.f32.xlu0 %v886
  %v904 = vpop.xlane.xlu0 %903
  %905 = vadd.xlane.f32.xlu0 %v887
  %v906 = vpop.xlane.xlu0 %905
  %907 = vadd.xlane.f32.xlu0 %v888
  %v908 = vpop.xlane.xlu0 %907
  %909 = vadd.xlane.f32.xlu0 %v889
  %v910 = vpop.xlane.xlu0 %909
  %911 = vadd.xlane.f32.xlu0 %v890
  %v912 = vpop.xlane.xlu0 %911
  %913 = vadd.xlane.f32.xlu0 %v891
  %v914 = vpop.xlane.xlu0 %913
  %915 = vadd.xlane.f32.xlu0 %v892
  %v916 = vpop.xlane.xlu0 %915
  %917 = vadd.xlane.f32.xlu0 %v893
  %v918 = vpop.xlane.xlu0 %917
  %919 = vadd.xlane.f32.xlu0 %v894
  %v920 = vpop.xlane.xlu0 %919
  %921 = vadd.xlane.f32.xlu0 %v895
  %v922 = vpop.xlane.xlu0 %921
  %923 = vadd.xlane.f32.xlu0 %v896
  %v924 = vpop.xlane.xlu0 %923
  %925 = vadd.xlane.f32.xlu0 %v897
  %v926 = vpop.xlane.xlu0 %925
  %927 = vadd.xlane.f32.xlu0 %v898
  %v928 = vpop.xlane.xlu0 %927
  %929 = vadd.xlane.f32.xlu0 %v899
  %v930 = vpop.xlane.xlu0 %929
  %931 = vadd.xlane.f32.xlu0 %v900
  %v932 = vpop.xlane.xlu0 %931
  %v933 = vmul.f32 %v902, 0.03125
  %v934 = vmul.f32 %v904, 0.03125
  %v935 = vmul.f32 %v906, 0.03125
  %v936 = vmul.f32 %v908, 0.03125
  %v937 = vmul.f32 %v910, 0.03125
  %v938 = vmul.f32 %v912, 0.03125
  %v939 = vmul.f32 %v914, 0.03125
  %v940 = vmul.f32 %v916, 0.03125
  %v941 = vmul.f32 %v918, 0.03125
  %v942 = vmul.f32 %v920, 0.03125
  %v943 = vmul.f32 %v922, 0.03125
  %v944 = vmul.f32 %v924, 0.03125
  %v945 = vmul.f32 %v926, 0.03125
  %v946 = vmul.f32 %v928, 0.03125
  %v947 = vmul.f32 %v930, 0.03125
  %v948 = vmul.f32 %v932, 0.03125
  %v949 = vsub.f32 %v885, %v933
  %v950 = vsub.f32 %v886, %v934
  %v951 = vsub.f32 %v887, %v935
  %v952 = vsub.f32 %v888, %v936
  %v953 = vsub.f32 %v889, %v937
  %v954 = vsub.f32 %v890, %v938
  %v955 = vsub.f32 %v891, %v939
  %v956 = vsub.f32 %v892, %v940
  %v957 = vsub.f32 %v893, %v941
  %v958 = vsub.f32 %v894, %v942
  %v959 = vsub.f32 %v895, %v943
  %v960 = vsub.f32 %v896, %v944
  %v961 = vsub.f32 %v897, %v945
  %v962 = vsub.f32 %v898, %v946
  %v963 = vsub.f32 %v899, %v947
  %v964 = vsub.f32 %v900, %v948
  %v965 = vlaneseq
  %v966 = vand.u32 %v965, 127
  %vm967 = vcmp.lt.s32.totalorder %v966, 32
  %v968 = vmul.f32 %v949, %v949
  %v969 = vmul.f32 %v950, %v950
  %v970 = vmul.f32 %v951, %v951
  %v971 = vmul.f32 %v952, %v952
  %v972 = vmul.f32 %v953, %v953
  %v973 = vmul.f32 %v954, %v954
  %v974 = vmul.f32 %v955, %v955
  %v975 = vmul.f32 %v956, %v956
  %v976 = vmul.f32 %v957, %v957
  %v977 = vmul.f32 %v958, %v958
  %v978 = vmul.f32 %v959, %v959
  %v979 = vmul.f32 %v960, %v960
  %v980 = vmul.f32 %v961, %v961
  %v981 = vmul.f32 %v962, %v962
  %v982 = vmul.f32 %v963, %v963
  %v983 = vmul.f32 %v964, %v964
  %v984 = vsel %vm967, %v968, 0.0
  %v985 = vsel %vm967, %v969, 0.0
  %v986 = vsel %vm967, %v970, 0.0
  %v987 = vsel %vm967, %v971, 0.0
  %v988 = vsel %vm967, %v972, 0.0
  %v989 = vsel %vm967, %v973, 0.0
  %v990 = vsel %vm967, %v974, 0.0
  %v991 = vsel %vm967, %v975, 0.0
  %v992 = vsel %vm967, %v976, 0.0
  %v993 = vsel %vm967, %v977, 0.0
  %v994 = vsel %vm967, %v978, 0.0
  %v995 = vsel %vm967, %v979, 0.0
  %v996 = vsel %vm967, %v980, 0.0
  %v997 = vsel %vm967, %v981, 0.0
  %v998 = vsel %vm967, %v982, 0.0
  %v999 = vsel %vm967, %v983, 0.0
  %1000 = vadd.xlane.f32.xlu0 %v984
  %v1001 = vpop.xlane.xlu0 %1000
  %1002 = vadd.xlane.f32.xlu0 %v985
  %v1003 = vpop.xlane.xlu0 %1002
  %1004 = vadd.xlane.f32.xlu0 %v986
  %v1005 = vpop.xlane.xlu0 %1004
  %1006 = vadd.xlane.f32.xlu0 %v987
  %v1007 = vpop.xlane.xlu0 %1006
  %1008 = vadd.xlane.f32.xlu0 %v988
  %v1009 = vpop.xlane.xlu0 %1008
  %1010 = vadd.xlane.f32.xlu0 %v989
  %v1011 = vpop.xlane.xlu0 %1010
  %1012 = vadd.xlane.f32.xlu0 %v990
  %v1013 = vpop.xlane.xlu0 %1012
  %1014 = vadd.xlane.f32.xlu0 %v991
  %v1015 = vpop.xlane.xlu0 %1014
  %1016 = vadd.xlane.f32.xlu0 %v992
  %v1017 = vpop.xlane.xlu0 %1016
  %1018 = vadd.xlane.f32.xlu0 %v993
  %v1019 = vpop.xlane.xlu0 %1018
  %1020 = vadd.xlane.f32.xlu0 %v994
  %v1021 = vpop.xlane.xlu0 %1020
  %1022 = vadd.xlane.f32.xlu0 %v995
  %v1023 = vpop.xlane.xlu0 %1022
  %1024 = vadd.xlane.f32.xlu0 %v996
  %v1025 = vpop.xlane.xlu0 %1024
  %1026 = vadd.xlane.f32.xlu0 %v997
  %v1027 = vpop.xlane.xlu0 %1026
  %1028 = vadd.xlane.f32.xlu0 %v998
  %v1029 = vpop.xlane.xlu0 %1028
  %1030 = vadd.xlane.f32.xlu0 %v999
  %v1031 = vpop.xlane.xlu0 %1030
  %v1032 = vmul.f32 %v1001, 0.03125
  %v1033 = vmul.f32 %v1003, 0.03125
  %v1034 = vmul.f32 %v1005, 0.03125
  %v1035 = vmul.f32 %v1007, 0.03125
  %v1036 = vmul.f32 %v1009, 0.03125
  %v1037 = vmul.f32 %v1011, 0.03125
  %v1038 = vmul.f32 %v1013, 0.03125
  %v1039 = vmul.f32 %v1015, 0.03125
  %v1040 = vmul.f32 %v1017, 0.03125
  %v1041 = vmul.f32 %v1019, 0.03125
  %v1042 = vmul.f32 %v1021, 0.03125
  %v1043 = vmul.f32 %v1023, 0.03125
  %v1044 = vmul.f32 %v1025, 0.03125
  %v1045 = vmul.f32 %v1027, 0.03125
  %v1046 = vmul.f32 %v1029, 0.03125
  %v1047 = vmul.f32 %v1031, 0.03125
  %v1048 = vadd.f32 %v1032, 1e-05
  %v1049 = vadd.f32 %v1033, 1e-05
  %v1050 = vadd.f32 %v1034, 1e-05
  %v1051 = vadd.f32 %v1035, 1e-05
  %v1052 = vadd.f32 %v1036, 1e-05
  %v1053 = vadd.f32 %v1037, 1e-05
  %v1054 = vadd.f32 %v1038, 1e-05
  %v1055 = vadd.f32 %v1039, 1e-05
  %v1056 = vadd.f32 %v1040, 1e-05
  %v1057 = vadd.f32 %v1041, 1e-05
  %v1058 = vadd.f32 %v1042, 1e-05
  %v1059 = vadd.f32 %v1043, 1e-05
  %v1060 = vadd.f32 %v1044, 1e-05
  %v1061 = vadd.f32 %v1045, 1e-05
  %v1062 = vadd.f32 %v1046, 1e-05
  %v1063 = vadd.f32 %v1047, 1e-05
  %v1064 = vrsqrt.pop %v1048
  %v1065 = vmul.f32 %v1064, %v1048
  %v1066 = vmul.f32 %v1065, %v1064
  %v1067 = vmul.f32 0.5, %v1066
  %v1068 = vsub.f32 1.5, %v1067
  %v1069 = vmul.f32 %v1064, %v1068
  %vm1070 = vweird.f32 %v1048
  %vm1071 = vweird.f32 %v1064
  %vm1072 = vmor %vm1070, %vm1071
  %v1073 = vsel %vm1072, %v1064, %v1069
  %v1074 = vrsqrt.pop %v1049
  %v1075 = vmul.f32 %v1074, %v1049
  %v1076 = vmul.f32 %v1075, %v1074
  %v1077 = vmul.f32 0.5, %v1076
  %v1078 = vsub.f32 1.5, %v1077
  %v1079 = vmul.f32 %v1074, %v1078
  %vm1080 = vweird.f32 %v1049
  %vm1081 = vweird.f32 %v1074
  %vm1082 = vmor %vm1080, %vm1081
  %v1083 = vsel %vm1082, %v1074, %v1079
  %v1084 = vrsqrt.pop %v1050
  %v1085 = vmul.f32 %v1084, %v1050
  %v1086 = vmul.f32 %v1085, %v1084
  %v1087 = vmul.f32 0.5, %v1086
  %v1088 = vsub.f32 1.5, %v1087
  %v1089 = vmul.f32 %v1084, %v1088
  %vm1090 = vweird.f32 %v1050
  %vm1091 = vweird.f32 %v1084
  %vm1092 = vmor %vm1090, %vm1091
  %v1093 = vsel %vm1092, %v1084, %v1089
  %v1094 = vrsqrt.pop %v1051
  %v1095 = vmul.f32 %v1094, %v1051
  %v1096 = vmul.f32 %v1095, %v1094
  %v1097 = vmul.f32 0.5, %v1096
  %v1098 = vsub.f32 1.5, %v1097
  %v1099 = vmul.f32 %v1094, %v1098
  %vm1100 = vweird.f32 %v1051
  %vm1101 = vweird.f32 %v1094
  %vm1102 = vmor %vm1100, %vm1101
  %v1103 = vsel %vm1102, %v1094, %v1099
  %v1104 = vrsqrt.pop %v1052
  %v1105 = vmul.f32 %v1104, %v1052
  %v1106 = vmul.f32 %v1105, %v1104
  %v1107 = vmul.f32 0.5, %v1106
  %v1108 = vsub.f32 1.5, %v1107
  %v1109 = vmul.f32 %v1104, %v1108
  %vm1110 = vweird.f32 %v1052
  %vm1111 = vweird.f32 %v1104
  %vm1112 = vmor %vm1110, %vm1111
  %v1113 = vsel %vm1112, %v1104, %v1109
  %v1114 = vrsqrt.pop %v1053
  %v1115 = vmul.f32 %v1114, %v1053
  %v1116 = vmul.f32 %v1115, %v1114
  %v1117 = vmul.f32 0.5, %v1116
  %v1118 = vsub.f32 1.5, %v1117
  %v1119 = vmul.f32 %v1114, %v1118
  %vm1120 = vweird.f32 %v1053
  %vm1121 = vweird.f32 %v1114
  %vm1122 = vmor %vm1120, %vm1121
  %v1123 = vsel %vm1122, %v1114, %v1119
  %v1124 = vrsqrt.pop %v1054
  %v1125 = vmul.f32 %v1124, %v1054
  %v1126 = vmul.f32 %v1125, %v1124
  %v1127 = vmul.f32 0.5, %v1126
  %v1128 = vsub.f32 1.5, %v1127
  %v1129 = vmul.f32 %v1124, %v1128
  %vm1130 = vweird.f32 %v1054
  %vm1131 = vweird.f32 %v1124
  %vm1132 = vmor %vm1130, %vm1131
  %v1133 = vsel %vm1132, %v1124, %v1129
  %v1134 = vrsqrt.pop %v1055
  %v1135 = vmul.f32 %v1134, %v1055
  %v1136 = vmul.f32 %v1135, %v1134
  %v1137 = vmul.f32 0.5, %v1136
  %v1138 = vsub.f32 1.5, %v1137
  %v1139 = vmul.f32 %v1134, %v1138
  %vm1140 = vweird.f32 %v1055
  %vm1141 = vweird.f32 %v1134
  %vm1142 = vmor %vm1140, %vm1141
  %v1143 = vsel %vm1142, %v1134, %v1139
  %v1144 = vrsqrt.pop %v1056
  %v1145 = vmul.f32 %v1144, %v1056
  %v1146 = vmul.f32 %v1145, %v1144
  %v1147 = vmul.f32 0.5, %v1146
  %v1148 = vsub.f32 1.5, %v1147
  %v1149 = vmul.f32 %v1144, %v1148
  %vm1150 = vweird.f32 %v1056
  %vm1151 = vweird.f32 %v1144
  %vm1152 = vmor %vm1150, %vm1151
  %v1153 = vsel %vm1152, %v1144, %v1149
  %v1154 = vrsqrt.pop %v1057
  %v1155 = vmul.f32 %v1154, %v1057
  %v1156 = vmul.f32 %v1155, %v1154
  %v1157 = vmul.f32 0.5, %v1156
  %v1158 = vsub.f32 1.5, %v1157
  %v1159 = vmul.f32 %v1154, %v1158
  %vm1160 = vweird.f32 %v1057
  %vm1161 = vweird.f32 %v1154
  %vm1162 = vmor %vm1160, %vm1161
  %v1163 = vsel %vm1162, %v1154, %v1159
  %v1164 = vrsqrt.pop %v1058
  %v1165 = vmul.f32 %v1164, %v1058
  %v1166 = vmul.f32 %v1165, %v1164
  %v1167 = vmul.f32 0.5, %v1166
  %v1168 = vsub.f32 1.5, %v1167
  %v1169 = vmul.f32 %v1164, %v1168
  %vm1170 = vweird.f32 %v1058
  %vm1171 = vweird.f32 %v1164
  %vm1172 = vmor %vm1170, %vm1171
  %v1173 = vsel %vm1172, %v1164, %v1169
  %v1174 = vrsqrt.pop %v1059
  %v1175 = vmul.f32 %v1174, %v1059
  %v1176 = vmul.f32 %v1175, %v1174
  %v1177 = vmul.f32 0.5, %v1176
  %v1178 = vsub.f32 1.5, %v1177
  %v1179 = vmul.f32 %v1174, %v1178
  %vm1180 = vweird.f32 %v1059
  %vm1181 = vweird.f32 %v1174
  %vm1182 = vmor %vm1180, %vm1181
  %v1183 = vsel %vm1182, %v1174, %v1179
  %v1184 = vrsqrt.pop %v1060
  %v1185 = vmul.f32 %v1184, %v1060
  %v1186 = vmul.f32 %v1185, %v1184
  %v1187 = vmul.f32 0.5, %v1186
  %v1188 = vsub.f32 1.5, %v1187
  %v1189 = vmul.f32 %v1184, %v1188
  %vm1190 = vweird.f32 %v1060
  %vm1191 = vweird.f32 %v1184
  %vm1192 = vmor %vm1190, %vm1191
  %v1193 = vsel %vm1192, %v1184, %v1189
  %v1194 = vrsqrt.pop %v1061
  %v1195 = vmul.f32 %v1194, %v1061
  %v1196 = vmul.f32 %v1195, %v1194
  %v1197 = vmul.f32 0.5, %v1196
  %v1198 = vsub.f32 1.5, %v1197
  %v1199 = vmul.f32 %v1194, %v1198
  %vm1200 = vweird.f32 %v1061
  %vm1201 = vweird.f32 %v1194
  %vm1202 = vmor %vm1200, %vm1201
  %v1203 = vsel %vm1202, %v1194, %v1199
  %v1204 = vrsqrt.pop %v1062
  %v1205 = vmul.f32 %v1204, %v1062
  %v1206 = vmul.f32 %v1205, %v1204
  %v1207 = vmul.f32 0.5, %v1206
  %v1208 = vsub.f32 1.5, %v1207
  %v1209 = vmul.f32 %v1204, %v1208
  %vm1210 = vweird.f32 %v1062
  %vm1211 = vweird.f32 %v1204
  %vm1212 = vmor %vm1210, %vm1211
  %v1213 = vsel %vm1212, %v1204, %v1209
  %v1214 = vrsqrt.pop %v1063
  %v1215 = vmul.f32 %v1214, %v1063
  %v1216 = vmul.f32 %v1215, %v1214
  %v1217 = vmul.f32 0.5, %v1216
  %v1218 = vsub.f32 1.5, %v1217
  %v1219 = vmul.f32 %v1214, %v1218
  %vm1220 = vweird.f32 %v1063
  %vm1221 = vweird.f32 %v1214
  %vm1222 = vmor %vm1220, %vm1221
  %v1223 = vsel %vm1222, %v1214, %v1219
  %v1224 = vmul.f32 %v949, %v1073
  %v1225 = vmul.f32 %v950, %v1083
  %v1226 = vmul.f32 %v951, %v1093
  %v1227 = vmul.f32 %v952, %v1103
  %v1228 = vmul.f32 %v953, %v1113
  %v1229 = vmul.f32 %v954, %v1123
  %v1230 = vmul.f32 %v955, %v1133
  %v1231 = vmul.f32 %v956, %v1143
  %v1232 = vmul.f32 %v957, %v1153
  %v1233 = vmul.f32 %v958, %v1163
  %v1234 = vmul.f32 %v959, %v1173
  %v1235 = vmul.f32 %v960, %v1183
  %v1236 = vmul.f32 %v961, %v1193
  %v1237 = vmul.f32 %v962, %v1203
  %v1238 = vmul.f32 %v963, %v1213
  %v1239 = vmul.f32 %v964, %v1223
  %v1240 = vld [vmem:[%s2] sm:$0x1]
  %v1242 = vperm.slane %v1240, 0
  %v1244 = vmul.f32 %v1224, %v1242
  %v1245 = vmul.f32 %v1225, %v1242
  %v1246 = vmul.f32 %v1226, %v1242
  %v1247 = vmul.f32 %v1227, %v1242
  %v1248 = vmul.f32 %v1228, %v1242
  %v1249 = vmul.f32 %v1229, %v1242
  %v1250 = vmul.f32 %v1230, %v1242
  %v1251 = vmul.f32 %v1231, %v1242
  %v1252 = vmul.f32 %v1232, %v1242
  %v1253 = vmul.f32 %v1233, %v1242
  %v1254 = vmul.f32 %v1234, %v1242
  %v1255 = vmul.f32 %v1235, %v1242
  %v1256 = vmul.f32 %v1236, %v1242
  %v1257 = vmul.f32 %v1237, %v1242
  %v1258 = vmul.f32 %v1238, %v1242
  %v1259 = vmul.f32 %v1239, %v1242
  %v1260 = vld [vmem:[%s3] sm:$0x1]
  %v1262 = vperm.slane %v1260, 0
  %v1264 = vadd.f32 %v1244, %v1262
  %v1265 = vadd.f32 %v1245, %v1262
  %v1266 = vadd.f32 %v1246, %v1262
  %v1267 = vadd.f32 %v1247, %v1262
  %v1268 = vadd.f32 %v1248, %v1262
  %v1269 = vadd.f32 %v1249, %v1262
  %v1270 = vadd.f32 %v1250, %v1262
  %v1271 = vadd.f32 %v1251, %v1262
  %v1272 = vadd.f32 %v1252, %v1262
  %v1273 = vadd.f32 %v1253, %v1262
  %v1274 = vadd.f32 %v1254, %v1262
  %v1275 = vadd.f32 %v1255, %v1262
  %v1276 = vadd.f32 %v1256, %v1262
  %v1277 = vadd.f32 %v1257, %v1262
  %v1278 = vadd.f32 %v1258, %v1262
  %v1279 = vadd.f32 %v1259, %v1262
  %v1280 = vld [vmem:[%s4] sm:$0x1]
  %v1282 = vperm.slane %v1280, 0
  %v1284 = vmul.f32 %v1264, %v1282
  %v1285 = vmul.f32 %v1265, %v1282
  %v1286 = vmul.f32 %v1266, %v1282
  %v1287 = vmul.f32 %v1267, %v1282
  %v1288 = vmul.f32 %v1268, %v1282
  %v1289 = vmul.f32 %v1269, %v1282
  %v1290 = vmul.f32 %v1270, %v1282
  %v1291 = vmul.f32 %v1271, %v1282
  %v1292 = vmul.f32 %v1272, %v1282
  %v1293 = vmul.f32 %v1273, %v1282
  %v1294 = vmul.f32 %v1274, %v1282
  %v1295 = vmul.f32 %v1275, %v1282
  %v1296 = vmul.f32 %v1276, %v1282
  %v1297 = vmul.f32 %v1277, %v1282
  %v1298 = vmul.f32 %v1278, %v1282
  %v1299 = vmul.f32 %v1279, %v1282
  %1300 = vadd.xlane.f32.xlu0 %v1284
  %v1301 = vpop.xlane.xlu0 %1300
  %1302 = vadd.xlane.f32.xlu0 %v1285
  %v1303 = vpop.xlane.xlu0 %1302
  %1304 = vadd.xlane.f32.xlu0 %v1286
  %v1305 = vpop.xlane.xlu0 %1304
  %1306 = vadd.xlane.f32.xlu0 %v1287
  %v1307 = vpop.xlane.xlu0 %1306
  %1308 = vadd.xlane.f32.xlu0 %v1288
  %v1309 = vpop.xlane.xlu0 %1308
  %1310 = vadd.xlane.f32.xlu0 %v1289
  %v1311 = vpop.xlane.xlu0 %1310
  %1312 = vadd.xlane.f32.xlu0 %v1290
  %v1313 = vpop.xlane.xlu0 %1312
  %1314 = vadd.xlane.f32.xlu0 %v1291
  %v1315 = vpop.xlane.xlu0 %1314
  %1316 = vadd.xlane.f32.xlu0 %v1292
  %v1317 = vpop.xlane.xlu0 %1316
  %1318 = vadd.xlane.f32.xlu0 %v1293
  %v1319 = vpop.xlane.xlu0 %1318
  %1320 = vadd.xlane.f32.xlu0 %v1294
  %v1321 = vpop.xlane.xlu0 %1320
  %1322 = vadd.xlane.f32.xlu0 %v1295
  %v1323 = vpop.xlane.xlu0 %1322
  %1324 = vadd.xlane.f32.xlu0 %v1296
  %v1325 = vpop.xlane.xlu0 %1324
  %1326 = vadd.xlane.f32.xlu0 %v1297
  %v1327 = vpop.xlane.xlu0 %1326
  %1328 = vadd.xlane.f32.xlu0 %v1298
  %v1329 = vpop.xlane.xlu0 %1328
  %1330 = vadd.xlane.f32.xlu0 %v1299
  %v1331 = vpop.xlane.xlu0 %1330
  %vm1332 = vcmask 7168
  %1333 = vst.msk [vmem:[%s5] sm:$0xff] %vm1332, %v1301
  %1334 = vst.msk [vmem:[%s5 + $0x8] sm:$0xff] %vm1332, %v1303
  %1335 = vst.msk [vmem:[%s5 + $0x10] sm:$0xff] %vm1332, %v1305
  %1336 = vst.msk [vmem:[%s5 + $0x18] sm:$0xff] %vm1332, %v1307
  %1337 = vst.msk [vmem:[%s5 + $0x20] sm:$0xff] %vm1332, %v1309
  %1338 = vst.msk [vmem:[%s5 + $0x28] sm:$0xff] %vm1332, %v1311
  %1339 = vst.msk [vmem:[%s5 + $0x30] sm:$0xff] %vm1332, %v1313
  %1340 = vst.msk [vmem:[%s5 + $0x38] sm:$0xff] %vm1332, %v1315
  %1341 = vst.msk [vmem:[%s5 + $0x40] sm:$0xff] %vm1332, %v1317
  %1342 = vst.msk [vmem:[%s5 + $0x48] sm:$0xff] %vm1332, %v1319
  %1343 = vst.msk [vmem:[%s5 + $0x50] sm:$0xff] %vm1332, %v1321
  %1344 = vst.msk [vmem:[%s5 + $0x58] sm:$0xff] %vm1332, %v1323
  %1345 = vst.msk [vmem:[%s5 + $0x60] sm:$0xff] %vm1332, %v1325
  %1346 = vst.msk [vmem:[%s5 + $0x68] sm:$0xff] %vm1332, %v1327
  %1347 = vst.msk [vmem:[%s5 + $0x70] sm:$0xff] %vm1332, %v1329
  %1348 = vst.msk [vmem:[%s5 + $0x78] sm:$0xff] %vm1332, %v1331
  // Predicated region
  $region22: #{gcn_forward.9} parent=0 // pred_check
    _
  $region23: #{gcn_forward.9} parent=0 // pred_check_branch
    %1350 = sbr.rel (0) target = $region25
  $region24: #{gcn_forward.9} parent=0 // pred_region
    _
  $region25: #{gcn_forward.9} parent=0 // pred_fallthru
    _
  // Predicated region
  $region26: #{gcn_forward.9} parent=0 // pred_check
    _
  $region27: #{gcn_forward.9} parent=0 // pred_check_branch
    %1352 = sbr.rel (0) target = $region29
  $region28: #{gcn_forward.9} parent=0 // pred_region
    _
  $region29: #{gcn_forward.9} parent=0 // pred_fallthru
    _

</llo_original>
